<compile_context>
chip_gen: v5e
topology: v5e:2x2
jax: 0.10.0
libtpu: 0.0.40
codegen_flags: <defaults>
</compile_context>

<pallas_src>
import functools

import jax
import jax.numpy as jnp
import numpy as np
from jax import lax
from jax.experimental import pallas as pl
from jax.experimental.pallas import tpu as pltpu

EPS = 1e-5  # nn.GroupNorm default eps


# -----------------------------------------------------------------------------
# Fused kernel builder (all shape/config parameters are static Python values)
# -----------------------------------------------------------------------------
def _build_kernel(stride, bn, Ho, Wo, Cin, Cout, Cp, G, has_wd):
    s = stride
    HW = Ho * Wo
    M = bn * HW
    inv_cnt = 1.0 / float(HW * (Cout // G))  # elements per (sample, group), real channels only

    def group_norm(acc, bias, gamma, beta, mt, mtT):
        """Two-pass GroupNorm of (conv_out + bias); acc is conv_out WITHOUT bias.

        acc: (bn, HW, Cp) f32.  mt/mtT: (G, Cp)/(Cp, G) group mask over REAL channels.
        Per-sample sums run on the VPU (jnp.sum over HW); the tiny group reductions stay
        as (bn, Cp) x (Cp, G) matmuls; broadcasts are plain VPU broadcasts.
        """
        ch_sum = jnp.sum(acc, axis=1) + HW * bias                                       # (bn, Cp)
        mean_g = jnp.dot(ch_sum, mtT, preferred_element_type=jnp.float32) * inv_cnt     # (bn, G)
        mean_c = jnp.dot(mean_g, mt, preferred_element_type=jnp.float32)                # (bn, Cp)
        t = acc + (bias - mean_c)[:, None, :]                                           # centered
        sq_sum = jnp.sum(t * t, axis=1)                                                 # (bn, Cp)
        var_g = jnp.dot(sq_sum, mtT, preferred_element_type=jnp.float32) * inv_cnt      # (bn, G)
        scale_c = jnp.dot(lax.rsqrt(var_g + EPS), mt,
                          preferred_element_type=jnp.float32) * gamma                   # (bn, Cp)
        return t * scale_c[:, None, :] + beta                                           # (bn,HW,Cp)

    def kernel(*refs):
        if has_wd:
            (xph_ref, w1_ref, w2_ref, wd_ref, vec_ref, mt_ref, mtT_ref,
             out_ref, y1p_ref, x9_ref, y9_ref) = refs
        else:
            (xph_ref, w1_ref, w2_ref, vec_ref, mt_ref, mtT_ref,
             out_ref, y1p_ref, x9_ref, y9_ref) = refs
            wd_ref = None

        mt, mtT = mt_ref[...], mtT_ref[...]

        def vrow(k):                                  # (1, Cp) f32 parameter row
            return vec_ref[k:k + 1, :]

        def gn(acc, k):                               # k: 0=norm1, 1=norm2, 2=norm3
            return group_norm(acc, vrow(3 * k), vrow(3 * k + 1), vrow(3 * k + 2), mt, mtT)

        # ---- zero only the 1-pixel halo of the y1 scratch (interior overwritten below).
        #      Done every step so it is correct even when the parallel grid axis is sharded
        #      across TensorCores (each core has its own scratch instance).
        zrow = jnp.zeros((bn, 1, Wo + 2, Cp), jnp.bfloat16)
        zcol = jnp.zeros((bn, Ho, 1, Cp), jnp.bfloat16)
        y1p_ref[:, 0:1, :, :] = zrow
        y1p_ref[:, Ho + 1:Ho + 2, :, :] = zrow
        y1p_ref[:, 1:Ho + 1, 0:1, :] = zcol
        y1p_ref[:, 1:Ho + 1, Wo + 1:Wo + 2, :] = zcol

        # ---- conv1: stage taps once into a bf16 K-packed buffer, ONE matmul (K = 9*Cin) ----
        for dy in range(3):
            for dx in range(3):
                ti = dy * 3 + dx
                p = (dy % s) * s + (dx % s)
                oy, ox = dy // s, dx // s
                x9_ref[:, ti * Cin:(ti + 1) * Cin] = (
                    xph_ref[:, p, oy:oy + Ho, ox:ox + Wo, :].reshape(M, Cin))
        acc1 = jnp.dot(x9_ref[...], w1_ref[...],
                       preferred_element_type=jnp.float32).reshape(bn, HW, Cp)
        y1 = jnp.maximum(gn(acc1, 0), 0.0)                            # (bn, HW, Cp) f32

        # ---- residual branch ----
        pr = (1 % s) * s + (1 % s)
        o_r = 1 // s
        res_tap = xph_ref[:, pr, o_r:o_r + Ho, o_r:o_r + Wo, :].reshape(M, Cin)  # bf16
        if s == 1:
            if has_wd:   # identity embed into the 128-padded channel space
                res = jnp.dot(res_tap, wd_ref[...],
                              preferred_element_type=jnp.float32).reshape(bn, HW, Cp)
            else:        # Cin == Cp: plain identity residual
                res = res_tap.astype(jnp.float32).reshape(bn, HW, Cp)
        else:            # 1x1 conv (stride s) + GroupNorm3, no ReLU
            accd = jnp.dot(res_tap, wd_ref[...],
                           preferred_element_type=jnp.float32).reshape(bn, HW, Cp)
            res = gn(accd, 2)

        # ---- keep y1 on-chip: bf16 zero-halo scratch feeds conv2 (no HBM trip) ----
        y1p_ref[:, 1:Ho + 1, 1:Wo + 1, :] = y1.astype(jnp.bfloat16).reshape(bn, Ho, Wo, Cp)

        # ---- conv2: same K-packing, ONE matmul (K = 9*Cp) ----
        for dy in range(3):
            for dx in range(3):
                ti = dy * 3 + dx
                y9_ref[:, ti * Cp:(ti + 1) * Cp] = (
                    y1p_ref[:, dy:dy + Ho, dx:dx + Wo, :].reshape(M, Cp))
        acc2 = jnp.dot(y9_ref[...], w2_ref[...],
                       preferred_element_type=jnp.float32).reshape(bn, HW, Cp)
        y2 = jnp.maximum(gn(acc2, 1), 0.0)

        out_ref[...] = jnp.maximum(res + y2, 0.0)

    return kernel


# -----------------------------------------------------------------------------
# Host-side wrapper: cheap layout prep + one pallas_call
# -----------------------------------------------------------------------------
def _w3x3_to_mat(w, cp_in, cp_out):
    # PyTorch (Cout, Cin, 3, 3) -> (9*cp_in, cp_out) bf16, tap-major rows, zero-padded.
    co, ci, kh, kw = w.shape
    m = jnp.transpose(w, (2, 3, 1, 0))                                    # (3, 3, ci, co)
    m = jnp.pad(m, ((0, 0), (0, 0), (0, cp_in - ci), (0, cp_out - co)))
    return m.reshape(kh * kw * cp_in, cp_out).astype(jnp.bfloat16)


def residual_block_forward(x_nhwc, params, stride, num_groups, vmem_budget_bytes=44 << 20):
    """Fused RAFT ResidualBlock forward (norm_fn='group'), NHWC in / NHWC out."""
    N, H, W, Cin = x_nhwc.shape
    Cout = params["w1"].shape[0]
    G, s = num_groups, stride
    assert Cout % G == 0, "planes must be divisible by num_groups"
    if s == 1:
        assert Cin == Cout, "stride=1 identity residual requires in_planes == planes"

    Cp = -(-Cout // 128) * 128                       # lane-dense padded channel count
    Ho = (H - 1) // s + 1
    Wo = (W - 1) // s + 1
    HW = Ho * Wo
    has_wd = (s != 1) or (Cin != Cp)

    # ---- host prep (~1x input bytes): zero-pad + space-to-phase split, cast to bf16 ----
    xp = jnp.pad(x_nhwc, ((0, 0), (1, 1), (1, 1), (0, 0)))
    Hp, Wp = H + 2, W + 2
    Hq, Wq = -(-Hp // s), -(-Wp // s)
    xp = jnp.pad(xp, ((0, 0), (0, Hq * s - Hp), (0, Wq * s - Wp), (0, 0)))
    phases = xp.reshape(N, Hq, s, Wq, s, Cin).transpose(0, 2, 4, 1, 3, 5)
    phases = phases.reshape(N, s * s, Hq, Wq, Cin).astype(jnp.bfloat16)   # phase (r%s, c%s)

    # ---- VMEM footprint model (bytes): 2x double-buffered pipeline blocks + scratch ----
    fixed = 2 * (9 * Cin * Cp * 2 + 9 * Cp * Cp * 2
                 + (Cin * Cp * 2 if has_wd else 0)
                 + 9 * Cp * 4 + 2 * G * Cp * 4)

    def block_bytes(b):
        m = b * HW
        return (2 * b * s * s * Hq * Wq * Cin * 2        # phases block (bf16), 2 buffers
                + 2 * m * Cp * 4                          # output block (f32), 2 buffers
                + b * (Ho + 2) * (Wo + 2) * Cp * 2        # y1 padded scratch (bf16)
                + m * 9 * Cin * 2                         # conv1 im2col scratch (bf16)
                + m * 9 * Cp * 2)                         # conv2 im2col scratch (bf16)

    # largest divisor of N that fits AND leaves >= 2 grid steps (v7x megacore) when N >= 2
    bn = 0
    for d in range(1, N + 1):
        if N % d != 0:
            continue
        if N >= 2 and N // d < 2:
            continue
        if fixed + block_bytes(d) <= vmem_budget_bytes:
            bn = d
    if bn == 0:
        raise ValueError(
            "ResidualBlock tile does not fit the VMEM budget even at bn=1; "
            "an HW-tile grid axis is required for this shape (see TODO).")
    M = bn * HW
    vmem_limit = int(min(100 << 20, max(32 << 20, fixed + block_bytes(bn) + (4 << 20))))

    # ---- parameters, channel-padded to Cp ----
    w1m = _w3x3_to_mat(params["w1"], Cin, Cp)        # (9*Cin, Cp) bf16
    w2m = _w3x3_to_mat(params["w2"], Cp, Cp)         # (9*Cp,  Cp) bf16

    vec_rows = [params["b1"], params["g1"], params["bt1"],
                params["b2"], params["g2"], params["bt2"]]
    if s != 1:
        vec_rows += [params["bd"], params["g3"], params["bt3"]]
    else:
        vec_rows += [jnp.zeros((Cout,), jnp.float32)] * 3            # norm3 unused
    vec = jnp.stack([jnp.pad(v.astype(jnp.float32), (0, Cp - Cout)) for v in vec_rows])  # (9,Cp)

    gsz = Cout // G
    ch = jnp.arange(Cp)
    mt = ((ch[None, :] // gsz == jnp.arange(G)[:, None])
          & (ch[None, :] < Cout)).astype(jnp.float32)                # (G, Cp) real-channel mask

    if s != 1:
        wdm = jnp.transpose(params["wd"].reshape(Cout, Cin))         # (Cin, Cout)
        wdm = jnp.pad(wdm, ((0, 0), (0, Cp - Cout))).astype(jnp.bfloat16)
    elif has_wd:
        wdm = jnp.pad(jnp.eye(Cin, dtype=jnp.float32),
                      ((0, 0), (0, Cp - Cin))).astype(jnp.bfloat16)  # identity embed

    in_specs = [pl.BlockSpec((bn, s * s, Hq, Wq, Cin), lambda i: (i, 0, 0, 0, 0)),
                pl.BlockSpec((9 * Cin, Cp), lambda i: (0, 0)),
                pl.BlockSpec((9 * Cp, Cp), lambda i: (0, 0))]
    args = [phases, w1m, w2m]
    if has_wd:
        in_specs.append(pl.BlockSpec((Cin, Cp), lambda i: (0, 0)))
        args.append(wdm)
    in_specs += [pl.BlockSpec((9, Cp), lambda i: (0, 0)),
                 pl.BlockSpec((G, Cp), lambda i: (0, 0)),
                 pl.BlockSpec((Cp, G), lambda i: (0, 0))]
    args += [vec, mt, mt.T]

    out = pl.pallas_call(
        _build_kernel(s, bn, Ho, Wo, Cin, Cout, Cp, G, has_wd),
        out_shape=jax.ShapeDtypeStruct((N, HW, Cp), jnp.float32),
        grid=(N // bn,),
        in_specs=in_specs,
        out_specs=pl.BlockSpec((bn, HW, Cp), lambda i: (i, 0, 0)),
        scratch_shapes=[pltpu.VMEM((bn, Ho + 2, Wo + 2, Cp), jnp.bfloat16),  # y1 zero-halo
                        pltpu.VMEM((M, 9 * Cin), jnp.bfloat16),              # conv1 im2col
                        pltpu.VMEM((M, 9 * Cp), jnp.bfloat16)],              # conv2 im2col
        compiler_params=pltpu.CompilerParams(
            dimension_semantics=("parallel",),
            vmem_limit_bytes=vmem_limit),
    )(*args)
    return out.reshape(N, Ho, Wo, Cp)[..., :Cout]


# -----------------------------------------------------------------------------
# Pure-JAX reference (mirrors the PyTorch module exactly, NHWC, all f32)
# -----------------------------------------------------------------------------
def conv2d_ref(x, w, b, stride, pad):
    w_hwio = jnp.transpose(w, (2, 3, 1, 0))
    y = lax.conv_general_dilated(x, w_hwio, (stride, stride), ((pad, pad), (pad, pad)),
                                 dimension_numbers=("NHWC", "HWIO", "NHWC"))
    return y + b.reshape(1, 1, 1, -1)


def groupnorm_ref(y, gamma, beta, G):
    N, H, W, C = y.shape
    yg = y.reshape(N, H, W, G, C // G)
    mean = jnp.mean(yg, axis=(1, 2, 4), keepdims=True)
    var = jnp.var(yg, axis=(1, 2, 4), keepdims=True)
    yn = ((yg - mean) / jnp.sqrt(var + EPS)).reshape(N, H, W, C)
    return yn * gamma.reshape(1, 1, 1, C) + beta.reshape(1, 1, 1, C)


def residual_block_ref(x, params, stride, G):
    y = jax.nn.relu(groupnorm_ref(conv2d_ref(x, params["w1"], params["b1"], stride, 1),
                                  params["g1"], params["bt1"], G))
    y = jax.nn.relu(groupnorm_ref(conv2d_ref(y, params["w2"], params["b2"], 1, 1),
                                  params["g2"], params["bt2"], G))
    if stride == 1:
        xr = x
    else:
        xr = groupnorm_ref(conv2d_ref(x, params["wd"], params["bd"], stride, 0),
                           params["g3"], params["bt3"], G)
    return jax.nn.relu(xr + y)


# -----------------------------------------------------------------------------
def _make_params(key, in_planes, planes, stride):
    ks = jax.random.split(key, 12)
    p = {
        "w1": 0.1 * jax.random.normal(ks[0], (planes, in_planes, 3, 3), jnp.float32),
        "b1": 0.1 * jax.random.normal(ks[1], (planes,), jnp.float32),
        "w2": 0.1 * jax.random.normal(ks[2], (planes, planes, 3, 3), jnp.float32),
        "b2": 0.1 * jax.random.normal(ks[3], (planes,), jnp.float32),
        "g1": 1.0 + 0.1 * jax.random.normal(ks[4], (planes,), jnp.float32),
        "bt1": 0.05 * jax.random.normal(ks[5], (planes,), jnp.float32),
        "g2": 1.0 + 0.1 * jax.random.normal(ks[6], (planes,), jnp.float32),
        "bt2": 0.05 * jax.random.normal(ks[7], (planes,), jnp.float32),
    }
    if stride != 1:
        p["wd"] = 0.1 * jax.random.normal(ks[8], (planes, in_planes, 1, 1), jnp.float32)
        p["bd"] = 0.1 * jax.random.normal(ks[9], (planes,), jnp.float32)
        p["g3"] = 1.0 + 0.1 * jax.random.normal(ks[10], (planes,), jnp.float32)
        p["bt3"] = 0.05 * jax.random.normal(ks[11], (planes,), jnp.float32)
    return p


def _run_config(key, N, H, W, in_planes, planes, stride):
    G = planes // 8
    kp, kx = jax.random.split(key)
    params = _make_params(kp, in_planes, planes, stride)
    x_nchw = jax.random.normal(kx, (N, in_planes, H, W), jnp.float32)   # PyTorch layout
    x_nhwc = jnp.transpose(x_nchw, (0, 2, 3, 1))                        # kernel layout
    fwd = jax.jit(functools.partial(residual_block_forward, stride=stride, num_groups=G))
    out = jax.block_until_ready(fwd(x_nhwc, params))
    ref = residual_block_ref(x_nhwc, params, stride, G)
    # bf16 MXU inputs (f32 accumulation, bf16 identity residual) vs. all-f32 reference
    np.testing.assert_allclose(np.asarray(out), np.asarray(ref), rtol=2e-2, atol=2e-2)


if __name__ == "__main__":
    root = jax.random.PRNGKey(0)
    k1, k2 = jax.random.split(root)
    # stride=2: exercises the downsample (1x1 conv + GroupNorm) residual branch
    _run_config(k1, N=2, H=16, W=16, in_planes=8, planes=16, stride=2)
    # stride=1: module default, identity residual
    _run_config(k2, N=2, H=16, W=16, in_planes=16, planes=16, stride=1)
    print("KERNEL_OK")
</pallas_src>

<mosaic_0001>
module attributes {stable_mosaic.version = 11 : i64} {
  func.func @kernel(%arg0: i32, %arg1: memref<1x4x9x9x8xbf16, #tpu.memory_space<vmem>>, %arg2: memref<72x128xbf16, #tpu.memory_space<vmem>>, %arg3: memref<1152x128xbf16, #tpu.memory_space<vmem>>, %arg4: memref<8x128xbf16, #tpu.memory_space<vmem>>, %arg5: memref<9x128xf32, #tpu.memory_space<vmem>>, %arg6: memref<2x128xf32, #tpu.memory_space<vmem>>, %arg7: memref<128x2xf32, #tpu.memory_space<vmem>>, %arg8: memref<1x64x128xf32, #tpu.memory_space<vmem>>, %arg9: memref<1x10x10x128xbf16, #tpu.memory_space<vmem>>, %arg10: memref<64x72xbf16, #tpu.memory_space<vmem>>, %arg11: memref<64x1152xbf16, #tpu.memory_space<vmem>>) attributes {dimension_semantics = [#tpu.dimension_semantics<parallel>], iteration_bounds = array<i64: 2>, scalar_prefetch = 0 : i64, scratch_operands = 3 : i64, tpu.core_type = #tpu.core_type<tc>, window_params = [{transform_indices = @transform_0, window_bounds = array<i64: 1, 4, 9, 9, 8>}, {pipeline_mode = #tpu.pipeline_mode<synchronous>, transform_indices = @transform_1, window_bounds = array<i64: 72, 128>}, {pipeline_mode = #tpu.pipeline_mode<synchronous>, transform_indices = @transform_2, window_bounds = array<i64: 1152, 128>}, {pipeline_mode = #tpu.pipeline_mode<synchronous>, transform_indices = @transform_3, window_bounds = array<i64: 8, 128>}, {pipeline_mode = #tpu.pipeline_mode<synchronous>, transform_indices = @transform_4, window_bounds = array<i64: 9, 128>}, {pipeline_mode = #tpu.pipeline_mode<synchronous>, transform_indices = @transform_5, window_bounds = array<i64: 2, 128>}, {pipeline_mode = #tpu.pipeline_mode<synchronous>, transform_indices = @transform_6, window_bounds = array<i64: 128, 2>}, {transform_indices = @transform_7, window_bounds = array<i64: 1, 64, 128>}]} {
    %c0 = arith.constant 0 : index
    %c0_0 = arith.constant 0 : index
    %0 = vector.load %arg6[%c0, %c0_0] : memref<2x128xf32, #tpu.memory_space<vmem>>, vector<2x128xf32>
    %c0_1 = arith.constant 0 : index
    %c0_2 = arith.constant 0 : index
    %1 = vector.load %arg7[%c0_1, %c0_2] : memref<128x2xf32, #tpu.memory_space<vmem>>, vector<128x2xf32>
    %cst = arith.constant 0.000000e+00 : bf16
    %2 = vector.broadcast %cst : bf16 to vector<1x1x10x128xbf16>
    %cst_3 = arith.constant 0.000000e+00 : bf16
    %3 = vector.broadcast %cst_3 : bf16 to vector<1x8x1x128xbf16>
    %c0_4 = arith.constant 0 : index
    %c0_5 = arith.constant 0 : index
    %c0_6 = arith.constant 0 : index
    %c0_7 = arith.constant 0 : index
    %4 = vector.load %arg9[%c0_4, %c0_5, %c0_6, %c0_7] : memref<1x10x10x128xbf16, #tpu.memory_space<vmem>>, vector<1x1x10x128xbf16>
    tpu.vector_store %arg9[%c0_4, %c0_5, %c0_6, %c0_7], %2 {strides = array<i32>} : memref<1x10x10x128xbf16, #tpu.memory_space<vmem>>, vector<1x1x10x128xbf16>,
    %c0_8 = arith.constant 0 : index
    %c9 = arith.constant 9 : index
    %c0_9 = arith.constant 0 : index
    %c0_10 = arith.constant 0 : index
    %5 = vector.load %arg9[%c0_8, %c9, %c0_9, %c0_10] : memref<1x10x10x128xbf16, #tpu.memory_space<vmem>>, vector<1x1x10x128xbf16>
    tpu.vector_store %arg9[%c0_8, %c9, %c0_9, %c0_10], %2 {strides = array<i32>} : memref<1x10x10x128xbf16, #tpu.memory_space<vmem>>, vector<1x1x10x128xbf16>,
    %c0_11 = arith.constant 0 : index
    %c1 = arith.constant 1 : index
    %c0_12 = arith.constant 0 : index
    %c0_13 = arith.constant 0 : index
    %6 = vector.load %arg9[%c0_11, %c1, %c0_12, %c0_13] : memref<1x10x10x128xbf16, #tpu.memory_space<vmem>>, vector<1x8x1x128xbf16>
    tpu.vector_store %arg9[%c0_11, %c1, %c0_12, %c0_13], %3 {strides = array<i32>} : memref<1x10x10x128xbf16, #tpu.memory_space<vmem>>, vector<1x8x1x128xbf16>,
    %c0_14 = arith.constant 0 : index
    %c1_15 = arith.constant 1 : index
    %c9_16 = arith.constant 9 : index
    %c0_17 = arith.constant 0 : index
    %7 = vector.load %arg9[%c0_14, %c1_15, %c9_16, %c0_17] : memref<1x10x10x128xbf16, #tpu.memory_space<vmem>>, vector<1x8x1x128xbf16>
    tpu.vector_store %arg9[%c0_14, %c1_15, %c9_16, %c0_17], %3 {strides = array<i32>} : memref<1x10x10x128xbf16, #tpu.memory_space<vmem>>, vector<1x8x1x128xbf16>,
    %c0_18 = arith.constant 0 : index
    %c0_19 = arith.constant 0 : index
    %c0_20 = arith.constant 0 : index
    %c0_21 = arith.constant 0 : index
    %c0_22 = arith.constant 0 : index
    %8 = vector.load %arg1[%c0_18, %c0_19, %c0_20, %c0_21, %c0_22] : memref<1x4x9x9x8xbf16, #tpu.memory_space<vmem>>, vector<1x1x8x8x8xbf16>
    %9 = vector.shape_cast %8 : vector<1x1x8x8x8xbf16> to vector<1x8x8x8xbf16>
    %10 = vector.shape_cast %9 : vector<1x8x8x8xbf16> to vector<64x8xbf16>
    %c0_23 = arith.constant 0 : index
    %c0_24 = arith.constant 0 : index
    %11 = vector.load %arg10[%c0_23, %c0_24] : memref<64x72xbf16, #tpu.memory_space<vmem>>, vector<64x8xbf16>
    tpu.vector_store %arg10[%c0_23, %c0_24], %10 {strides = array<i32>} : memref<64x72xbf16, #tpu.memory_space<vmem>>, vector<64x8xbf16>,
    %c0_25 = arith.constant 0 : index
    %c1_26 = arith.constant 1 : index
    %c0_27 = arith.constant 0 : index
    %c0_28 = arith.constant 0 : index
    %c0_29 = arith.constant 0 : index
    %12 = vector.load %arg1[%c0_25, %c1_26, %c0_27, %c0_28, %c0_29] : memref<1x4x9x9x8xbf16, #tpu.memory_space<vmem>>, vector<1x1x8x8x8xbf16>
    %13 = vector.shape_cast %12 : vector<1x1x8x8x8xbf16> to vector<1x8x8x8xbf16>
    %14 = vector.shape_cast %13 : vector<1x8x8x8xbf16> to vector<64x8xbf16>
    %c0_30 = arith.constant 0 : index
    %c8 = arith.constant 8 : index
    %15 = vector.load %arg10[%c0_30, %c8] : memref<64x72xbf16, #tpu.memory_space<vmem>>, vector<64x8xbf16>
    tpu.vector_store %arg10[%c0_30, %c8], %14 {strides = array<i32>} : memref<64x72xbf16, #tpu.memory_space<vmem>>, vector<64x8xbf16>,
    %c0_31 = arith.constant 0 : index
    %c0_32 = arith.constant 0 : index
    %c0_33 = arith.constant 0 : index
    %c1_34 = arith.constant 1 : index
    %c0_35 = arith.constant 0 : index
    %16 = vector.load %arg1[%c0_31, %c0_32, %c0_33, %c1_34, %c0_35] : memref<1x4x9x9x8xbf16, #tpu.memory_space<vmem>>, vector<1x1x8x8x8xbf16>
    %17 = vector.shape_cast %16 : vector<1x1x8x8x8xbf16> to vector<1x8x8x8xbf16>
    %18 = vector.shape_cast %17 : vector<1x8x8x8xbf16> to vector<64x8xbf16>
    %c0_36 = arith.constant 0 : index
    %c16 = arith.constant 16 : index
    %19 = vector.load %arg10[%c0_36, %c16] : memref<64x72xbf16, #tpu.memory_space<vmem>>, vector<64x8xbf16>
    tpu.vector_store %arg10[%c0_36, %c16], %18 {strides = array<i32>} : memref<64x72xbf16, #tpu.memory_space<vmem>>, vector<64x8xbf16>,
    %c0_37 = arith.constant 0 : index
    %c2 = arith.constant 2 : index
    %c0_38 = arith.constant 0 : index
    %c0_39 = arith.constant 0 : index
    %c0_40 = arith.constant 0 : index
    %20 = vector.load %arg1[%c0_37, %c2, %c0_38, %c0_39, %c0_40] : memref<1x4x9x9x8xbf16, #tpu.memory_space<vmem>>, vector<1x1x8x8x8xbf16>
    %21 = vector.shape_cast %20 : vector<1x1x8x8x8xbf16> to vector<1x8x8x8xbf16>
    %22 = vector.shape_cast %21 : vector<1x8x8x8xbf16> to vector<64x8xbf16>
    %c0_41 = arith.constant 0 : index
    %c24 = arith.constant 24 : index
    %23 = vector.load %arg10[%c0_41, %c24] : memref<64x72xbf16, #tpu.memory_space<vmem>>, vector<64x8xbf16>
    tpu.vector_store %arg10[%c0_41, %c24], %22 {strides = array<i32>} : memref<64x72xbf16, #tpu.memory_space<vmem>>, vector<64x8xbf16>,
    %c0_42 = arith.constant 0 : index
    %c3 = arith.constant 3 : index
    %c0_43 = arith.constant 0 : index
    %c0_44 = arith.constant 0 : index
    %c0_45 = arith.constant 0 : index
    %24 = vector.load %arg1[%c0_42, %c3, %c0_43, %c0_44, %c0_45] : memref<1x4x9x9x8xbf16, #tpu.memory_space<vmem>>, vector<1x1x8x8x8xbf16>
    %25 = vector.shape_cast %24 : vector<1x1x8x8x8xbf16> to vector<1x8x8x8xbf16>
    %26 = vector.shape_cast %25 : vector<1x8x8x8xbf16> to vector<64x8xbf16>
    %c0_46 = arith.constant 0 : index
    %c32 = arith.constant 32 : index
    %27 = vector.load %arg10[%c0_46, %c32] : memref<64x72xbf16, #tpu.memory_space<vmem>>, vector<64x8xbf16>
    tpu.vector_store %arg10[%c0_46, %c32], %26 {strides = array<i32>} : memref<64x72xbf16, #tpu.memory_space<vmem>>, vector<64x8xbf16>,
    %c0_47 = arith.constant 0 : index
    %c2_48 = arith.constant 2 : index
    %c0_49 = arith.constant 0 : index
    %c1_50 = arith.constant 1 : index
    %c0_51 = arith.constant 0 : index
    %28 = vector.load %arg1[%c0_47, %c2_48, %c0_49, %c1_50, %c0_51] : memref<1x4x9x9x8xbf16, #tpu.memory_space<vmem>>, vector<1x1x8x8x8xbf16>
    %29 = vector.shape_cast %28 : vector<1x1x8x8x8xbf16> to vector<1x8x8x8xbf16>
    %30 = vector.shape_cast %29 : vector<1x8x8x8xbf16> to vector<64x8xbf16>
    %c0_52 = arith.constant 0 : index
    %c40 = arith.constant 40 : index
    %31 = vector.load %arg10[%c0_52, %c40] : memref<64x72xbf16, #tpu.memory_space<vmem>>, vector<64x8xbf16>
    tpu.vector_store %arg10[%c0_52, %c40], %30 {strides = array<i32>} : memref<64x72xbf16, #tpu.memory_space<vmem>>, vector<64x8xbf16>,
    %c0_53 = arith.constant 0 : index
    %c0_54 = arith.constant 0 : index
    %c1_55 = arith.constant 1 : index
    %c0_56 = arith.constant 0 : index
    %c0_57 = arith.constant 0 : index
    %32 = vector.load %arg1[%c0_53, %c0_54, %c1_55, %c0_56, %c0_57] : memref<1x4x9x9x8xbf16, #tpu.memory_space<vmem>>, vector<1x1x8x8x8xbf16>
    %33 = vector.shape_cast %32 : vector<1x1x8x8x8xbf16> to vector<1x8x8x8xbf16>
    %34 = vector.shape_cast %33 : vector<1x8x8x8xbf16> to vector<64x8xbf16>
    %c0_58 = arith.constant 0 : index
    %c48 = arith.constant 48 : index
    %35 = vector.load %arg10[%c0_58, %c48] : memref<64x72xbf16, #tpu.memory_space<vmem>>, vector<64x8xbf16>
    tpu.vector_store %arg10[%c0_58, %c48], %34 {strides = array<i32>} : memref<64x72xbf16, #tpu.memory_space<vmem>>, vector<64x8xbf16>,
    %c0_59 = arith.constant 0 : index
    %c1_60 = arith.constant 1 : index
    %c1_61 = arith.constant 1 : index
    %c0_62 = arith.constant 0 : index
    %c0_63 = arith.constant 0 : index
    %36 = vector.load %arg1[%c0_59, %c1_60, %c1_61, %c0_62, %c0_63] : memref<1x4x9x9x8xbf16, #tpu.memory_space<vmem>>, vector<1x1x8x8x8xbf16>
    %37 = vector.shape_cast %36 : vector<1x1x8x8x8xbf16> to vector<1x8x8x8xbf16>
    %38 = vector.shape_cast %37 : vector<1x8x8x8xbf16> to vector<64x8xbf16>
    %c0_64 = arith.constant 0 : index
    %c56 = arith.constant 56 : index
    %39 = vector.load %arg10[%c0_64, %c56] : memref<64x72xbf16, #tpu.memory_space<vmem>>, vector<64x8xbf16>
    tpu.vector_store %arg10[%c0_64, %c56], %38 {strides = array<i32>} : memref<64x72xbf16, #tpu.memory_space<vmem>>, vector<64x8xbf16>,
    %c0_65 = arith.constant 0 : index
    %c0_66 = arith.constant 0 : index
    %c1_67 = arith.constant 1 : index
    %c1_68 = arith.constant 1 : index
    %c0_69 = arith.constant 0 : index
    %40 = vector.load %arg1[%c0_65, %c0_66, %c1_67, %c1_68, %c0_69] : memref<1x4x9x9x8xbf16, #tpu.memory_space<vmem>>, vector<1x1x8x8x8xbf16>
    %41 = vector.shape_cast %40 : vector<1x1x8x8x8xbf16> to vector<1x8x8x8xbf16>
    %42 = vector.shape_cast %41 : vector<1x8x8x8xbf16> to vector<64x8xbf16>
    %c0_70 = arith.constant 0 : index
    %c64 = arith.constant 64 : index
    %43 = vector.load %arg10[%c0_70, %c64] : memref<64x72xbf16, #tpu.memory_space<vmem>>, vector<64x8xbf16>
    tpu.vector_store %arg10[%c0_70, %c64], %42 {strides = array<i32>} : memref<64x72xbf16, #tpu.memory_space<vmem>>, vector<64x8xbf16>,
    %c0_71 = arith.constant 0 : index
    %c0_72 = arith.constant 0 : index
    %44 = vector.load %arg10[%c0_71, %c0_72] : memref<64x72xbf16, #tpu.memory_space<vmem>>, vector<64x72xbf16>
    %c0_73 = arith.constant 0 : index
    %c0_74 = arith.constant 0 : index
    %45 = vector.load %arg2[%c0_73, %c0_74] : memref<72x128xbf16, #tpu.memory_space<vmem>>, vector<72x128xbf16>
    %cst_75 = arith.constant dense<0.000000e+00> : vector<64x128xf32>
    %46 = tpu.matmul %44, %45, %cst_75 {dimension_numbers = #tpu.dot_dimension_numbers<[1], [0], [0], [1], [0, 0, 1, 1], [], []>} : vector<64x72xbf16>, vector<72x128xbf16>, vector<64x128xf32> -> vector<64x128xf32>
    %47 = vector.shape_cast %46 : vector<64x128xf32> to vector<1x64x128xf32>
    %c0_76 = arith.constant 0 : index
    %c0_77 = arith.constant 0 : index
    %48 = vector.load %arg5[%c0_76, %c0_77] : memref<9x128xf32, #tpu.memory_space<vmem>>, vector<1x128xf32>
    %c1_78 = arith.constant 1 : index
    %c0_79 = arith.constant 0 : index
    %49 = vector.load %arg5[%c1_78, %c0_79] : memref<9x128xf32, #tpu.memory_space<vmem>>, vector<1x128xf32>
    %c2_80 = arith.constant 2 : index
    %c0_81 = arith.constant 0 : index
    %50 = vector.load %arg5[%c2_80, %c0_81] : memref<9x128xf32, #tpu.memory_space<vmem>>, vector<1x128xf32>
    %cst_82 = arith.constant dense<0.000000e+00> : vector<1x128xf32>
    %51 = vector.multi_reduction <add>, %47, %cst_82 [1] : vector<1x64x128xf32> to vector<1x128xf32>
    %cst_83 = arith.constant 6.400000e+01 : f32
    %52 = vector.broadcast %cst_83 : f32 to vector<1x128xf32>
    %53 = arith.mulf %52, %48 : vector<1x128xf32>
    %54 = arith.addf %51, %53 : vector<1x128xf32>
    %cst_84 = arith.constant dense<0.000000e+00> : vector<1x2xf32>
    %55 = tpu.matmul %54, %1, %cst_84 {dimension_numbers = #tpu.dot_dimension_numbers<[1], [0], [0], [1], [0, 0, 1, 1], [], []>} : vector<1x128xf32>, vector<128x2xf32>, vector<1x2xf32> -> vector<1x2xf32>
    %cst_85 = arith.constant 0.001953125 : f32
    %56 = vector.broadcast %cst_85 : f32 to vector<1x2xf32>
    %57 = arith.mulf %55, %56 : vector<1x2xf32>
    %cst_86 = arith.constant dense<0.000000e+00> : vector<1x128xf32>
    %58 = tpu.matmul %57, %0, %cst_86 {dimension_numbers = #tpu.dot_dimension_numbers<[1], [0], [0], [1], [0, 0, 1, 1], [], []>} : vector<1x2xf32>, vector<2x128xf32>, vector<1x128xf32> -> vector<1x128xf32>
    %59 = arith.subf %48, %58 : vector<1x128xf32>
    %60 = vector.shape_cast %59 : vector<1x128xf32> to vector<1x1x128xf32>
    %61 = vector.broadcast %60 : vector<1x1x128xf32> to vector<1x64x128xf32>
    %62 = arith.addf %47, %61 : vector<1x64x128xf32>
    %63 = arith.mulf %62, %62 : vector<1x64x128xf32>
    %cst_87 = arith.constant dense<0.000000e+00> : vector<1x128xf32>
    %64 = vector.multi_reduction <add>, %63, %cst_87 [1] : vector<1x64x128xf32> to vector<1x128xf32>
    %cst_88 = arith.constant dense<0.000000e+00> : vector<1x2xf32>
    %65 = tpu.matmul %64, %1, %cst_88 {dimension_numbers = #tpu.dot_dimension_numbers<[1], [0], [0], [1], [0, 0, 1, 1], [], []>} : vector<1x128xf32>, vector<128x2xf32>, vector<1x2xf32> -> vector<1x2xf32>
    %cst_89 = arith.constant 0.001953125 : f32
    %66 = vector.broadcast %cst_89 : f32 to vector<1x2xf32>
    %67 = arith.mulf %65, %66 : vector<1x2xf32>
    %cst_90 = arith.constant 9.99999974E-6 : f32
    %68 = vector.broadcast %cst_90 : f32 to vector<1x2xf32>
    %69 = arith.addf %67, %68 : vector<1x2xf32>
    %70 = math.rsqrt %69 : vector<1x2xf32>
    %cst_91 = arith.constant dense<0.000000e+00> : vector<1x128xf32>
    %71 = tpu.matmul %70, %0, %cst_91 {dimension_numbers = #tpu.dot_dimension_numbers<[1], [0], [0], [1], [0, 0, 1, 1], [], []>} : vector<1x2xf32>, vector<2x128xf32>, vector<1x128xf32> -> vector<1x128xf32>
    %72 = arith.mulf %71, %49 : vector<1x128xf32>
    %73 = vector.shape_cast %72 : vector<1x128xf32> to vector<1x1x128xf32>
    %74 = vector.broadcast %73 : vector<1x1x128xf32> to vector<1x64x128xf32>
    %75 = arith.mulf %62, %74 : vector<1x64x128xf32>
    %76 = vector.shape_cast %50 : vector<1x128xf32> to vector<1x1x128xf32>
    %77 = vector.broadcast %76 : vector<1x1x128xf32> to vector<1x64x128xf32>
    %78 = arith.addf %75, %77 : vector<1x64x128xf32>
    %cst_92 = arith.constant 0.000000e+00 : f32
    %79 = vector.broadcast %cst_92 : f32 to vector<1x64x128xf32>
    %80 = arith.maximumf %78, %79 : vector<1x64x128xf32>
    %c0_93 = arith.constant 0 : index
    %c3_94 = arith.constant 3 : index
    %c0_95 = arith.constant 0 : index
    %c0_96 = arith.constant 0 : index
    %c0_97 = arith.constant 0 : index
    %81 = vector.load %arg1[%c0_93, %c3_94, %c0_95, %c0_96, %c0_97] : memref<1x4x9x9x8xbf16, #tpu.memory_space<vmem>>, vector<1x1x8x8x8xbf16>
    %82 = vector.shape_cast %81 : vector<1x1x8x8x8xbf16> to vector<1x8x8x8xbf16>
    %83 = vector.shape_cast %82 : vector<1x8x8x8xbf16> to vector<64x8xbf16>
    %c0_98 = arith.constant 0 : index
    %c0_99 = arith.constant 0 : index
    %84 = vector.load %arg4[%c0_98, %c0_99] : memref<8x128xbf16, #tpu.memory_space<vmem>>, vector<8x128xbf16>
    %cst_100 = arith.constant dense<0.000000e+00> : vector<64x128xf32>
    %85 = tpu.matmul %83, %84, %cst_100 {dimension_numbers = #tpu.dot_dimension_numbers<[1], [0], [0], [1], [0, 0, 1, 1], [], []>} : vector<64x8xbf16>, vector<8x128xbf16>, vector<64x128xf32> -> vector<64x128xf32>
    %86 = vector.shape_cast %85 : vector<64x128xf32> to vector<1x64x128xf32>
    %c6 = arith.constant 6 : index
    %c0_101 = arith.constant 0 : index
    %87 = vector.load %arg5[%c6, %c0_101] : memref<9x128xf32, #tpu.memory_space<vmem>>, vector<1x128xf32>
    %c7 = arith.constant 7 : index
    %c0_102 = arith.constant 0 : index
    %88 = vector.load %arg5[%c7, %c0_102] : memref<9x128xf32, #tpu.memory_space<vmem>>, vector<1x128xf32>
    %c8_103 = arith.constant 8 : index
    %c0_104 = arith.constant 0 : index
    %89 = vector.load %arg5[%c8_103, %c0_104] : memref<9x128xf32, #tpu.memory_space<vmem>>, vector<1x128xf32>
    %cst_105 = arith.constant dense<0.000000e+00> : vector<1x128xf32>
    %90 = vector.multi_reduction <add>, %86, %cst_105 [1] : vector<1x64x128xf32> to vector<1x128xf32>
    %cst_106 = arith.constant 6.400000e+01 : f32
    %91 = vector.broadcast %cst_106 : f32 to vector<1x128xf32>
    %92 = arith.mulf %91, %87 : vector<1x128xf32>
    %93 = arith.addf %90, %92 : vector<1x128xf32>
    %cst_107 = arith.constant dense<0.000000e+00> : vector<1x2xf32>
    %94 = tpu.matmul %93, %1, %cst_107 {dimension_numbers = #tpu.dot_dimension_numbers<[1], [0], [0], [1], [0, 0, 1, 1], [], []>} : vector<1x128xf32>, vector<128x2xf32>, vector<1x2xf32> -> vector<1x2xf32>
    %cst_108 = arith.constant 0.001953125 : f32
    %95 = vector.broadcast %cst_108 : f32 to vector<1x2xf32>
    %96 = arith.mulf %94, %95 : vector<1x2xf32>
    %cst_109 = arith.constant dense<0.000000e+00> : vector<1x128xf32>
    %97 = tpu.matmul %96, %0, %cst_109 {dimension_numbers = #tpu.dot_dimension_numbers<[1], [0], [0], [1], [0, 0, 1, 1], [], []>} : vector<1x2xf32>, vector<2x128xf32>, vector<1x128xf32> -> vector<1x128xf32>
    %98 = arith.subf %87, %97 : vector<1x128xf32>
    %99 = vector.shape_cast %98 : vector<1x128xf32> to vector<1x1x128xf32>
    %100 = vector.broadcast %99 : vector<1x1x128xf32> to vector<1x64x128xf32>
    %101 = arith.addf %86, %100 : vector<1x64x128xf32>
    %102 = arith.mulf %101, %101 : vector<1x64x128xf32>
    %cst_110 = arith.constant dense<0.000000e+00> : vector<1x128xf32>
    %103 = vector.multi_reduction <add>, %102, %cst_110 [1] : vector<1x64x128xf32> to vector<1x128xf32>
    %cst_111 = arith.constant dense<0.000000e+00> : vector<1x2xf32>
    %104 = tpu.matmul %103, %1, %cst_111 {dimension_numbers = #tpu.dot_dimension_numbers<[1], [0], [0], [1], [0, 0, 1, 1], [], []>} : vector<1x128xf32>, vector<128x2xf32>, vector<1x2xf32> -> vector<1x2xf32>
    %cst_112 = arith.constant 0.001953125 : f32
    %105 = vector.broadcast %cst_112 : f32 to vector<1x2xf32>
    %106 = arith.mulf %104, %105 : vector<1x2xf32>
    %cst_113 = arith.constant 9.99999974E-6 : f32
    %107 = vector.broadcast %cst_113 : f32 to vector<1x2xf32>
    %108 = arith.addf %106, %107 : vector<1x2xf32>
    %109 = math.rsqrt %108 : vector<1x2xf32>
    %cst_114 = arith.constant dense<0.000000e+00> : vector<1x128xf32>
    %110 = tpu.matmul %109, %0, %cst_114 {dimension_numbers = #tpu.dot_dimension_numbers<[1], [0], [0], [1], [0, 0, 1, 1], [], []>} : vector<1x2xf32>, vector<2x128xf32>, vector<1x128xf32> -> vector<1x128xf32>
    %111 = arith.mulf %110, %88 : vector<1x128xf32>
    %112 = vector.shape_cast %111 : vector<1x128xf32> to vector<1x1x128xf32>
    %113 = vector.broadcast %112 : vector<1x1x128xf32> to vector<1x64x128xf32>
    %114 = arith.mulf %101, %113 : vector<1x64x128xf32>
    %115 = vector.shape_cast %89 : vector<1x128xf32> to vector<1x1x128xf32>
    %116 = vector.broadcast %115 : vector<1x1x128xf32> to vector<1x64x128xf32>
    %117 = arith.addf %114, %116 : vector<1x64x128xf32>
    %118 = arith.truncf %80 : vector<1x64x128xf32> to vector<1x64x128xbf16>
    %119 = vector.shape_cast %118 : vector<1x64x128xbf16> to vector<1x8x8x128xbf16>
    %c0_115 = arith.constant 0 : index
    %c1_116 = arith.constant 1 : index
    %c1_117 = arith.constant 1 : index
    %c0_118 = arith.constant 0 : index
    %120 = vector.load %arg9[%c0_115, %c1_116, %c1_117, %c0_118] : memref<1x10x10x128xbf16, #tpu.memory_space<vmem>>, vector<1x8x8x128xbf16>
    tpu.vector_store %arg9[%c0_115, %c1_116, %c1_117, %c0_118], %119 {strides = array<i32>} : memref<1x10x10x128xbf16, #tpu.memory_space<vmem>>, vector<1x8x8x128xbf16>,
    %c0_119 = arith.constant 0 : index
    %c0_120 = arith.constant 0 : index
    %c0_121 = arith.constant 0 : index
    %c0_122 = arith.constant 0 : index
    %121 = vector.load %arg9[%c0_119, %c0_120, %c0_121, %c0_122] : memref<1x10x10x128xbf16, #tpu.memory_space<vmem>>, vector<1x8x8x128xbf16>
    %122 = vector.shape_cast %121 : vector<1x8x8x128xbf16> to vector<64x128xbf16>
    %c0_123 = arith.constant 0 : index
    %c0_124 = arith.constant 0 : index
    %123 = vector.load %arg11[%c0_123, %c0_124] : memref<64x1152xbf16, #tpu.memory_space<vmem>>, vector<64x128xbf16>
    tpu.vector_store %arg11[%c0_123, %c0_124], %122 {strides = array<i32>} : memref<64x1152xbf16, #tpu.memory_space<vmem>>, vector<64x128xbf16>,
    %c0_125 = arith.constant 0 : index
    %c0_126 = arith.constant 0 : index
    %c1_127 = arith.constant 1 : index
    %c0_128 = arith.constant 0 : index
    %124 = vector.load %arg9[%c0_125, %c0_126, %c1_127, %c0_128] : memref<1x10x10x128xbf16, #tpu.memory_space<vmem>>, vector<1x8x8x128xbf16>
    %125 = vector.shape_cast %124 : vector<1x8x8x128xbf16> to vector<64x128xbf16>
    %c0_129 = arith.constant 0 : index
    %c128 = arith.constant 128 : index
    %126 = vector.load %arg11[%c0_129, %c128] : memref<64x1152xbf16, #tpu.memory_space<vmem>>, vector<64x128xbf16>
    tpu.vector_store %arg11[%c0_129, %c128], %125 {strides = array<i32>} : memref<64x1152xbf16, #tpu.memory_space<vmem>>, vector<64x128xbf16>,
    %c0_130 = arith.constant 0 : index
    %c0_131 = arith.constant 0 : index
    %c2_132 = arith.constant 2 : index
    %c0_133 = arith.constant 0 : index
    %127 = vector.load %arg9[%c0_130, %c0_131, %c2_132, %c0_133] : memref<1x10x10x128xbf16, #tpu.memory_space<vmem>>, vector<1x8x8x128xbf16>
    %128 = vector.shape_cast %127 : vector<1x8x8x128xbf16> to vector<64x128xbf16>
    %c0_134 = arith.constant 0 : index
    %c256 = arith.constant 256 : index
    %129 = vector.load %arg11[%c0_134, %c256] : memref<64x1152xbf16, #tpu.memory_space<vmem>>, vector<64x128xbf16>
    tpu.vector_store %arg11[%c0_134, %c256], %128 {strides = array<i32>} : memref<64x1152xbf16, #tpu.memory_space<vmem>>, vector<64x128xbf16>,
    %c0_135 = arith.constant 0 : index
    %c1_136 = arith.constant 1 : index
    %c0_137 = arith.constant 0 : index
    %c0_138 = arith.constant 0 : index
    %130 = vector.load %arg9[%c0_135, %c1_136, %c0_137, %c0_138] : memref<1x10x10x128xbf16, #tpu.memory_space<vmem>>, vector<1x8x8x128xbf16>
    %131 = vector.shape_cast %130 : vector<1x8x8x128xbf16> to vector<64x128xbf16>
    %c0_139 = arith.constant 0 : index
    %c384 = arith.constant 384 : index
    %132 = vector.load %arg11[%c0_139, %c384] : memref<64x1152xbf16, #tpu.memory_space<vmem>>, vector<64x128xbf16>
    tpu.vector_store %arg11[%c0_139, %c384], %131 {strides = array<i32>} : memref<64x1152xbf16, #tpu.memory_space<vmem>>, vector<64x128xbf16>,
    %c0_140 = arith.constant 0 : index
    %c1_141 = arith.constant 1 : index
    %c1_142 = arith.constant 1 : index
    %c0_143 = arith.constant 0 : index
    %133 = vector.load %arg9[%c0_140, %c1_141, %c1_142, %c0_143] : memref<1x10x10x128xbf16, #tpu.memory_space<vmem>>, vector<1x8x8x128xbf16>
    %134 = vector.shape_cast %133 : vector<1x8x8x128xbf16> to vector<64x128xbf16>
    %c0_144 = arith.constant 0 : index
    %c512 = arith.constant 512 : index
    %135 = vector.load %arg11[%c0_144, %c512] : memref<64x1152xbf16, #tpu.memory_space<vmem>>, vector<64x128xbf16>
    tpu.vector_store %arg11[%c0_144, %c512], %134 {strides = array<i32>} : memref<64x1152xbf16, #tpu.memory_space<vmem>>, vector<64x128xbf16>,
    %c0_145 = arith.constant 0 : index
    %c1_146 = arith.constant 1 : index
    %c2_147 = arith.constant 2 : index
    %c0_148 = arith.constant 0 : index
    %136 = vector.load %arg9[%c0_145, %c1_146, %c2_147, %c0_148] : memref<1x10x10x128xbf16, #tpu.memory_space<vmem>>, vector<1x8x8x128xbf16>
    %137 = vector.shape_cast %136 : vector<1x8x8x128xbf16> to vector<64x128xbf16>
    %c0_149 = arith.constant 0 : index
    %c640 = arith.constant 640 : index
    %138 = vector.load %arg11[%c0_149, %c640] : memref<64x1152xbf16, #tpu.memory_space<vmem>>, vector<64x128xbf16>
    tpu.vector_store %arg11[%c0_149, %c640], %137 {strides = array<i32>} : memref<64x1152xbf16, #tpu.memory_space<vmem>>, vector<64x128xbf16>,
    %c0_150 = arith.constant 0 : index
    %c2_151 = arith.constant 2 : index
    %c0_152 = arith.constant 0 : index
    %c0_153 = arith.constant 0 : index
    %139 = vector.load %arg9[%c0_150, %c2_151, %c0_152, %c0_153] : memref<1x10x10x128xbf16, #tpu.memory_space<vmem>>, vector<1x8x8x128xbf16>
    %140 = vector.shape_cast %139 : vector<1x8x8x128xbf16> to vector<64x128xbf16>
    %c0_154 = arith.constant 0 : index
    %c768 = arith.constant 768 : index
    %141 = vector.load %arg11[%c0_154, %c768] : memref<64x1152xbf16, #tpu.memory_space<vmem>>, vector<64x128xbf16>
    tpu.vector_store %arg11[%c0_154, %c768], %140 {strides = array<i32>} : memref<64x1152xbf16, #tpu.memory_space<vmem>>, vector<64x128xbf16>,
    %c0_155 = arith.constant 0 : index
    %c2_156 = arith.constant 2 : index
    %c1_157 = arith.constant 1 : index
    %c0_158 = arith.constant 0 : index
    %142 = vector.load %arg9[%c0_155, %c2_156, %c1_157, %c0_158] : memref<1x10x10x128xbf16, #tpu.memory_space<vmem>>, vector<1x8x8x128xbf16>
    %143 = vector.shape_cast %142 : vector<1x8x8x128xbf16> to vector<64x128xbf16>
    %c0_159 = arith.constant 0 : index
    %c896 = arith.constant 896 : index
    %144 = vector.load %arg11[%c0_159, %c896] : memref<64x1152xbf16, #tpu.memory_space<vmem>>, vector<64x128xbf16>
    tpu.vector_store %arg11[%c0_159, %c896], %143 {strides = array<i32>} : memref<64x1152xbf16, #tpu.memory_space<vmem>>, vector<64x128xbf16>,
    %c0_160 = arith.constant 0 : index
    %c2_161 = arith.constant 2 : index
    %c2_162 = arith.constant 2 : index
    %c0_163 = arith.constant 0 : index
    %145 = vector.load %arg9[%c0_160, %c2_161, %c2_162, %c0_163] : memref<1x10x10x128xbf16, #tpu.memory_space<vmem>>, vector<1x8x8x128xbf16>
    %146 = vector.shape_cast %145 : vector<1x8x8x128xbf16> to vector<64x128xbf16>
    %c0_164 = arith.constant 0 : index
    %c1024 = arith.constant 1024 : index
    %147 = vector.load %arg11[%c0_164, %c1024] : memref<64x1152xbf16, #tpu.memory_space<vmem>>, vector<64x128xbf16>
    tpu.vector_store %arg11[%c0_164, %c1024], %146 {strides = array<i32>} : memref<64x1152xbf16, #tpu.memory_space<vmem>>, vector<64x128xbf16>,
    %c0_165 = arith.constant 0 : index
    %c0_166 = arith.constant 0 : index
    %148 = vector.load %arg11[%c0_165, %c0_166] : memref<64x1152xbf16, #tpu.memory_space<vmem>>, vector<64x1152xbf16>
    %c0_167 = arith.constant 0 : index
    %c0_168 = arith.constant 0 : index
    %149 = vector.load %arg3[%c0_167, %c0_168] : memref<1152x128xbf16, #tpu.memory_space<vmem>>, vector<1152x128xbf16>
    %cst_169 = arith.constant dense<0.000000e+00> : vector<64x128xf32>
    %150 = tpu.matmul %148, %149, %cst_169 {dimension_numbers = #tpu.dot_dimension_numbers<[1], [0], [0], [1], [0, 0, 1, 1], [], []>} : vector<64x1152xbf16>, vector<1152x128xbf16>, vector<64x128xf32> -> vector<64x128xf32>
    %151 = vector.shape_cast %150 : vector<64x128xf32> to vector<1x64x128xf32>
    %c3_170 = arith.constant 3 : index
    %c0_171 = arith.constant 0 : index
    %152 = vector.load %arg5[%c3_170, %c0_171] : memref<9x128xf32, #tpu.memory_space<vmem>>, vector<1x128xf32>
    %c4 = arith.constant 4 : index
    %c0_172 = arith.constant 0 : index
    %153 = vector.load %arg5[%c4, %c0_172] : memref<9x128xf32, #tpu.memory_space<vmem>>, vector<1x128xf32>
    %c5 = arith.constant 5 : index
    %c0_173 = arith.constant 0 : index
    %154 = vector.load %arg5[%c5, %c0_173] : memref<9x128xf32, #tpu.memory_space<vmem>>, vector<1x128xf32>
    %cst_174 = arith.constant dense<0.000000e+00> : vector<1x128xf32>
    %155 = vector.multi_reduction <add>, %151, %cst_174 [1] : vector<1x64x128xf32> to vector<1x128xf32>
    %cst_175 = arith.constant 6.400000e+01 : f32
    %156 = vector.broadcast %cst_175 : f32 to vector<1x128xf32>
    %157 = arith.mulf %156, %152 : vector<1x128xf32>
    %158 = arith.addf %155, %157 : vector<1x128xf32>
    %cst_176 = arith.constant dense<0.000000e+00> : vector<1x2xf32>
    %159 = tpu.matmul %158, %1, %cst_176 {dimension_numbers = #tpu.dot_dimension_numbers<[1], [0], [0], [1], [0, 0, 1, 1], [], []>} : vector<1x128xf32>, vector<128x2xf32>, vector<1x2xf32> -> vector<1x2xf32>
    %cst_177 = arith.constant 0.001953125 : f32
    %160 = vector.broadcast %cst_177 : f32 to vector<1x2xf32>
    %161 = arith.mulf %159, %160 : vector<1x2xf32>
    %cst_178 = arith.constant dense<0.000000e+00> : vector<1x128xf32>
    %162 = tpu.matmul %161, %0, %cst_178 {dimension_numbers = #tpu.dot_dimension_numbers<[1], [0], [0], [1], [0, 0, 1, 1], [], []>} : vector<1x2xf32>, vector<2x128xf32>, vector<1x128xf32> -> vector<1x128xf32>
    %163 = arith.subf %152, %162 : vector<1x128xf32>
    %164 = vector.shape_cast %163 : vector<1x128xf32> to vector<1x1x128xf32>
    %165 = vector.broadcast %164 : vector<1x1x128xf32> to vector<1x64x128xf32>
    %166 = arith.addf %151, %165 : vector<1x64x128xf32>
    %167 = arith.mulf %166, %166 : vector<1x64x128xf32>
    %cst_179 = arith.constant dense<0.000000e+00> : vector<1x128xf32>
    %168 = vector.multi_reduction <add>, %167, %cst_179 [1] : vector<1x64x128xf32> to vector<1x128xf32>
    %cst_180 = arith.constant dense<0.000000e+00> : vector<1x2xf32>
    %169 = tpu.matmul %168, %1, %cst_180 {dimension_numbers = #tpu.dot_dimension_numbers<[1], [0], [0], [1], [0, 0, 1, 1], [], []>} : vector<1x128xf32>, vector<128x2xf32>, vector<1x2xf32> -> vector<1x2xf32>
    %cst_181 = arith.constant 0.001953125 : f32
    %170 = vector.broadcast %cst_181 : f32 to vector<1x2xf32>
    %171 = arith.mulf %169, %170 : vector<1x2xf32>
    %cst_182 = arith.constant 9.99999974E-6 : f32
    %172 = vector.broadcast %cst_182 : f32 to vector<1x2xf32>
    %173 = arith.addf %171, %172 : vector<1x2xf32>
    %174 = math.rsqrt %173 : vector<1x2xf32>
    %cst_183 = arith.constant dense<0.000000e+00> : vector<1x128xf32>
    %175 = tpu.matmul %174, %0, %cst_183 {dimension_numbers = #tpu.dot_dimension_numbers<[1], [0], [0], [1], [0, 0, 1, 1], [], []>} : vector<1x2xf32>, vector<2x128xf32>, vector<1x128xf32> -> vector<1x128xf32>
    %176 = arith.mulf %175, %153 : vector<1x128xf32>
    %177 = vector.shape_cast %176 : vector<1x128xf32> to vector<1x1x128xf32>
    %178 = vector.broadcast %177 : vector<1x1x128xf32> to vector<1x64x128xf32>
    %179 = arith.mulf %166, %178 : vector<1x64x128xf32>
    %180 = vector.shape_cast %154 : vector<1x128xf32> to vector<1x1x128xf32>
    %181 = vector.broadcast %180 : vector<1x1x128xf32> to vector<1x64x128xf32>
    %182 = arith.addf %179, %181 : vector<1x64x128xf32>
    %cst_184 = arith.constant 0.000000e+00 : f32
    %183 = vector.broadcast %cst_184 : f32 to vector<1x64x128xf32>
    %184 = arith.maximumf %182, %183 : vector<1x64x128xf32>
    %185 = arith.addf %117, %184 : vector<1x64x128xf32>
    %cst_185 = arith.constant 0.000000e+00 : f32
    %186 = vector.broadcast %cst_185 : f32 to vector<1x64x128xf32>
    %187 = arith.maximumf %185, %186 : vector<1x64x128xf32>
    %c0_186 = arith.constant 0 : index
    %c0_187 = arith.constant 0 : index
    %c0_188 = arith.constant 0 : index
    %188 = vector.load %arg8[%c0_186, %c0_187, %c0_188] : memref<1x64x128xf32, #tpu.memory_space<vmem>>, vector<1x64x128xf32>
    tpu.vector_store %arg8[%c0_186, %c0_187, %c0_188], %187 {strides = array<i32>} : memref<1x64x128xf32, #tpu.memory_space<vmem>>, vector<1x64x128xf32>,
    return
  }
  func.func @transform_0(%arg0: i32) -> (i32, i32, i32, i32, i32) {
    %c0_i32 = arith.constant 0 : i32
    %c0_i32_0 = arith.constant 0 : i32
    %c0_i32_1 = arith.constant 0 : i32
    %c0_i32_2 = arith.constant 0 : i32
    %c0_i32_3 = arith.constant 0 : i32
    return %arg0, %c0_i32, %c0_i32_0, %c0_i32_1, %c0_i32_2 : i32, i32, i32, i32, i32
  }
  func.func @transform_1(%arg0: i32) -> (i32, i32) {
    %c0_i32 = arith.constant 0 : i32
    %c0_i32_0 = arith.constant 0 : i32
    %c0_i32_1 = arith.constant 0 : i32
    return %c0_i32, %c0_i32_0 : i32, i32
  }
  func.func @transform_2(%arg0: i32) -> (i32, i32) {
    %c0_i32 = arith.constant 0 : i32
    %c0_i32_0 = arith.constant 0 : i32
    %c0_i32_1 = arith.constant 0 : i32
    return %c0_i32, %c0_i32_0 : i32, i32
  }
  func.func @transform_3(%arg0: i32) -> (i32, i32) {
    %c0_i32 = arith.constant 0 : i32
    %c0_i32_0 = arith.constant 0 : i32
    %c0_i32_1 = arith.constant 0 : i32
    return %c0_i32, %c0_i32_0 : i32, i32
  }
  func.func @transform_4(%arg0: i32) -> (i32, i32) {
    %c0_i32 = arith.constant 0 : i32
    %c0_i32_0 = arith.constant 0 : i32
    %c0_i32_1 = arith.constant 0 : i32
    return %c0_i32, %c0_i32_0 : i32, i32
  }
  func.func @transform_5(%arg0: i32) -> (i32, i32) {
    %c0_i32 = arith.constant 0 : i32
    %c0_i32_0 = arith.constant 0 : i32
    %c0_i32_1 = arith.constant 0 : i32
    return %c0_i32, %c0_i32_0 : i32, i32
  }
  func.func @transform_6(%arg0: i32) -> (i32, i32) {
    %c0_i32 = arith.constant 0 : i32
    %c0_i32_0 = arith.constant 0 : i32
    %c0_i32_1 = arith.constant 0 : i32
    return %c0_i32, %c0_i32_0 : i32, i32
  }
  func.func @transform_7(%arg0: i32) -> (i32, i32, i32) {
    %c0_i32 = arith.constant 0 : i32
    %c0_i32_0 = arith.constant 0 : i32
    %c0_i32_1 = arith.constant 0 : i32
    return %arg0, %c0_i32, %c0_i32_0 : i32, i32, i32
  }
}

</mosaic_0001>

<llo_original>
// kernel: residual_block_forward.1
$region0: #{residual_block_forward.1}
  #allocation0 [shape = 'u32[]', space=smem, size = 0x4, offset = 0x4, fixed_abs, tag = 'smem constant byte address 0x4 - core index']
  #allocation1 [shape = 'u32[72,128]{1,0:T(1,128)}', space=vmem, size = 0x9000, scoped, tag = 'internal scratch']
  #allocation2 [shape = 'bf16[1,10,10,128]{3,2,1,0:T(8,128)(2,1)}', space=vmem, size = 0xa000, scoped, tag = 'scratch operand']
  #allocation3 [shape = 'bf16[64,72]{1,0:T(8,128)(2,1)}', space=vmem, size = 0x4000, scoped, tag = 'scratch operand']
  #allocation4 [shape = 'bf16[64,1152]{1,0:T(8,128)(2,1)}', space=vmem, size = 0x24000, scoped, tag = 'scratch operand']
  %s0 = inlined_call_operand.vmem [shape: bf16[2,4,9,9,8], index: 0, kind: input, shape index: {}]
  %s1 = inlined_call_operand.vmem [shape: bf16[72,128], index: 1, kind: input, shape index: {}]
  %s2 = inlined_call_operand.vmem [shape: bf16[1152,128], index: 2, kind: input, shape index: {}]
  %s3 = inlined_call_operand.vmem [shape: bf16[8,128], index: 3, kind: input, shape index: {}]
  %s4 = inlined_call_operand.vmem [shape: f32[9,128], index: 4, kind: input, shape index: {}]
  %s5 = inlined_call_operand.vmem [shape: f32[2,128], index: 5, kind: input, shape index: {}]
  %s6 = inlined_call_operand.vmem [shape: f32[128,2], index: 6, kind: input, shape index: {}]
  %s7 = inlined_call_operand.hbm [shape: f32[2,64,128], index: 7, kind: output, shape index: {}]
  %s8 = sld [smem:[#allocation0]]
  $region61: #{residual_block_forward.1} parent=0
    _
  %s10 = ssub.s32 1, %s8
  %s11 = scalar_select 0, %s10, %s8
  $region1: #{residual_block_forward.1} parent=0
    #allocation5 [shape = 'u8[65536]{0}', space=vmem, size = 0x10000, scoped, tag = 'output window, operand 0']
    #allocation6 [shape = 's32[2]{0}', space=sflag, size = 0x8, scoped, tag = 'scoped memory for residual_block_forward.1']
    %12 = vsyncpa [#allocation6], 0
    %s13 = scalar_lea.sflag [#allocation6], 1
    %14 = vsyncpa %s13, 0
    loop: start=0, step=1, limit=4
    $region2: #{residual_block_forward.1} parent=1 // loop_pre_header
      _
    $region3: #{residual_block_forward.1} parent=1 // loop_header
      %s16 = sphi 0, %s20
      %p17 = scmp.ge.s32.totalorder %s16, 4
      %s26 = sphi 0, %s28
      %s29 = sphi 0, %s26
      %s30 = sphi 0, %s29
      %s46 = sphi 0, %s30
      %s50 = sphi 0, %s50
      %s52 = sphi 0, %s50
      %s53 = sphi 0, %s52
      %s67 = sphi 0, %s53
      %s71 = sphi 0, %s71
      %s73 = sphi 0, %s71
      %s74 = sphi 0, %s73
      %s88 = sphi 0, %s74
      %s92 = sphi 0, %s92
      %s94 = sphi 0, %s92
      %s95 = sphi 0, %s94
      %s109 = sphi 0, %s95
      %s113 = sphi 0, %s113
      %s115 = sphi 0, %s113
      %s116 = sphi 0, %s115
      %s130 = sphi 0, %s116
      %s134 = sphi 0, %s134
      %s136 = sphi 0, %s134
      %s137 = sphi 0, %s136
      %s151 = sphi 0, %s137
      %s155 = sphi 0, %s155
      %s157 = sphi 0, %s155
      %s158 = sphi 0, %s157
      %s172 = sphi 0, %s158
      %s178 = sphi 0, %s180
      %s181 = sphi 0, %s178
      %s182 = sphi 0, %s181
      %s198 = sphi 0, %s182
    $region4: #{residual_block_forward.1} parent=1 // loop_header_branch
      %19 = sbr.rel (%p17) target = $region8
    $region5: #{residual_block_forward.1} parent=1 // loop_body
      %s21 = ssub.s32 %s16, 1
      %s22 = ssub.s32 %s16, 2
      %s23 = sadd.s32 %s16, 1
      %s24 = ssub.s32 %s16, %s23
      %p25 = scmp.eq.s32.totalorder %s24, 0
      %s27 = sadd.s32 %s26, 1
      %s28 = scalar_select %p25, %s26, %s27
      %p31 = pneg %p25
      %p32 = scmp.eq.s32.totalorder %s16, 1
      %p33 = por %p31, %p32
      %p34 = scmp.ne.s32.totalorder %s26, %s29
      %p35 = scmp.eq.s32.totalorder %s16, 0
      %p36 = por %p34, %p35
      %p37 = scmp.ne.s32.totalorder %s26, %s29
      %p38 = scmp.eq.s32.totalorder %s21, 1
      %p39 = por %p37, %p38
      %p40 = scmp.ne.s32.totalorder %s29, %s30
      %p41 = scmp.eq.s32.totalorder %s21, 0
      %p42 = por %p40, %p41
      %p43 = scmp.ne.s32.totalorder %s29, %s30
      %p44 = scmp.eq.s32.totalorder %s22, 1
      %p45 = por %p43, %p44
      %p47 = scmp.ne.s32.totalorder %s30, %s46
      %p48 = scmp.eq.s32.totalorder %s22, 0
      %p49 = por %p47, %p48
      %s51 = sadd.s32 %s50, 1
      %p54 = scmp.eq.s32.totalorder %s16, 1
      %p55 = scmp.ne.s32.totalorder %s50, %s52
      %p56 = scmp.eq.s32.totalorder %s16, 0
      %p57 = por %p55, %p56
      %p58 = scmp.ne.s32.totalorder %s50, %s52
      %p59 = scmp.eq.s32.totalorder %s21, 1
      %p60 = por %p58, %p59
      %p61 = scmp.ne.s32.totalorder %s52, %s53
      %p62 = scmp.eq.s32.totalorder %s21, 0
      %p63 = por %p61, %p62
      %p64 = scmp.ne.s32.totalorder %s52, %s53
      %p65 = scmp.eq.s32.totalorder %s22, 1
      %p66 = por %p64, %p65
      %p68 = scmp.ne.s32.totalorder %s53, %s67
      %p69 = scmp.eq.s32.totalorder %s22, 0
      %p70 = por %p68, %p69
      %s72 = sadd.s32 %s71, 1
      %p75 = scmp.eq.s32.totalorder %s16, 1
      %p76 = scmp.ne.s32.totalorder %s71, %s73
      %p77 = scmp.eq.s32.totalorder %s16, 0
      %p78 = por %p76, %p77
      %p79 = scmp.ne.s32.totalorder %s71, %s73
      %p80 = scmp.eq.s32.totalorder %s21, 1
      %p81 = por %p79, %p80
      %p82 = scmp.ne.s32.totalorder %s73, %s74
      %p83 = scmp.eq.s32.totalorder %s21, 0
      %p84 = por %p82, %p83
      %p85 = scmp.ne.s32.totalorder %s73, %s74
      %p86 = scmp.eq.s32.totalorder %s22, 1
      %p87 = por %p85, %p86
      %p89 = scmp.ne.s32.totalorder %s74, %s88
      %p90 = scmp.eq.s32.totalorder %s22, 0
      %p91 = por %p89, %p90
      %s93 = sadd.s32 %s92, 1
      %p96 = scmp.eq.s32.totalorder %s16, 1
      %p97 = scmp.ne.s32.totalorder %s92, %s94
      %p98 = scmp.eq.s32.totalorder %s16, 0
      %p99 = por %p97, %p98
      %p100 = scmp.ne.s32.totalorder %s92, %s94
      %p101 = scmp.eq.s32.totalorder %s21, 1
      %p102 = por %p100, %p101
      %p103 = scmp.ne.s32.totalorder %s94, %s95
      %p104 = scmp.eq.s32.totalorder %s21, 0
      %p105 = por %p103, %p104
      %p106 = scmp.ne.s32.totalorder %s94, %s95
      %p107 = scmp.eq.s32.totalorder %s22, 1
      %p108 = por %p106, %p107
      %p110 = scmp.ne.s32.totalorder %s95, %s109
      %p111 = scmp.eq.s32.totalorder %s22, 0
      %p112 = por %p110, %p111
      %s114 = sadd.s32 %s113, 1
      %p117 = scmp.eq.s32.totalorder %s16, 1
      %p118 = scmp.ne.s32.totalorder %s113, %s115
      %p119 = scmp.eq.s32.totalorder %s16, 0
      %p120 = por %p118, %p119
      %p121 = scmp.ne.s32.totalorder %s113, %s115
      %p122 = scmp.eq.s32.totalorder %s21, 1
      %p123 = por %p121, %p122
      %p124 = scmp.ne.s32.totalorder %s115, %s116
      %p125 = scmp.eq.s32.totalorder %s21, 0
      %p126 = por %p124, %p125
      %p127 = scmp.ne.s32.totalorder %s115, %s116
      %p128 = scmp.eq.s32.totalorder %s22, 1
      %p129 = por %p127, %p128
      %p131 = scmp.ne.s32.totalorder %s116, %s130
      %p132 = scmp.eq.s32.totalorder %s22, 0
      %p133 = por %p131, %p132
      %s135 = sadd.s32 %s134, 1
      %p138 = scmp.eq.s32.totalorder %s16, 1
      %p139 = scmp.ne.s32.totalorder %s134, %s136
      %p140 = scmp.eq.s32.totalorder %s16, 0
      %p141 = por %p139, %p140
      %p142 = scmp.ne.s32.totalorder %s134, %s136
      %p143 = scmp.eq.s32.totalorder %s21, 1
      %p144 = por %p142, %p143
      %p145 = scmp.ne.s32.totalorder %s136, %s137
      %p146 = scmp.eq.s32.totalorder %s21, 0
      %p147 = por %p145, %p146
      %p148 = scmp.ne.s32.totalorder %s136, %s137
      %p149 = scmp.eq.s32.totalorder %s22, 1
      %p150 = por %p148, %p149
      %p152 = scmp.ne.s32.totalorder %s137, %s151
      %p153 = scmp.eq.s32.totalorder %s22, 0
      %p154 = por %p152, %p153
      %s156 = sadd.s32 %s155, 1
      %p159 = scmp.eq.s32.totalorder %s16, 1
      %p160 = scmp.ne.s32.totalorder %s155, %s157
      %p161 = scmp.eq.s32.totalorder %s16, 0
      %p162 = por %p160, %p161
      %p163 = scmp.ne.s32.totalorder %s155, %s157
      %p164 = scmp.eq.s32.totalorder %s21, 1
      %p165 = por %p163, %p164
      %p166 = scmp.ne.s32.totalorder %s157, %s158
      %p167 = scmp.eq.s32.totalorder %s21, 0
      %p168 = por %p166, %p167
      %p169 = scmp.ne.s32.totalorder %s157, %s158
      %p170 = scmp.eq.s32.totalorder %s22, 1
      %p171 = por %p169, %p170
      %p173 = scmp.ne.s32.totalorder %s158, %s172
      %p174 = scmp.eq.s32.totalorder %s22, 0
      %p175 = por %p173, %p174
      %s176 = ssub.s32 %s16, %s23
      %p177 = scmp.eq.s32.totalorder %s176, 0
      %s179 = sadd.s32 %s178, 1
      %s180 = scalar_select %p177, %s178, %s179
      %p183 = pneg %p177
      %p184 = scmp.eq.s32.totalorder %s16, 1
      %p185 = por %p183, %p184
      %p186 = scmp.ne.s32.totalorder %s178, %s181
      %p187 = scmp.eq.s32.totalorder %s16, 0
      %p188 = por %p186, %p187
      %p189 = scmp.ne.s32.totalorder %s178, %s181
      %p190 = scmp.eq.s32.totalorder %s21, 1
      %p191 = por %p189, %p190
      %p192 = scmp.ne.s32.totalorder %s181, %s182
      %p193 = scmp.eq.s32.totalorder %s21, 0
      %p194 = por %p192, %p193
      %p195 = scmp.ne.s32.totalorder %s181, %s182
      %p196 = scmp.eq.s32.totalorder %s22, 1
      %p197 = por %p195, %p196
      %p199 = scmp.ne.s32.totalorder %s182, %s198
      %p200 = scmp.eq.s32.totalorder %s22, 0
      %p201 = por %p199, %p200
      %p202 = scmp.le.s32.totalorder 1, %s16
      %p203 = scmp.lt.s32.totalorder %s16, 3
      %p204 = pnand %p202, %p203
      %p205 = pneg %p204
      // Predicated region
      $region9: #{residual_block_forward.1} parent=5 // pred_check
        _
      $region10: #{residual_block_forward.1} parent=5 // pred_check_branch
        %207 = sbr.rel (%p204) target = $region12
      $region11: #{residual_block_forward.1} parent=5 // pred_region
        %s208 = ssub.s32 %s16, 1
        // Predicated region
        $region13: #{residual_block_forward.1} parent=11 // pred_check
          %p209 = pneg %p63
        $region14: #{residual_block_forward.1} parent=11 // pred_check_branch
          %211 = sbr.rel (%p209) target = $region16
        $region15: #{residual_block_forward.1} parent=11 // pred_region
          _
        $region16: #{residual_block_forward.1} parent=11 // pred_fallthru
          _
        // Predicated region
        $region17: #{residual_block_forward.1} parent=11 // pred_check
          %p212 = pneg %p84
        $region18: #{residual_block_forward.1} parent=11 // pred_check_branch
          %214 = sbr.rel (%p212) target = $region20
        $region19: #{residual_block_forward.1} parent=11 // pred_region
          _
        $region20: #{residual_block_forward.1} parent=11 // pred_fallthru
          _
        // Predicated region
        $region21: #{residual_block_forward.1} parent=11 // pred_check
          %p215 = pneg %p105
        $region22: #{residual_block_forward.1} parent=11 // pred_check_branch
          %217 = sbr.rel (%p215) target = $region24
        $region23: #{residual_block_forward.1} parent=11 // pred_region
          _
        $region24: #{residual_block_forward.1} parent=11 // pred_fallthru
          _
        // Predicated region
        $region25: #{residual_block_forward.1} parent=11 // pred_check
          %p218 = pneg %p126
        $region26: #{residual_block_forward.1} parent=11 // pred_check_branch
          %220 = sbr.rel (%p218) target = $region28
        $region27: #{residual_block_forward.1} parent=11 // pred_region
          _
        $region28: #{residual_block_forward.1} parent=11 // pred_fallthru
          _
        // Predicated region
        $region29: #{residual_block_forward.1} parent=11 // pred_check
          %p221 = pneg %p147
        $region30: #{residual_block_forward.1} parent=11 // pred_check_branch
          %223 = sbr.rel (%p221) target = $region32
        $region31: #{residual_block_forward.1} parent=11 // pred_region
          _
        $region32: #{residual_block_forward.1} parent=11 // pred_fallthru
          _
        // Predicated region
        $region33: #{residual_block_forward.1} parent=11 // pred_check
          %p224 = pneg %p168
        $region34: #{residual_block_forward.1} parent=11 // pred_check_branch
          %226 = sbr.rel (%p224) target = $region36
        $region35: #{residual_block_forward.1} parent=11 // pred_region
          _
        $region36: #{residual_block_forward.1} parent=11 // pred_fallthru
          _
      $region12: #{residual_block_forward.1} parent=5 // pred_fallthru
        _
      %p227 = scmp.lt.s32.totalorder %s16, 2
      // Predicated region
      $region37: #{residual_block_forward.1} parent=5 // pred_check
        %p228 = pneg %p227
      $region38: #{residual_block_forward.1} parent=5 // pred_check_branch
        %230 = sbr.rel (%p228) target = $region40
      $region39: #{residual_block_forward.1} parent=5 // pred_region
        // Predicated region
        $region41: #{residual_block_forward.1} parent=39 // pred_check
          %p231 = pneg %p36
        $region42: #{residual_block_forward.1} parent=39 // pred_check_branch
          %233 = sbr.rel (%p231) target = $region44
        $region43: #{residual_block_forward.1} parent=39 // pred_region
          %p234 = scmp.lt.s32.totalorder %s16, 1
          %s235 = scalar_select %p234, %s16, 1
          %s236 = smul.addr %s235, 72
          %s237 = smul.addr %s236, 4
          %s238 = scalar_lea.vmem %s0, %s237
        $region44: #{residual_block_forward.1} parent=39 // pred_fallthru
          _
      $region40: #{residual_block_forward.1} parent=5 // pred_fallthru
        _
      %p239 = scmp.le.s32.totalorder 1, %s16
      %p240 = scmp.lt.s32.totalorder %s16, 3
      %p241 = pnand %p239, %p240
      %p242 = pneg %p241
      // Predicated region
      $region45: #{residual_block_forward.1} parent=5 // pred_check
        _
      $region46: #{residual_block_forward.1} parent=5 // pred_check_branch
        %244 = sbr.rel (%p241) target = $region48
      $region47: #{residual_block_forward.1} parent=5 // pred_region
        %s245 = ssub.s32 %s16, 1
        %p246 = scmp.lt.s32.totalorder %s21, 1
        %s247 = scalar_select %p246, %s21, 1
        %s248 = smul.addr %s247, 72
        %s249 = smul.addr %s248, 4
        %s250 = scalar_lea.vmem %s0, %s249
        %p251 = pneg %p42
        %p252 = pneg %p39
        %p253 = pneg %p63
        %p254 = pneg %p60
        %p255 = pneg %p84
        %p256 = pneg %p81
        %p257 = pneg %p105
        %p258 = pneg %p102
        %p259 = pneg %p126
        %p260 = pneg %p123
        %p261 = pneg %p147
        %p262 = pneg %p144
        %p263 = pneg %p168
        %p264 = pneg %p165
        %p265 = pneg %p194
        %p266 = pneg %p191
        %s267 = sand.u32 %s181, 1
        %s268 = scalar_lea.sflag [#allocation6], %s267
        %s269 = sand.u32 %s181, 1
        %s270 = smul.addr %s269, 64
        %s271 = scalar_lea.vmem [#allocation5], %s270
        %p272 = scmp.lt.s32.totalorder %s21, 1
        %s273 = scalar_select %p272, %s21, 1
        %s274 = smul.addr %s273, 72
        %s275 = smul.addr %s274, 4
        %s276 = scalar_lea.vmem %s0, %s275
        %v278 = vld [vmem:[%s5] sm:$0x3]
        %v279 = vld [vmem:[%s6] sm:$0xff]
        %v280 = vld [vmem:[%s6 + $0x8] sm:$0xff]
        %v281 = vld [vmem:[%s6 + $0x10] sm:$0xff]
        %v282 = vld [vmem:[%s6 + $0x18] sm:$0xff]
        %v283 = vld [vmem:[%s6 + $0x20] sm:$0xff]
        %v284 = vld [vmem:[%s6 + $0x28] sm:$0xff]
        %v285 = vld [vmem:[%s6 + $0x30] sm:$0xff]
        %v286 = vld [vmem:[%s6 + $0x38] sm:$0xff]
        %v287 = vld [vmem:[%s6 + $0x40] sm:$0xff]
        %v288 = vld [vmem:[%s6 + $0x48] sm:$0xff]
        %v289 = vld [vmem:[%s6 + $0x50] sm:$0xff]
        %v290 = vld [vmem:[%s6 + $0x58] sm:$0xff]
        %v291 = vld [vmem:[%s6 + $0x60] sm:$0xff]
        %v292 = vld [vmem:[%s6 + $0x68] sm:$0xff]
        %v293 = vld [vmem:[%s6 + $0x70] sm:$0xff]
        %v294 = vld [vmem:[%s6 + $0x78] sm:$0xff]
        %295 = vst [vmem:[#allocation2] sm:$0xf] 0
        %296 = vst [vmem:[#allocation2 + $0x4] sm:$0x1] 0
        %s297 = scalar_lea.vmem [#allocation2], 72
        %298 = vst [vmem:[%s297] sm:$0xf] 0
        %299 = vst [vmem:[%s297 + $0x4] sm:$0x1] 0
        %s300 = scalar_lea.vmem [#allocation2], 8
        %vm301 = vcmask 1040384
        %vm302 = vsmask.f32 256
        %vm303 = vmand %vm301, %vm302
        %v304 = vld [vmem:[%s300] sm:$0x1]
        %v305 = vsel %vm303, 0, %v304
        %306 = vst [vmem:[%s300] sm:$0x1] %v305
        %v307 = vld [vmem:[%s300 + $0x8] sm:$0x1]
        %v308 = vsel %vm303, 0, %v307
        %309 = vst [vmem:[%s300 + $0x8] sm:$0x1] %v308
        %v310 = vld [vmem:[%s300 + $0x10] sm:$0x1]
        %v311 = vsel %vm303, 0, %v310
        %312 = vst [vmem:[%s300 + $0x10] sm:$0x1] %v311
        %v313 = vld [vmem:[%s300 + $0x18] sm:$0x1]
        %v314 = vsel %vm303, 0, %v313
        %315 = vst [vmem:[%s300 + $0x18] sm:$0x1] %v314
        %v316 = vld [vmem:[%s300 + $0x20] sm:$0x1]
        %v317 = vsel %vm303, 0, %v316
        %318 = vst [vmem:[%s300 + $0x20] sm:$0x1] %v317
        %v319 = vld [vmem:[%s300 + $0x28] sm:$0x1]
        %v320 = vsel %vm303, 0, %v319
        %321 = vst [vmem:[%s300 + $0x28] sm:$0x1] %v320
        %v322 = vld [vmem:[%s300 + $0x30] sm:$0x1]
        %v323 = vsel %vm303, 0, %v322
        %324 = vst [vmem:[%s300 + $0x30] sm:$0x1] %v323
        %v325 = vld [vmem:[%s300 + $0x38] sm:$0x1]
        %v326 = vsel %vm303, 0, %v325
        %327 = vst [vmem:[%s300 + $0x38] sm:$0x1] %v326
        %vm328 = vsmask.f32 7938
        %vm329 = vmand %vm301, %vm328
        %v330 = vld [vmem:[%s300 + $0x4] sm:$0x1]
        %v331 = vsel %vm329, 0, %v330
        %332 = vst [vmem:[%s300 + $0x4] sm:$0x1] %v331
        %v333 = vld [vmem:[%s300 + $0xc] sm:$0x1]
        %v334 = vsel %vm329, 0, %v333
        %335 = vst [vmem:[%s300 + $0xc] sm:$0x1] %v334
        %v336 = vld [vmem:[%s300 + $0x14] sm:$0x1]
        %v337 = vsel %vm329, 0, %v336
        %338 = vst [vmem:[%s300 + $0x14] sm:$0x1] %v337
        %v339 = vld [vmem:[%s300 + $0x1c] sm:$0x1]
        %v340 = vsel %vm329, 0, %v339
        %341 = vst [vmem:[%s300 + $0x1c] sm:$0x1] %v340
        %v342 = vld [vmem:[%s300 + $0x24] sm:$0x1]
        %v343 = vsel %vm329, 0, %v342
        %344 = vst [vmem:[%s300 + $0x24] sm:$0x1] %v343
        %v345 = vld [vmem:[%s300 + $0x2c] sm:$0x1]
        %v346 = vsel %vm329, 0, %v345
        %347 = vst [vmem:[%s300 + $0x2c] sm:$0x1] %v346
        %v348 = vld [vmem:[%s300 + $0x34] sm:$0x1]
        %v349 = vsel %vm329, 0, %v348
        %350 = vst [vmem:[%s300 + $0x34] sm:$0x1] %v349
        %v351 = vld [vmem:[%s300 + $0x3c] sm:$0x1]
        %v352 = vsel %vm329, 0, %v351
        %353 = vst [vmem:[%s300 + $0x3c] sm:$0x1] %v352
        %v354 = vld [vmem:[%s276] sm:$0xf]
        %v355 = vld [vmem:[%s276 + $0x8] sm:$0xf]
        %v356 = vld [vmem:[%s276 + $0x10] sm:$0xf]
        %v357 = vld [vmem:[%s276 + $0x18] sm:$0xf]
        %v358 = vld [vmem:[%s276 + $0x20] sm:$0xf]
        %v359 = vld [vmem:[%s276 + $0x28] sm:$0xf]
        %v360 = vld [vmem:[%s276 + $0x30] sm:$0xf]
        %v361 = vld [vmem:[%s276 + $0x38] sm:$0xf]
        %vm362 = vcmask 60416
        %363 = vst.msk [vmem:[#allocation3] sm:$0xf] %vm362, %v354
        %364 = vst.msk [vmem:[#allocation3 + $0x4] sm:$0xf] %vm362, %v355
        %365 = vst.msk [vmem:[#allocation3 + $0x8] sm:$0xf] %vm362, %v356
        %366 = vst.msk [vmem:[#allocation3 + $0xc] sm:$0xf] %vm362, %v357
        %367 = vst.msk [vmem:[#allocation3 + $0x10] sm:$0xf] %vm362, %v358
        %368 = vst.msk [vmem:[#allocation3 + $0x14] sm:$0xf] %vm362, %v359
        %369 = vst.msk [vmem:[#allocation3 + $0x18] sm:$0xf] %vm362, %v360
        %370 = vst.msk [vmem:[#allocation3 + $0x1c] sm:$0xf] %vm362, %v361
        %s371 = scalar_lea.vmem %s276, 72
        %v372 = vld [vmem:[%s371] sm:$0xf]
        %v373 = vld [vmem:[%s371 + $0x8] sm:$0xf]
        %v374 = vld [vmem:[%s371 + $0x10] sm:$0xf]
        %v375 = vld [vmem:[%s371 + $0x18] sm:$0xf]
        %v376 = vld [vmem:[%s371 + $0x20] sm:$0xf]
        %v377 = vld [vmem:[%s371 + $0x28] sm:$0xf]
        %v378 = vld [vmem:[%s371 + $0x30] sm:$0xf]
        %v379 = vld [vmem:[%s371 + $0x38] sm:$0xf]
        %388 = vrot.lane.b32.xlu0 %v372, 8
        %v389 = vpop.permute.xlu0 %388
        %390 = vrot.lane.b32.xlu0 %v373, 8
        %v391 = vpop.permute.xlu0 %390
        %392 = vrot.lane.b32.xlu0 %v374, 8
        %v393 = vpop.permute.xlu0 %392
        %394 = vrot.lane.b32.xlu0 %v375, 8
        %v395 = vpop.permute.xlu0 %394
        %396 = vrot.lane.b32.xlu0 %v376, 8
        %v397 = vpop.permute.xlu0 %396
        %398 = vrot.lane.b32.xlu0 %v377, 8
        %v399 = vpop.permute.xlu0 %398
        %400 = vrot.lane.b32.xlu0 %v378, 8
        %v401 = vpop.permute.xlu0 %400
        %402 = vrot.lane.b32.xlu0 %v379, 8
        %v403 = vpop.permute.xlu0 %402
        %vm412 = vcmask 126016
        %413 = vst.msk [vmem:[#allocation3] sm:$0xf] %vm412, %v389
        %414 = vst.msk [vmem:[#allocation3 + $0x4] sm:$0xf] %vm412, %v391
        %415 = vst.msk [vmem:[#allocation3 + $0x8] sm:$0xf] %vm412, %v393
        %416 = vst.msk [vmem:[#allocation3 + $0xc] sm:$0xf] %vm412, %v395
        %417 = vst.msk [vmem:[#allocation3 + $0x10] sm:$0xf] %vm412, %v397
        %418 = vst.msk [vmem:[#allocation3 + $0x14] sm:$0xf] %vm412, %v399
        %419 = vst.msk [vmem:[#allocation3 + $0x18] sm:$0xf] %vm412, %v401
        %420 = vst.msk [vmem:[#allocation3 + $0x1c] sm:$0xf] %vm412, %v403
        %v421 = vld [vmem:[%s276] sm:$0xf]
        %v422 = vld [vmem:[%s276 + $0x4] sm:$0x1]
        %v423 = vld [vmem:[%s276 + $0x8] sm:$0xf]
        %v424 = vld [vmem:[%s276 + $0xc] sm:$0x1]
        %v425 = vld [vmem:[%s276 + $0x10] sm:$0xf]
        %v426 = vld [vmem:[%s276 + $0x14] sm:$0x1]
        %v427 = vld [vmem:[%s276 + $0x18] sm:$0xf]
        %v428 = vld [vmem:[%s276 + $0x1c] sm:$0x1]
        %v429 = vld [vmem:[%s276 + $0x20] sm:$0xf]
        %v430 = vld [vmem:[%s276 + $0x24] sm:$0x1]
        %v431 = vld [vmem:[%s276 + $0x28] sm:$0xf]
        %v432 = vld [vmem:[%s276 + $0x2c] sm:$0x1]
        %v433 = vld [vmem:[%s276 + $0x30] sm:$0xf]
        %v434 = vld [vmem:[%s276 + $0x34] sm:$0x1]
        %v435 = vld [vmem:[%s276 + $0x38] sm:$0xf]
        %v436 = vld [vmem:[%s276 + $0x3c] sm:$0x1]
        %vm437 = vsmask.f32 3328
        %vm438 = vsmask.f32 7440
        %vm439 = vmor %vm437, %vm438
        %v441 = vshrl.u32 %v421, 16
        %v443 = vrot.slane %v441, 4
        %v444 = vshll.u32 %v421, 16
        %v446 = vrot.slane %v444, 5
        %v447 = vor.u32 %v443, %v446
        %v448 = vrot.slane %v447, 4
        %v450 = vshll.u32 %v422, 16
        %v452 = vrot.slane %v450, 5
        %v453 = vsel %vm439, %v448, %v452
        %v455 = vshrl.u32 %v423, 16
        %v457 = vrot.slane %v455, 4
        %v458 = vshll.u32 %v423, 16
        %v460 = vrot.slane %v458, 5
        %v461 = vor.u32 %v457, %v460
        %v462 = vrot.slane %v461, 4
        %v464 = vshll.u32 %v424, 16
        %v466 = vrot.slane %v464, 5
        %v467 = vsel %vm439, %v462, %v466
        %v469 = vshrl.u32 %v425, 16
        %v471 = vrot.slane %v469, 4
        %v472 = vshll.u32 %v425, 16
        %v474 = vrot.slane %v472, 5
        %v475 = vor.u32 %v471, %v474
        %v476 = vrot.slane %v475, 4
        %v478 = vshll.u32 %v426, 16
        %v480 = vrot.slane %v478, 5
        %v481 = vsel %vm439, %v476, %v480
        %v483 = vshrl.u32 %v427, 16
        %v485 = vrot.slane %v483, 4
        %v486 = vshll.u32 %v427, 16
        %v488 = vrot.slane %v486, 5
        %v489 = vor.u32 %v485, %v488
        %v490 = vrot.slane %v489, 4
        %v492 = vshll.u32 %v428, 16
        %v494 = vrot.slane %v492, 5
        %v495 = vsel %vm439, %v490, %v494
        %v497 = vshrl.u32 %v429, 16
        %v499 = vrot.slane %v497, 4
        %v500 = vshll.u32 %v429, 16
        %v502 = vrot.slane %v500, 5
        %v503 = vor.u32 %v499, %v502
        %v504 = vrot.slane %v503, 4
        %v506 = vshll.u32 %v430, 16
        %v508 = vrot.slane %v506, 5
        %v509 = vsel %vm439, %v504, %v508
        %v511 = vshrl.u32 %v431, 16
        %v513 = vrot.slane %v511, 4
        %v514 = vshll.u32 %v431, 16
        %v516 = vrot.slane %v514, 5
        %v517 = vor.u32 %v513, %v516
        %v518 = vrot.slane %v517, 4
        %v520 = vshll.u32 %v432, 16
        %v522 = vrot.slane %v520, 5
        %v523 = vsel %vm439, %v518, %v522
        %v525 = vshrl.u32 %v433, 16
        %v527 = vrot.slane %v525, 4
        %v528 = vshll.u32 %v433, 16
        %v530 = vrot.slane %v528, 5
        %v531 = vor.u32 %v527, %v530
        %v532 = vrot.slane %v531, 4
        %v534 = vshll.u32 %v434, 16
        %v536 = vrot.slane %v534, 5
        %v537 = vsel %vm439, %v532, %v536
        %v539 = vshrl.u32 %v435, 16
        %v541 = vrot.slane %v539, 4
        %v542 = vshll.u32 %v435, 16
        %v544 = vrot.slane %v542, 5
        %v545 = vor.u32 %v541, %v544
        %v546 = vrot.slane %v545, 4
        %v548 = vshll.u32 %v436, 16
        %v550 = vrot.slane %v548, 5
        %v551 = vsel %vm439, %v546, %v550
        %552 = vrot.lane.b32.xlu0 %v453, 16
        %v553 = vpop.permute.xlu0 %552
        %554 = vrot.lane.b32.xlu0 %v467, 16
        %v555 = vpop.permute.xlu0 %554
        %556 = vrot.lane.b32.xlu0 %v481, 16
        %v557 = vpop.permute.xlu0 %556
        %558 = vrot.lane.b32.xlu0 %v495, 16
        %v559 = vpop.permute.xlu0 %558
        %560 = vrot.lane.b32.xlu0 %v509, 16
        %v561 = vpop.permute.xlu0 %560
        %562 = vrot.lane.b32.xlu0 %v523, 16
        %v563 = vpop.permute.xlu0 %562
        %564 = vrot.lane.b32.xlu0 %v537, 16
        %v565 = vpop.permute.xlu0 %564
        %566 = vrot.lane.b32.xlu0 %v551, 16
        %v567 = vpop.permute.xlu0 %566
        %vm576 = vcmask 191616
        %577 = vst.msk [vmem:[#allocation3] sm:$0xf] %vm576, %v553
        %578 = vst.msk [vmem:[#allocation3 + $0x4] sm:$0xf] %vm576, %v555
        %579 = vst.msk [vmem:[#allocation3 + $0x8] sm:$0xf] %vm576, %v557
        %580 = vst.msk [vmem:[#allocation3 + $0xc] sm:$0xf] %vm576, %v559
        %581 = vst.msk [vmem:[#allocation3 + $0x10] sm:$0xf] %vm576, %v561
        %582 = vst.msk [vmem:[#allocation3 + $0x14] sm:$0xf] %vm576, %v563
        %583 = vst.msk [vmem:[#allocation3 + $0x18] sm:$0xf] %vm576, %v565
        %584 = vst.msk [vmem:[#allocation3 + $0x1c] sm:$0xf] %vm576, %v567
        %s585 = scalar_lea.vmem %s276, 144
        %v586 = vld [vmem:[%s585] sm:$0xf]
        %v587 = vld [vmem:[%s585 + $0x8] sm:$0xf]
        %v588 = vld [vmem:[%s585 + $0x10] sm:$0xf]
        %v589 = vld [vmem:[%s585 + $0x18] sm:$0xf]
        %v590 = vld [vmem:[%s585 + $0x20] sm:$0xf]
        %v591 = vld [vmem:[%s585 + $0x28] sm:$0xf]
        %v592 = vld [vmem:[%s585 + $0x30] sm:$0xf]
        %v593 = vld [vmem:[%s585 + $0x38] sm:$0xf]
        %602 = vrot.lane.b32.xlu0 %v586, 24
        %v603 = vpop.permute.xlu0 %602
        %604 = vrot.lane.b32.xlu0 %v587, 24
        %v605 = vpop.permute.xlu0 %604
        %606 = vrot.lane.b32.xlu0 %v588, 24
        %v607 = vpop.permute.xlu0 %606
        %608 = vrot.lane.b32.xlu0 %v589, 24
        %v609 = vpop.permute.xlu0 %608
        %610 = vrot.lane.b32.xlu0 %v590, 24
        %v611 = vpop.permute.xlu0 %610
        %612 = vrot.lane.b32.xlu0 %v591, 24
        %v613 = vpop.permute.xlu0 %612
        %614 = vrot.lane.b32.xlu0 %v592, 24
        %v615 = vpop.permute.xlu0 %614
        %616 = vrot.lane.b32.xlu0 %v593, 24
        %v617 = vpop.permute.xlu0 %616
        %vm626 = vcmask 257216
        %627 = vst.msk [vmem:[#allocation3] sm:$0xf] %vm626, %v603
        %628 = vst.msk [vmem:[#allocation3 + $0x4] sm:$0xf] %vm626, %v605
        %629 = vst.msk [vmem:[#allocation3 + $0x8] sm:$0xf] %vm626, %v607
        %630 = vst.msk [vmem:[#allocation3 + $0xc] sm:$0xf] %vm626, %v609
        %631 = vst.msk [vmem:[#allocation3 + $0x10] sm:$0xf] %vm626, %v611
        %632 = vst.msk [vmem:[#allocation3 + $0x14] sm:$0xf] %vm626, %v613
        %633 = vst.msk [vmem:[#allocation3 + $0x18] sm:$0xf] %vm626, %v615
        %634 = vst.msk [vmem:[#allocation3 + $0x1c] sm:$0xf] %vm626, %v617
        %s635 = scalar_lea.vmem %s276, 216
        %v636 = vld [vmem:[%s635] sm:$0xf]
        %v637 = vld [vmem:[%s635 + $0x8] sm:$0xf]
        %v638 = vld [vmem:[%s635 + $0x10] sm:$0xf]
        %v639 = vld [vmem:[%s635 + $0x18] sm:$0xf]
        %v640 = vld [vmem:[%s635 + $0x20] sm:$0xf]
        %v641 = vld [vmem:[%s635 + $0x28] sm:$0xf]
        %v642 = vld [vmem:[%s635 + $0x30] sm:$0xf]
        %v643 = vld [vmem:[%s635 + $0x38] sm:$0xf]
        %652 = vrot.lane.b32.xlu0 %v636, 32
        %v653 = vpop.permute.xlu0 %652
        %654 = vrot.lane.b32.xlu0 %v637, 32
        %v655 = vpop.permute.xlu0 %654
        %656 = vrot.lane.b32.xlu0 %v638, 32
        %v657 = vpop.permute.xlu0 %656
        %658 = vrot.lane.b32.xlu0 %v639, 32
        %v659 = vpop.permute.xlu0 %658
        %660 = vrot.lane.b32.xlu0 %v640, 32
        %v661 = vpop.permute.xlu0 %660
        %662 = vrot.lane.b32.xlu0 %v641, 32
        %v663 = vpop.permute.xlu0 %662
        %664 = vrot.lane.b32.xlu0 %v642, 32
        %v665 = vpop.permute.xlu0 %664
        %666 = vrot.lane.b32.xlu0 %v643, 32
        %v667 = vpop.permute.xlu0 %666
        %vm676 = vcmask 322816
        %677 = vst.msk [vmem:[#allocation3] sm:$0xf] %vm676, %v653
        %678 = vst.msk [vmem:[#allocation3 + $0x4] sm:$0xf] %vm676, %v655
        %679 = vst.msk [vmem:[#allocation3 + $0x8] sm:$0xf] %vm676, %v657
        %680 = vst.msk [vmem:[#allocation3 + $0xc] sm:$0xf] %vm676, %v659
        %681 = vst.msk [vmem:[#allocation3 + $0x10] sm:$0xf] %vm676, %v661
        %682 = vst.msk [vmem:[#allocation3 + $0x14] sm:$0xf] %vm676, %v663
        %683 = vst.msk [vmem:[#allocation3 + $0x18] sm:$0xf] %vm676, %v665
        %684 = vst.msk [vmem:[#allocation3 + $0x1c] sm:$0xf] %vm676, %v667
        %v685 = vld [vmem:[%s585] sm:$0xf]
        %v686 = vld [vmem:[%s585 + $0x4] sm:$0x1]
        %v687 = vld [vmem:[%s585 + $0x8] sm:$0xf]
        %v688 = vld [vmem:[%s585 + $0xc] sm:$0x1]
        %v689 = vld [vmem:[%s585 + $0x10] sm:$0xf]
        %v690 = vld [vmem:[%s585 + $0x14] sm:$0x1]
        %v691 = vld [vmem:[%s585 + $0x18] sm:$0xf]
        %v692 = vld [vmem:[%s585 + $0x1c] sm:$0x1]
        %v693 = vld [vmem:[%s585 + $0x20] sm:$0xf]
        %v694 = vld [vmem:[%s585 + $0x24] sm:$0x1]
        %v695 = vld [vmem:[%s585 + $0x28] sm:$0xf]
        %v696 = vld [vmem:[%s585 + $0x2c] sm:$0x1]
        %v697 = vld [vmem:[%s585 + $0x30] sm:$0xf]
        %v698 = vld [vmem:[%s585 + $0x34] sm:$0x1]
        %v699 = vld [vmem:[%s585 + $0x38] sm:$0xf]
        %v700 = vld [vmem:[%s585 + $0x3c] sm:$0x1]
        %v702 = vshrl.u32 %v685, 16
        %v704 = vrot.slane %v702, 4
        %v705 = vshll.u32 %v685, 16
        %v707 = vrot.slane %v705, 5
        %v708 = vor.u32 %v704, %v707
        %v709 = vrot.slane %v708, 4
        %v711 = vshll.u32 %v686, 16
        %v713 = vrot.slane %v711, 5
        %v714 = vsel %vm439, %v709, %v713
        %v716 = vshrl.u32 %v687, 16
        %v718 = vrot.slane %v716, 4
        %v719 = vshll.u32 %v687, 16
        %v721 = vrot.slane %v719, 5
        %v722 = vor.u32 %v718, %v721
        %v723 = vrot.slane %v722, 4
        %v725 = vshll.u32 %v688, 16
        %v727 = vrot.slane %v725, 5
        %v728 = vsel %vm439, %v723, %v727
        %v730 = vshrl.u32 %v689, 16
        %v732 = vrot.slane %v730, 4
        %v733 = vshll.u32 %v689, 16
        %v735 = vrot.slane %v733, 5
        %v736 = vor.u32 %v732, %v735
        %v737 = vrot.slane %v736, 4
        %v739 = vshll.u32 %v690, 16
        %v741 = vrot.slane %v739, 5
        %v742 = vsel %vm439, %v737, %v741
        %v744 = vshrl.u32 %v691, 16
        %v746 = vrot.slane %v744, 4
        %v747 = vshll.u32 %v691, 16
        %v749 = vrot.slane %v747, 5
        %v750 = vor.u32 %v746, %v749
        %v751 = vrot.slane %v750, 4
        %v753 = vshll.u32 %v692, 16
        %v755 = vrot.slane %v753, 5
        %v756 = vsel %vm439, %v751, %v755
        %v758 = vshrl.u32 %v693, 16
        %v760 = vrot.slane %v758, 4
        %v761 = vshll.u32 %v693, 16
        %v763 = vrot.slane %v761, 5
        %v764 = vor.u32 %v760, %v763
        %v765 = vrot.slane %v764, 4
        %v767 = vshll.u32 %v694, 16
        %v769 = vrot.slane %v767, 5
        %v770 = vsel %vm439, %v765, %v769
        %v772 = vshrl.u32 %v695, 16
        %v774 = vrot.slane %v772, 4
        %v775 = vshll.u32 %v695, 16
        %v777 = vrot.slane %v775, 5
        %v778 = vor.u32 %v774, %v777
        %v779 = vrot.slane %v778, 4
        %v781 = vshll.u32 %v696, 16
        %v783 = vrot.slane %v781, 5
        %v784 = vsel %vm439, %v779, %v783
        %v786 = vshrl.u32 %v697, 16
        %v788 = vrot.slane %v786, 4
        %v789 = vshll.u32 %v697, 16
        %v791 = vrot.slane %v789, 5
        %v792 = vor.u32 %v788, %v791
        %v793 = vrot.slane %v792, 4
        %v795 = vshll.u32 %v698, 16
        %v797 = vrot.slane %v795, 5
        %v798 = vsel %vm439, %v793, %v797
        %v800 = vshrl.u32 %v699, 16
        %v802 = vrot.slane %v800, 4
        %v803 = vshll.u32 %v699, 16
        %v805 = vrot.slane %v803, 5
        %v806 = vor.u32 %v802, %v805
        %v807 = vrot.slane %v806, 4
        %v809 = vshll.u32 %v700, 16
        %v811 = vrot.slane %v809, 5
        %v812 = vsel %vm439, %v807, %v811
        %813 = vrot.lane.b32.xlu0 %v714, 40
        %v814 = vpop.permute.xlu0 %813
        %815 = vrot.lane.b32.xlu0 %v728, 40
        %v816 = vpop.permute.xlu0 %815
        %817 = vrot.lane.b32.xlu0 %v742, 40
        %v818 = vpop.permute.xlu0 %817
        %819 = vrot.lane.b32.xlu0 %v756, 40
        %v820 = vpop.permute.xlu0 %819
        %821 = vrot.lane.b32.xlu0 %v770, 40
        %v822 = vpop.permute.xlu0 %821
        %823 = vrot.lane.b32.xlu0 %v784, 40
        %v824 = vpop.permute.xlu0 %823
        %825 = vrot.lane.b32.xlu0 %v798, 40
        %v826 = vpop.permute.xlu0 %825
        %827 = vrot.lane.b32.xlu0 %v812, 40
        %v828 = vpop.permute.xlu0 %827
        %vm837 = vcmask 388416
        %838 = vst.msk [vmem:[#allocation3] sm:$0xf] %vm837, %v814
        %839 = vst.msk [vmem:[#allocation3 + $0x4] sm:$0xf] %vm837, %v816
        %840 = vst.msk [vmem:[#allocation3 + $0x8] sm:$0xf] %vm837, %v818
        %841 = vst.msk [vmem:[#allocation3 + $0xc] sm:$0xf] %vm837, %v820
        %842 = vst.msk [vmem:[#allocation3 + $0x10] sm:$0xf] %vm837, %v822
        %843 = vst.msk [vmem:[#allocation3 + $0x14] sm:$0xf] %vm837, %v824
        %844 = vst.msk [vmem:[#allocation3 + $0x18] sm:$0xf] %vm837, %v826
        %845 = vst.msk [vmem:[#allocation3 + $0x1c] sm:$0xf] %vm837, %v828
        %s846 = scalar_lea.vmem %s276, 8
        %v847 = vld [vmem:[%s846] sm:$0xf]
        %v848 = vld [vmem:[%s846 + $0x8] sm:$0xf]
        %v849 = vld [vmem:[%s846 + $0x10] sm:$0xf]
        %v850 = vld [vmem:[%s846 + $0x18] sm:$0xf]
        %v851 = vld [vmem:[%s846 + $0x20] sm:$0xf]
        %v852 = vld [vmem:[%s846 + $0x28] sm:$0xf]
        %v853 = vld [vmem:[%s846 + $0x30] sm:$0xf]
        %v854 = vld [vmem:[%s846 + $0x38] sm:$0xf]
        %863 = vrot.lane.b32.xlu0 %v847, 48
        %v864 = vpop.permute.xlu0 %863
        %865 = vrot.lane.b32.xlu0 %v848, 48
        %v866 = vpop.permute.xlu0 %865
        %867 = vrot.lane.b32.xlu0 %v849, 48
        %v868 = vpop.permute.xlu0 %867
        %869 = vrot.lane.b32.xlu0 %v850, 48
        %v870 = vpop.permute.xlu0 %869
        %871 = vrot.lane.b32.xlu0 %v851, 48
        %v872 = vpop.permute.xlu0 %871
        %873 = vrot.lane.b32.xlu0 %v852, 48
        %v874 = vpop.permute.xlu0 %873
        %875 = vrot.lane.b32.xlu0 %v853, 48
        %v876 = vpop.permute.xlu0 %875
        %877 = vrot.lane.b32.xlu0 %v854, 48
        %v878 = vpop.permute.xlu0 %877
        %vm887 = vcmask 454016
        %888 = vst.msk [vmem:[#allocation3] sm:$0xf] %vm887, %v864
        %889 = vst.msk [vmem:[#allocation3 + $0x4] sm:$0xf] %vm887, %v866
        %890 = vst.msk [vmem:[#allocation3 + $0x8] sm:$0xf] %vm887, %v868
        %891 = vst.msk [vmem:[#allocation3 + $0xc] sm:$0xf] %vm887, %v870
        %892 = vst.msk [vmem:[#allocation3 + $0x10] sm:$0xf] %vm887, %v872
        %893 = vst.msk [vmem:[#allocation3 + $0x14] sm:$0xf] %vm887, %v874
        %894 = vst.msk [vmem:[#allocation3 + $0x18] sm:$0xf] %vm887, %v876
        %895 = vst.msk [vmem:[#allocation3 + $0x1c] sm:$0xf] %vm887, %v878
        %s896 = scalar_lea.vmem %s276, 80
        %v897 = vld [vmem:[%s896] sm:$0xf]
        %v898 = vld [vmem:[%s896 + $0x8] sm:$0xf]
        %v899 = vld [vmem:[%s896 + $0x10] sm:$0xf]
        %v900 = vld [vmem:[%s896 + $0x18] sm:$0xf]
        %v901 = vld [vmem:[%s896 + $0x20] sm:$0xf]
        %v902 = vld [vmem:[%s896 + $0x28] sm:$0xf]
        %v903 = vld [vmem:[%s896 + $0x30] sm:$0xf]
        %v904 = vld [vmem:[%s896 + $0x38] sm:$0xf]
        %913 = vrot.lane.b32.xlu0 %v897, 56
        %v914 = vpop.permute.xlu0 %913
        %915 = vrot.lane.b32.xlu0 %v898, 56
        %v916 = vpop.permute.xlu0 %915
        %917 = vrot.lane.b32.xlu0 %v899, 56
        %v918 = vpop.permute.xlu0 %917
        %919 = vrot.lane.b32.xlu0 %v900, 56
        %v920 = vpop.permute.xlu0 %919
        %921 = vrot.lane.b32.xlu0 %v901, 56
        %v922 = vpop.permute.xlu0 %921
        %923 = vrot.lane.b32.xlu0 %v902, 56
        %v924 = vpop.permute.xlu0 %923
        %925 = vrot.lane.b32.xlu0 %v903, 56
        %v926 = vpop.permute.xlu0 %925
        %927 = vrot.lane.b32.xlu0 %v904, 56
        %v928 = vpop.permute.xlu0 %927
        %vm937 = vcmask 519616
        %938 = vst.msk [vmem:[#allocation3] sm:$0xf] %vm937, %v914
        %939 = vst.msk [vmem:[#allocation3 + $0x4] sm:$0xf] %vm937, %v916
        %940 = vst.msk [vmem:[#allocation3 + $0x8] sm:$0xf] %vm937, %v918
        %941 = vst.msk [vmem:[#allocation3 + $0xc] sm:$0xf] %vm937, %v920
        %942 = vst.msk [vmem:[#allocation3 + $0x10] sm:$0xf] %vm937, %v922
        %943 = vst.msk [vmem:[#allocation3 + $0x14] sm:$0xf] %vm937, %v924
        %944 = vst.msk [vmem:[#allocation3 + $0x18] sm:$0xf] %vm937, %v926
        %945 = vst.msk [vmem:[#allocation3 + $0x1c] sm:$0xf] %vm937, %v928
        %v946 = vld [vmem:[%s846] sm:$0xf]
        %v947 = vld [vmem:[%s846 + $0x4] sm:$0x1]
        %v948 = vld [vmem:[%s846 + $0x8] sm:$0xf]
        %v949 = vld [vmem:[%s846 + $0xc] sm:$0x1]
        %v950 = vld [vmem:[%s846 + $0x10] sm:$0xf]
        %v951 = vld [vmem:[%s846 + $0x14] sm:$0x1]
        %v952 = vld [vmem:[%s846 + $0x18] sm:$0xf]
        %v953 = vld [vmem:[%s846 + $0x1c] sm:$0x1]
        %v954 = vld [vmem:[%s846 + $0x20] sm:$0xf]
        %v955 = vld [vmem:[%s846 + $0x24] sm:$0x1]
        %v956 = vld [vmem:[%s846 + $0x28] sm:$0xf]
        %v957 = vld [vmem:[%s846 + $0x2c] sm:$0x1]
        %v958 = vld [vmem:[%s846 + $0x30] sm:$0xf]
        %v959 = vld [vmem:[%s846 + $0x34] sm:$0x1]
        %v960 = vld [vmem:[%s846 + $0x38] sm:$0xf]
        %v961 = vld [vmem:[%s846 + $0x3c] sm:$0x1]
        %v963 = vshrl.u32 %v946, 16
        %v965 = vrot.slane %v963, 4
        %v966 = vshll.u32 %v946, 16
        %v968 = vrot.slane %v966, 5
        %v969 = vor.u32 %v965, %v968
        %v970 = vrot.slane %v969, 4
        %v972 = vshll.u32 %v947, 16
        %v974 = vrot.slane %v972, 5
        %v975 = vsel %vm439, %v970, %v974
        %v977 = vshrl.u32 %v948, 16
        %v979 = vrot.slane %v977, 4
        %v980 = vshll.u32 %v948, 16
        %v982 = vrot.slane %v980, 5
        %v983 = vor.u32 %v979, %v982
        %v984 = vrot.slane %v983, 4
        %v986 = vshll.u32 %v949, 16
        %v988 = vrot.slane %v986, 5
        %v989 = vsel %vm439, %v984, %v988
        %v991 = vshrl.u32 %v950, 16
        %v993 = vrot.slane %v991, 4
        %v994 = vshll.u32 %v950, 16
        %v996 = vrot.slane %v994, 5
        %v997 = vor.u32 %v993, %v996
        %v998 = vrot.slane %v997, 4
        %v1000 = vshll.u32 %v951, 16
        %v1002 = vrot.slane %v1000, 5
        %v1003 = vsel %vm439, %v998, %v1002
        %v1005 = vshrl.u32 %v952, 16
        %v1007 = vrot.slane %v1005, 4
        %v1008 = vshll.u32 %v952, 16
        %v1010 = vrot.slane %v1008, 5
        %v1011 = vor.u32 %v1007, %v1010
        %v1012 = vrot.slane %v1011, 4
        %v1014 = vshll.u32 %v953, 16
        %v1016 = vrot.slane %v1014, 5
        %v1017 = vsel %vm439, %v1012, %v1016
        %v1019 = vshrl.u32 %v954, 16
        %v1021 = vrot.slane %v1019, 4
        %v1022 = vshll.u32 %v954, 16
        %v1024 = vrot.slane %v1022, 5
        %v1025 = vor.u32 %v1021, %v1024
        %v1026 = vrot.slane %v1025, 4
        %v1028 = vshll.u32 %v955, 16
        %v1030 = vrot.slane %v1028, 5
        %v1031 = vsel %vm439, %v1026, %v1030
        %v1033 = vshrl.u32 %v956, 16
        %v1035 = vrot.slane %v1033, 4
        %v1036 = vshll.u32 %v956, 16
        %v1038 = vrot.slane %v1036, 5
        %v1039 = vor.u32 %v1035, %v1038
        %v1040 = vrot.slane %v1039, 4
        %v1042 = vshll.u32 %v957, 16
        %v1044 = vrot.slane %v1042, 5
        %v1045 = vsel %vm439, %v1040, %v1044
        %v1047 = vshrl.u32 %v958, 16
        %v1049 = vrot.slane %v1047, 4
        %v1050 = vshll.u32 %v958, 16
        %v1052 = vrot.slane %v1050, 5
        %v1053 = vor.u32 %v1049, %v1052
        %v1054 = vrot.slane %v1053, 4
        %v1056 = vshll.u32 %v959, 16
        %v1058 = vrot.slane %v1056, 5
        %v1059 = vsel %vm439, %v1054, %v1058
        %v1061 = vshrl.u32 %v960, 16
        %v1063 = vrot.slane %v1061, 4
        %v1064 = vshll.u32 %v960, 16
        %v1066 = vrot.slane %v1064, 5
        %v1067 = vor.u32 %v1063, %v1066
        %v1068 = vrot.slane %v1067, 4
        %v1070 = vshll.u32 %v961, 16
        %v1072 = vrot.slane %v1070, 5
        %v1073 = vsel %vm439, %v1068, %v1072
        %1074 = vrot.lane.b32.xlu0 %v975, 64
        %v1075 = vpop.permute.xlu0 %1074
        %1076 = vrot.lane.b32.xlu0 %v989, 64
        %v1077 = vpop.permute.xlu0 %1076
        %1078 = vrot.lane.b32.xlu0 %v1003, 64
        %v1079 = vpop.permute.xlu0 %1078
        %1080 = vrot.lane.b32.xlu0 %v1017, 64
        %v1081 = vpop.permute.xlu0 %1080
        %1082 = vrot.lane.b32.xlu0 %v1031, 64
        %v1083 = vpop.permute.xlu0 %1082
        %1084 = vrot.lane.b32.xlu0 %v1045, 64
        %v1085 = vpop.permute.xlu0 %1084
        %1086 = vrot.lane.b32.xlu0 %v1059, 64
        %v1087 = vpop.permute.xlu0 %1086
        %1088 = vrot.lane.b32.xlu0 %v1073, 64
        %v1089 = vpop.permute.xlu0 %1088
        %vm1098 = vcmask 585216
        %1099 = vst.msk [vmem:[#allocation3] sm:$0xf] %vm1098, %v1075
        %1100 = vst.msk [vmem:[#allocation3 + $0x4] sm:$0xf] %vm1098, %v1077
        %1101 = vst.msk [vmem:[#allocation3 + $0x8] sm:$0xf] %vm1098, %v1079
        %1102 = vst.msk [vmem:[#allocation3 + $0xc] sm:$0xf] %vm1098, %v1081
        %1103 = vst.msk [vmem:[#allocation3 + $0x10] sm:$0xf] %vm1098, %v1083
        %1104 = vst.msk [vmem:[#allocation3 + $0x14] sm:$0xf] %vm1098, %v1085
        %1105 = vst.msk [vmem:[#allocation3 + $0x18] sm:$0xf] %vm1098, %v1087
        %1106 = vst.msk [vmem:[#allocation3 + $0x1c] sm:$0xf] %vm1098, %v1089
        %v1107 = vld [vmem:[#allocation3] sm:$0xf]
        %v1108 = vld [vmem:[#allocation3 + $0x4] sm:$0xf]
        %v1109 = vld [vmem:[#allocation3 + $0x8] sm:$0xf]
        %v1110 = vld [vmem:[#allocation3 + $0xc] sm:$0xf]
        %v1111 = vld [vmem:[#allocation3 + $0x10] sm:$0xf]
        %v1112 = vld [vmem:[#allocation3 + $0x14] sm:$0xf]
        %v1113 = vld [vmem:[#allocation3 + $0x18] sm:$0xf]
        %v1114 = vld [vmem:[#allocation3 + $0x1c] sm:$0xf]
        %v1115 = vld [vmem:[%s1] sm:$0xf]
        %v1116 = vld [vmem:[%s1 + $0x4] sm:$0xf]
        %v1117 = vld [vmem:[%s1 + $0x8] sm:$0xf]
        %v1118 = vld [vmem:[%s1 + $0xc] sm:$0xf]
        %v1119 = vld [vmem:[%s1 + $0x10] sm:$0xf]
        %v1120 = vld [vmem:[%s1 + $0x14] sm:$0xf]
        %v1121 = vld [vmem:[%s1 + $0x18] sm:$0xf]
        %v1122 = vld [vmem:[%s1 + $0x1c] sm:$0xf]
        %v1123 = vld [vmem:[%s1 + $0x20] sm:$0xf]
        %v1132 = vunpack.c.l.b16 %v1107
        %v1133 = vunpack.c.l.b16 %v1108
        %v1134 = vunpack.c.l.b16 %v1109
        %v1135 = vunpack.c.l.b16 %v1110
        %v1136 = vunpack.c.l.b16 %v1111
        %v1137 = vunpack.c.l.b16 %v1112
        %v1138 = vunpack.c.l.b16 %v1113
        %v1139 = vunpack.c.l.b16 %v1114
        %v1140 = vpack.c.b16 %v1133, %v1132
        %v1141 = vpack.c.b16 %v1135, %v1134
        %v1142 = vpack.c.b16 %v1137, %v1136
        %v1143 = vpack.c.b16 %v1139, %v1138
        %v1153 = vunpack.c.l.b16 %v1115
        %v1154 = vunpack.c.l.b16 %v1116
        %v1155 = vunpack.c.l.b16 %v1117
        %v1156 = vunpack.c.l.b16 %v1118
        %v1157 = vunpack.c.l.b16 %v1119
        %v1158 = vunpack.c.l.b16 %v1120
        %v1159 = vunpack.c.l.b16 %v1121
        %v1160 = vunpack.c.l.b16 %v1122
        %v1161 = vunpack.c.l.b16 %v1123
        %v1162 = vpack.c.b16 %v1154, %v1153
        %v1163 = vpack.c.b16 %v1156, %v1155
        %v1164 = vpack.c.b16 %v1158, %v1157
        %v1165 = vpack.c.b16 %v1160, %v1159
        %v1166 = vpack.c.b16 %v1161, %v1161
        %vm1171 = vcmask 588800
        %v1173 = vsel %vm1171, %v1140, 0
        %v1176 = vsel %vm1171, %v1141, 0
        %v1179 = vsel %vm1171, %v1142, 0
        %v1182 = vsel %vm1171, %v1143, 0
        %vm1184 = vcmask 1043456
        %v1186 = vsel %vm1184, %v1166, 0
        %1188 = vmatpush.bf16.msra.mxu0 0
        %1189 = vmatpush.bf16.msra.mxu0 0
        %1190 = vmatpush.bf16.msra.mxu0 0
        %1191 = vmatpush.bf16.msra.mxu0 %v1186
        %1192 = vmatpush.bf16.msra.mxu0 %v1165
        %1193 = vmatpush.bf16.msra.mxu0 %v1164
        %1194 = vmatpush.bf16.msra.mxu0 %v1163
        %1195 = vmatpush.bf16.msra.mxu0 %v1162
        %1196 = vmatmul.bf16.gmra.mxu0 %v1173
        %v1197 = vpop.f32.mrf.mxu0
        %v1198 = vadd.f32 0.0, %v1197
        %v1199 = vpop.f32.mrf.mxu0
        %v1200 = vadd.f32 0.0, %v1199
        %1201 = vmatmul.bf16.gmra.mxu0 %v1176
        %v1202 = vpop.f32.mrf.mxu0
        %v1203 = vadd.f32 0.0, %v1202
        %v1204 = vpop.f32.mrf.mxu0
        %v1205 = vadd.f32 0.0, %v1204
        %1206 = vmatmul.bf16.gmra.mxu0 %v1179
        %v1207 = vpop.f32.mrf.mxu0
        %v1208 = vadd.f32 0.0, %v1207
        %v1209 = vpop.f32.mrf.mxu0
        %v1210 = vadd.f32 0.0, %v1209
        %1211 = vmatmul.bf16.gmra.mxu0 %v1182
        %v1212 = vpop.f32.mrf.mxu0
        %v1213 = vadd.f32 0.0, %v1212
        %v1214 = vpop.f32.mrf.mxu0
        %v1215 = vadd.f32 0.0, %v1214
        %1216 = vdwg.mxu0
        %v1217 = vld [vmem:[%s4] sm:$0x1]
        %v1218 = vld [vmem:[%s4 + $0x1] sm:$0x1]
        %v1219 = vld [vmem:[%s4 + $0x2] sm:$0x1]
        %v1220 = vadd.f32 %v1198, %v1200
        %v1221 = vadd.f32 %v1220, %v1203
        %v1222 = vadd.f32 %v1221, %v1205
        %v1223 = vadd.f32 %v1222, %v1208
        %v1224 = vadd.f32 %v1223, %v1210
        %v1225 = vadd.f32 %v1224, %v1213
        %v1226 = vadd.f32 %v1225, %v1215
        %v1227 = vrot.slane %v1226, 4
        %v1228 = vadd.f32 %v1226, %v1227
        %v1229 = vrot.slane %v1228, 2
        %v1230 = vadd.f32 %v1228, %v1229
        %v1231 = vrot.slane %v1230, 1
        %v1232 = vadd.f32 %v1230, %v1231
        %v1233 = vmul.f32 %v1217, 64.0
        %v1234 = vadd.f32 %v1232, %v1233
        %1235 = vmatpush.msra.mxu0 %v294
        %1236 = vmatpush.msra.mxu0 %v293
        %1237 = vmatpush.msra.mxu0 %v292
        %1238 = vmatpush.msra.mxu0 %v291
        %1239 = vmatpush.msra.mxu0 %v290
        %1240 = vmatpush.msra.mxu0 %v289
        %1241 = vmatpush.msra.mxu0 %v288
        %1242 = vmatpush.msra.mxu0 %v287
        %1243 = vmatpush.msra.mxu0 %v286
        %1244 = vmatpush.msra.mxu0 %v285
        %1245 = vmatpush.msra.mxu0 %v284
        %1246 = vmatpush.msra.mxu0 %v283
        %1247 = vmatpush.msra.mxu0 %v282
        %1248 = vmatpush.msra.mxu0 %v281
        %1249 = vmatpush.msra.mxu0 %v280
        %1250 = vmatpush.msra.mxu0 %v279
        %1251 = vmatmul.f32.gmra.mxu0 %v1234
        %v1252 = vpop.f32.mrf.mxu0
        %v1253 = vadd.f32 0.0, %v1252
        %1254 = vdwg.mxu0
        %v1255 = vmul.f32 %v1253, 0.001953125
        %vm1256 = vcmask 15360
        %v1258 = vsel %vm1256, %v1255, 0
        %vm1260 = vcmask 1041408
        %v1262 = vsel %vm1260, %v278, 0
        %1264 = vmatpush.msra.mxu0 0.0
        %1265 = vmatpush.msra.mxu0 0.0
        %1266 = vmatpush.msra.mxu0 0.0
        %1267 = vmatpush.msra.mxu0 0.0
        %1268 = vmatpush.msra.mxu0 0.0
        %1269 = vmatpush.msra.mxu0 0.0
        %1270 = vmatpush.msra.mxu0 0.0
        %1271 = vmatpush.msra.mxu0 0.0
        %1272 = vmatpush.msra.mxu0 0.0
        %1273 = vmatpush.msra.mxu0 0.0
        %1274 = vmatpush.msra.mxu0 0.0
        %1275 = vmatpush.msra.mxu0 0.0
        %1276 = vmatpush.msra.mxu0 0.0
        %1277 = vmatpush.msra.mxu0 0.0
        %1278 = vmatpush.msra.mxu0 0.0
        %1279 = vmatpush.msra.mxu0 %v1262
        %1280 = vmatmul.f32.gmra.mxu0 %v1258
        %v1281 = vpop.f32.mrf.mxu0
        %v1282 = vadd.f32 0.0, %v1281
        %1283 = vdwg.mxu0
        %v1284 = vsub.f32 %v1217, %v1282
        %v1285 = vperm.slane %v1284, 0
        %v1286 = vadd.f32 %v1198, %v1285
        %v1287 = vadd.f32 %v1200, %v1285
        %v1288 = vadd.f32 %v1203, %v1285
        %v1289 = vadd.f32 %v1205, %v1285
        %v1290 = vadd.f32 %v1208, %v1285
        %v1291 = vadd.f32 %v1210, %v1285
        %v1292 = vadd.f32 %v1213, %v1285
        %v1293 = vadd.f32 %v1215, %v1285
        %v1294 = vmul.f32 %v1286, %v1286
        %v1295 = vmul.f32 %v1287, %v1287
        %v1296 = vmul.f32 %v1288, %v1288
        %v1297 = vmul.f32 %v1289, %v1289
        %v1298 = vmul.f32 %v1290, %v1290
        %v1299 = vmul.f32 %v1291, %v1291
        %v1300 = vmul.f32 %v1292, %v1292
        %v1301 = vmul.f32 %v1293, %v1293
        %v1302 = vadd.f32 %v1294, %v1295
        %v1303 = vadd.f32 %v1302, %v1296
        %v1304 = vadd.f32 %v1303, %v1297
        %v1305 = vadd.f32 %v1304, %v1298
        %v1306 = vadd.f32 %v1305, %v1299
        %v1307 = vadd.f32 %v1306, %v1300
        %v1308 = vadd.f32 %v1307, %v1301
        %v1309 = vrot.slane %v1308, 4
        %v1310 = vadd.f32 %v1308, %v1309
        %v1311 = vrot.slane %v1310, 2
        %v1312 = vadd.f32 %v1310, %v1311
        %v1313 = vrot.slane %v1312, 1
        %v1314 = vadd.f32 %v1312, %v1313
        %1315 = vmatpush.msra.mxu0 %v294
        %1316 = vmatpush.msra.mxu0 %v293
        %1317 = vmatpush.msra.mxu0 %v292
        %1318 = vmatpush.msra.mxu0 %v291
        %1319 = vmatpush.msra.mxu0 %v290
        %1320 = vmatpush.msra.mxu0 %v289
        %1321 = vmatpush.msra.mxu0 %v288
        %1322 = vmatpush.msra.mxu0 %v287
        %1323 = vmatpush.msra.mxu0 %v286
        %1324 = vmatpush.msra.mxu0 %v285
        %1325 = vmatpush.msra.mxu0 %v284
        %1326 = vmatpush.msra.mxu0 %v283
        %1327 = vmatpush.msra.mxu0 %v282
        %1328 = vmatpush.msra.mxu0 %v281
        %1329 = vmatpush.msra.mxu0 %v280
        %1330 = vmatpush.msra.mxu0 %v279
        %1331 = vmatmul.f32.gmra.mxu0 %v1314
        %v1332 = vpop.f32.mrf.mxu0
        %v1333 = vadd.f32 0.0, %v1332
        %1334 = vdwg.mxu0
        %v1335 = vmul.f32 %v1333, 0.001953125
        %v1336 = vadd.f32 %v1335, 1e-05
        %v1337 = vrsqrt.pop %v1336
        %v1338 = vmul.f32 %v1337, %v1336
        %v1339 = vmul.f32 %v1338, %v1337
        %v1340 = vmul.f32 0.5, %v1339
        %v1341 = vsub.f32 1.5, %v1340
        %v1342 = vmul.f32 %v1337, %v1341
        %vm1343 = vweird.f32 %v1336
        %vm1344 = vweird.f32 %v1337
        %vm1345 = vmor %vm1343, %vm1344
        %v1346 = vsel %vm1345, %v1337, %v1342
        %v1348 = vsel %vm1256, %v1346, 0
        %1350 = vmatpush.msra.mxu0 0.0
        %1351 = vmatpush.msra.mxu0 0.0
        %1352 = vmatpush.msra.mxu0 0.0
        %1353 = vmatpush.msra.mxu0 0.0
        %1354 = vmatpush.msra.mxu0 0.0
        %1355 = vmatpush.msra.mxu0 0.0
        %1356 = vmatpush.msra.mxu0 0.0
        %1357 = vmatpush.msra.mxu0 0.0
        %1358 = vmatpush.msra.mxu0 0.0
        %1359 = vmatpush.msra.mxu0 0.0
        %1360 = vmatpush.msra.mxu0 0.0
        %1361 = vmatpush.msra.mxu0 0.0
        %1362 = vmatpush.msra.mxu0 0.0
        %1363 = vmatpush.msra.mxu0 0.0
        %1364 = vmatpush.msra.mxu0 0.0
        %1365 = vmatpush.msra.mxu0 %v1262
        %1366 = vmatmul.f32.gmra.mxu0 %v1348
        %v1367 = vpop.f32.mrf.mxu0
        %v1368 = vadd.f32 0.0, %v1367
        %1369 = vdwg.mxu0
        %v1370 = vmul.f32 %v1368, %v1218
        %v1371 = vperm.slane %v1370, 0
        %v1372 = vmul.f32 %v1286, %v1371
        %v1373 = vmul.f32 %v1287, %v1371
        %v1374 = vmul.f32 %v1288, %v1371
        %v1375 = vmul.f32 %v1289, %v1371
        %v1376 = vmul.f32 %v1290, %v1371
        %v1377 = vmul.f32 %v1291, %v1371
        %v1378 = vmul.f32 %v1292, %v1371
        %v1379 = vmul.f32 %v1293, %v1371
        %v1380 = vperm.slane %v1219, 0
        %v1381 = vadd.f32 %v1372, %v1380
        %v1382 = vadd.f32 %v1373, %v1380
        %v1383 = vadd.f32 %v1374, %v1380
        %v1384 = vadd.f32 %v1375, %v1380
        %v1385 = vadd.f32 %v1376, %v1380
        %v1386 = vadd.f32 %v1377, %v1380
        %v1387 = vadd.f32 %v1378, %v1380
        %v1388 = vadd.f32 %v1379, %v1380
        %v1389 = vmax.f32 %v1381, 0.0
        %v1390 = vmax.f32 %v1382, 0.0
        %v1391 = vmax.f32 %v1383, 0.0
        %v1392 = vmax.f32 %v1384, 0.0
        %v1393 = vmax.f32 %v1385, 0.0
        %v1394 = vmax.f32 %v1386, 0.0
        %v1395 = vmax.f32 %v1387, 0.0
        %v1396 = vmax.f32 %v1388, 0.0
        %v1397 = vld [vmem:[%s635] sm:$0xf]
        %v1398 = vld [vmem:[%s635 + $0x8] sm:$0xf]
        %v1399 = vld [vmem:[%s635 + $0x10] sm:$0xf]
        %v1400 = vld [vmem:[%s635 + $0x18] sm:$0xf]
        %v1401 = vld [vmem:[%s635 + $0x20] sm:$0xf]
        %v1402 = vld [vmem:[%s635 + $0x28] sm:$0xf]
        %v1403 = vld [vmem:[%s635 + $0x30] sm:$0xf]
        %v1404 = vld [vmem:[%s635 + $0x38] sm:$0xf]
        %v1405 = vld [vmem:[%s3] sm:$0xf]
        %v1414 = vunpack.c.l.b16 %v1397
        %v1415 = vunpack.c.l.b16 %v1398
        %v1416 = vunpack.c.l.b16 %v1399
        %v1417 = vunpack.c.l.b16 %v1400
        %v1418 = vunpack.c.l.b16 %v1401
        %v1419 = vunpack.c.l.b16 %v1402
        %v1420 = vunpack.c.l.b16 %v1403
        %v1421 = vunpack.c.l.b16 %v1404
        %v1422 = vpack.c.b16 %v1415, %v1414
        %v1423 = vpack.c.b16 %v1417, %v1416
        %v1424 = vpack.c.b16 %v1419, %v1418
        %v1425 = vpack.c.b16 %v1421, %v1420
        %vm1426 = vcmask 64512
        %v1428 = vsel %vm1426, %v1422, 0
        %v1431 = vsel %vm1426, %v1423, 0
        %v1434 = vsel %vm1426, %v1424, 0
        %v1437 = vsel %vm1426, %v1425, 0
        %v1440 = vsel %vm1184, %v1405, 0
        %1442 = vmatpush.bf16.msra.mxu0 0
        %1443 = vmatpush.bf16.msra.mxu0 0
        %1444 = vmatpush.bf16.msra.mxu0 0
        %1445 = vmatpush.bf16.msra.mxu0 0
        %1446 = vmatpush.bf16.msra.mxu0 0
        %1447 = vmatpush.bf16.msra.mxu0 0
        %1448 = vmatpush.bf16.msra.mxu0 0
        %1449 = vmatpush.bf16.msra.mxu0 %v1440
        %1450 = vmatmul.bf16.gmra.mxu0 %v1428
        %v1451 = vpop.f32.mrf.mxu0
        %v1452 = vadd.f32 0.0, %v1451
        %v1453 = vpop.f32.mrf.mxu0
        %v1454 = vadd.f32 0.0, %v1453
        %1455 = vmatmul.bf16.gmra.mxu0 %v1431
        %v1456 = vpop.f32.mrf.mxu0
        %v1457 = vadd.f32 0.0, %v1456
        %v1458 = vpop.f32.mrf.mxu0
        %v1459 = vadd.f32 0.0, %v1458
        %1460 = vmatmul.bf16.gmra.mxu0 %v1434
        %v1461 = vpop.f32.mrf.mxu0
        %v1462 = vadd.f32 0.0, %v1461
        %v1463 = vpop.f32.mrf.mxu0
        %v1464 = vadd.f32 0.0, %v1463
        %1465 = vmatmul.bf16.gmra.mxu0 %v1437
        %v1466 = vpop.f32.mrf.mxu0
        %v1467 = vadd.f32 0.0, %v1466
        %v1468 = vpop.f32.mrf.mxu0
        %v1469 = vadd.f32 0.0, %v1468
        %1470 = vdwg.mxu0
        %v1471 = vld [vmem:[%s4 + $0x6] sm:$0x1]
        %v1472 = vld [vmem:[%s4 + $0x7] sm:$0x1]
        %v1473 = vld [vmem:[%s4 + $0x8] sm:$0x1]
        %v1474 = vadd.f32 %v1452, %v1454
        %v1475 = vadd.f32 %v1474, %v1457
        %v1476 = vadd.f32 %v1475, %v1459
        %v1477 = vadd.f32 %v1476, %v1462
        %v1478 = vadd.f32 %v1477, %v1464
        %v1479 = vadd.f32 %v1478, %v1467
        %v1480 = vadd.f32 %v1479, %v1469
        %v1481 = vrot.slane %v1480, 4
        %v1482 = vadd.f32 %v1480, %v1481
        %v1483 = vrot.slane %v1482, 2
        %v1484 = vadd.f32 %v1482, %v1483
        %v1485 = vrot.slane %v1484, 1
        %v1486 = vadd.f32 %v1484, %v1485
        %v1487 = vmul.f32 %v1471, 64.0
        %v1488 = vadd.f32 %v1486, %v1487
        %1489 = vmatpush.msra.mxu0 %v294
        %1490 = vmatpush.msra.mxu0 %v293
        %1491 = vmatpush.msra.mxu0 %v292
        %1492 = vmatpush.msra.mxu0 %v291
        %1493 = vmatpush.msra.mxu0 %v290
        %1494 = vmatpush.msra.mxu0 %v289
        %1495 = vmatpush.msra.mxu0 %v288
        %1496 = vmatpush.msra.mxu0 %v287
        %1497 = vmatpush.msra.mxu0 %v286
        %1498 = vmatpush.msra.mxu0 %v285
        %1499 = vmatpush.msra.mxu0 %v284
        %1500 = vmatpush.msra.mxu0 %v283
        %1501 = vmatpush.msra.mxu0 %v282
        %1502 = vmatpush.msra.mxu0 %v281
        %1503 = vmatpush.msra.mxu0 %v280
        %1504 = vmatpush.msra.mxu0 %v279
        %1505 = vmatmul.f32.gmra.mxu0 %v1488
        %v1506 = vpop.f32.mrf.mxu0
        %v1507 = vadd.f32 0.0, %v1506
        %1508 = vdwg.mxu0
        %v1509 = vmul.f32 %v1507, 0.001953125
        %v1511 = vsel %vm1256, %v1509, 0
        %1513 = vmatpush.msra.mxu0 0.0
        %1514 = vmatpush.msra.mxu0 0.0
        %1515 = vmatpush.msra.mxu0 0.0
        %1516 = vmatpush.msra.mxu0 0.0
        %1517 = vmatpush.msra.mxu0 0.0
        %1518 = vmatpush.msra.mxu0 0.0
        %1519 = vmatpush.msra.mxu0 0.0
        %1520 = vmatpush.msra.mxu0 0.0
        %1521 = vmatpush.msra.mxu0 0.0
        %1522 = vmatpush.msra.mxu0 0.0
        %1523 = vmatpush.msra.mxu0 0.0
        %1524 = vmatpush.msra.mxu0 0.0
        %1525 = vmatpush.msra.mxu0 0.0
        %1526 = vmatpush.msra.mxu0 0.0
        %1527 = vmatpush.msra.mxu0 0.0
        %1528 = vmatpush.msra.mxu0 %v1262
        %1529 = vmatmul.f32.gmra.mxu0 %v1511
        %v1530 = vpop.f32.mrf.mxu0
        %v1531 = vadd.f32 0.0, %v1530
        %1532 = vdwg.mxu0
        %v1533 = vsub.f32 %v1471, %v1531
        %v1534 = vperm.slane %v1533, 0
        %v1535 = vadd.f32 %v1452, %v1534
        %v1536 = vadd.f32 %v1454, %v1534
        %v1537 = vadd.f32 %v1457, %v1534
        %v1538 = vadd.f32 %v1459, %v1534
        %v1539 = vadd.f32 %v1462, %v1534
        %v1540 = vadd.f32 %v1464, %v1534
        %v1541 = vadd.f32 %v1467, %v1534
        %v1542 = vadd.f32 %v1469, %v1534
        %v1543 = vmul.f32 %v1535, %v1535
        %v1544 = vmul.f32 %v1536, %v1536
        %v1545 = vmul.f32 %v1537, %v1537
        %v1546 = vmul.f32 %v1538, %v1538
        %v1547 = vmul.f32 %v1539, %v1539
        %v1548 = vmul.f32 %v1540, %v1540
        %v1549 = vmul.f32 %v1541, %v1541
        %v1550 = vmul.f32 %v1542, %v1542
        %v1551 = vadd.f32 %v1543, %v1544
        %v1552 = vadd.f32 %v1551, %v1545
        %v1553 = vadd.f32 %v1552, %v1546
        %v1554 = vadd.f32 %v1553, %v1547
        %v1555 = vadd.f32 %v1554, %v1548
        %v1556 = vadd.f32 %v1555, %v1549
        %v1557 = vadd.f32 %v1556, %v1550
        %v1558 = vrot.slane %v1557, 4
        %v1559 = vadd.f32 %v1557, %v1558
        %v1560 = vrot.slane %v1559, 2
        %v1561 = vadd.f32 %v1559, %v1560
        %v1562 = vrot.slane %v1561, 1
        %v1563 = vadd.f32 %v1561, %v1562
        %1564 = vmatpush.msra.mxu0 %v294
        %1565 = vmatpush.msra.mxu0 %v293
        %1566 = vmatpush.msra.mxu0 %v292
        %1567 = vmatpush.msra.mxu0 %v291
        %1568 = vmatpush.msra.mxu0 %v290
        %1569 = vmatpush.msra.mxu0 %v289
        %1570 = vmatpush.msra.mxu0 %v288
        %1571 = vmatpush.msra.mxu0 %v287
        %1572 = vmatpush.msra.mxu0 %v286
        %1573 = vmatpush.msra.mxu0 %v285
        %1574 = vmatpush.msra.mxu0 %v284
        %1575 = vmatpush.msra.mxu0 %v283
        %1576 = vmatpush.msra.mxu0 %v282
        %1577 = vmatpush.msra.mxu0 %v281
        %1578 = vmatpush.msra.mxu0 %v280
        %1579 = vmatpush.msra.mxu0 %v279
        %1580 = vmatmul.f32.gmra.mxu0 %v1563
        %v1581 = vpop.f32.mrf.mxu0
        %v1582 = vadd.f32 0.0, %v1581
        %1583 = vdwg.mxu0
        %v1584 = vmul.f32 %v1582, 0.001953125
        %v1585 = vadd.f32 %v1584, 1e-05
        %v1586 = vrsqrt.pop %v1585
        %v1587 = vmul.f32 %v1586, %v1585
        %v1588 = vmul.f32 %v1587, %v1586
        %v1589 = vmul.f32 0.5, %v1588
        %v1590 = vsub.f32 1.5, %v1589
        %v1591 = vmul.f32 %v1586, %v1590
        %vm1592 = vweird.f32 %v1585
        %vm1593 = vweird.f32 %v1586
        %vm1594 = vmor %vm1592, %vm1593
        %v1595 = vsel %vm1594, %v1586, %v1591
        %v1597 = vsel %vm1256, %v1595, 0
        %1599 = vmatpush.msra.mxu0 0.0
        %1600 = vmatpush.msra.mxu0 0.0
        %1601 = vmatpush.msra.mxu0 0.0
        %1602 = vmatpush.msra.mxu0 0.0
        %1603 = vmatpush.msra.mxu0 0.0
        %1604 = vmatpush.msra.mxu0 0.0
        %1605 = vmatpush.msra.mxu0 0.0
        %1606 = vmatpush.msra.mxu0 0.0
        %1607 = vmatpush.msra.mxu0 0.0
        %1608 = vmatpush.msra.mxu0 0.0
        %1609 = vmatpush.msra.mxu0 0.0
        %1610 = vmatpush.msra.mxu0 0.0
        %1611 = vmatpush.msra.mxu0 0.0
        %1612 = vmatpush.msra.mxu0 0.0
        %1613 = vmatpush.msra.mxu0 0.0
        %1614 = vmatpush.msra.mxu0 %v1262
        %1615 = vmatmul.f32.gmra.mxu0 %v1597
        %v1616 = vpop.f32.mrf.mxu0
        %v1617 = vadd.f32 0.0, %v1616
        %1618 = vdwg.mxu0
        %v1619 = vmul.f32 %v1617, %v1472
        %v1620 = vperm.slane %v1619, 0
        %v1621 = vmul.f32 %v1535, %v1620
        %v1622 = vmul.f32 %v1536, %v1620
        %v1623 = vmul.f32 %v1537, %v1620
        %v1624 = vmul.f32 %v1538, %v1620
        %v1625 = vmul.f32 %v1539, %v1620
        %v1626 = vmul.f32 %v1540, %v1620
        %v1627 = vmul.f32 %v1541, %v1620
        %v1628 = vmul.f32 %v1542, %v1620
        %v1629 = vperm.slane %v1473, 0
        %v1630 = vadd.f32 %v1621, %v1629
        %v1631 = vadd.f32 %v1622, %v1629
        %v1632 = vadd.f32 %v1623, %v1629
        %v1633 = vadd.f32 %v1624, %v1629
        %v1634 = vadd.f32 %v1625, %v1629
        %v1635 = vadd.f32 %v1626, %v1629
        %v1636 = vadd.f32 %v1627, %v1629
        %v1637 = vadd.f32 %v1628, %v1629
        %v1638 = vpack.c.bf16 %v1389, %v1389
        %v1639 = vpack.c.bf16 %v1390, %v1390
        %v1640 = vpack.c.bf16 %v1391, %v1391
        %v1641 = vpack.c.bf16 %v1392, %v1392
        %v1642 = vpack.c.bf16 %v1393, %v1393
        %v1643 = vpack.c.bf16 %v1394, %v1394
        %v1644 = vpack.c.bf16 %v1395, %v1395
        %v1645 = vpack.c.bf16 %v1396, %v1396
        %v1647 = vshrl.u32 %v1638, 16
        %v1649 = vrot.slane %v1647, 7
        %v1650 = vshll.u32 %v1638, 16
        %v1652 = vor.u32 %v1649, %v1650
        %v1653 = vrot.slane %v1649, 4
        %v1655 = vshrl.u32 %v1639, 16
        %v1657 = vrot.slane %v1655, 7
        %v1658 = vshll.u32 %v1639, 16
        %v1660 = vor.u32 %v1657, %v1658
        %v1661 = vrot.slane %v1657, 4
        %v1663 = vshrl.u32 %v1640, 16
        %v1665 = vrot.slane %v1663, 7
        %v1666 = vshll.u32 %v1640, 16
        %v1668 = vor.u32 %v1665, %v1666
        %v1669 = vrot.slane %v1665, 4
        %v1671 = vshrl.u32 %v1641, 16
        %v1673 = vrot.slane %v1671, 7
        %v1674 = vshll.u32 %v1641, 16
        %v1676 = vor.u32 %v1673, %v1674
        %v1677 = vrot.slane %v1673, 4
        %v1679 = vshrl.u32 %v1642, 16
        %v1681 = vrot.slane %v1679, 7
        %v1682 = vshll.u32 %v1642, 16
        %v1684 = vor.u32 %v1681, %v1682
        %v1685 = vrot.slane %v1681, 4
        %v1687 = vshrl.u32 %v1643, 16
        %v1689 = vrot.slane %v1687, 7
        %v1690 = vshll.u32 %v1643, 16
        %v1692 = vor.u32 %v1689, %v1690
        %v1693 = vrot.slane %v1689, 4
        %v1695 = vshrl.u32 %v1644, 16
        %v1697 = vrot.slane %v1695, 7
        %v1698 = vshll.u32 %v1644, 16
        %v1700 = vor.u32 %v1697, %v1698
        %v1701 = vrot.slane %v1697, 4
        %v1703 = vshrl.u32 %v1645, 16
        %v1705 = vrot.slane %v1703, 7
        %v1706 = vshll.u32 %v1645, 16
        %v1708 = vor.u32 %v1705, %v1706
        %v1709 = vrot.slane %v1705, 4
        %vm1726 = vcmask 1043456
        %vm1727 = vmand %vm1726, %vm328
        %v1728 = vld [vmem:[%s300] sm:$0xf]
        %v1729 = vsel %vm1727, %v1652, %v1728
        %1730 = vst [vmem:[%s300] sm:$0xf] %v1729
        %v1731 = vld [vmem:[%s300 + $0x4] sm:$0x1]
        %v1732 = vsel %vm303, %v1653, %v1731
        %1733 = vst [vmem:[%s300 + $0x4] sm:$0x1] %v1732
        %v1734 = vld [vmem:[%s300 + $0x8] sm:$0xf]
        %v1735 = vsel %vm1727, %v1660, %v1734
        %1736 = vst [vmem:[%s300 + $0x8] sm:$0xf] %v1735
        %v1737 = vld [vmem:[%s300 + $0xc] sm:$0x1]
        %v1738 = vsel %vm303, %v1661, %v1737
        %1739 = vst [vmem:[%s300 + $0xc] sm:$0x1] %v1738
        %v1740 = vld [vmem:[%s300 + $0x10] sm:$0xf]
        %v1741 = vsel %vm1727, %v1668, %v1740
        %1742 = vst [vmem:[%s300 + $0x10] sm:$0xf] %v1741
        %v1743 = vld [vmem:[%s300 + $0x14] sm:$0x1]
        %v1744 = vsel %vm303, %v1669, %v1743
        %1745 = vst [vmem:[%s300 + $0x14] sm:$0x1] %v1744
        %v1746 = vld [vmem:[%s300 + $0x18] sm:$0xf]
        %v1747 = vsel %vm1727, %v1676, %v1746
        %1748 = vst [vmem:[%s300 + $0x18] sm:$0xf] %v1747
        %v1749 = vld [vmem:[%s300 + $0x1c] sm:$0x1]
        %v1750 = vsel %vm303, %v1677, %v1749
        %1751 = vst [vmem:[%s300 + $0x1c] sm:$0x1] %v1750
        %v1752 = vld [vmem:[%s300 + $0x20] sm:$0xf]
        %v1753 = vsel %vm1727, %v1684, %v1752
        %1754 = vst [vmem:[%s300 + $0x20] sm:$0xf] %v1753
        %v1755 = vld [vmem:[%s300 + $0x24] sm:$0x1]
        %v1756 = vsel %vm303, %v1685, %v1755
        %1757 = vst [vmem:[%s300 + $0x24] sm:$0x1] %v1756
        %v1758 = vld [vmem:[%s300 + $0x28] sm:$0xf]
        %v1759 = vsel %vm1727, %v1692, %v1758
        %1760 = vst [vmem:[%s300 + $0x28] sm:$0xf] %v1759
        %v1761 = vld [vmem:[%s300 + $0x2c] sm:$0x1]
        %v1762 = vsel %vm303, %v1693, %v1761
        %1763 = vst [vmem:[%s300 + $0x2c] sm:$0x1] %v1762
        %v1764 = vld [vmem:[%s300 + $0x30] sm:$0xf]
        %v1765 = vsel %vm1727, %v1700, %v1764
        %1766 = vst [vmem:[%s300 + $0x30] sm:$0xf] %v1765
        %v1767 = vld [vmem:[%s300 + $0x34] sm:$0x1]
        %v1768 = vsel %vm303, %v1701, %v1767
        %1769 = vst [vmem:[%s300 + $0x34] sm:$0x1] %v1768
        %v1770 = vld [vmem:[%s300 + $0x38] sm:$0xf]
        %v1771 = vsel %vm1727, %v1708, %v1770
        %1772 = vst [vmem:[%s300 + $0x38] sm:$0xf] %v1771
        %v1773 = vld [vmem:[%s300 + $0x3c] sm:$0x1]
        %v1774 = vsel %vm303, %v1709, %v1773
        %1775 = vst [vmem:[%s300 + $0x3c] sm:$0x1] %v1774
        %v1776 = vld [vmem:[#allocation2] sm:$0xf]
        %v1777 = vld [vmem:[#allocation2 + $0x8] sm:$0xf]
        %v1778 = vld [vmem:[#allocation2 + $0x10] sm:$0xf]
        %v1779 = vld [vmem:[#allocation2 + $0x18] sm:$0xf]
        %v1780 = vld [vmem:[#allocation2 + $0x20] sm:$0xf]
        %v1781 = vld [vmem:[#allocation2 + $0x28] sm:$0xf]
        %v1782 = vld [vmem:[#allocation2 + $0x30] sm:$0xf]
        %v1783 = vld [vmem:[#allocation2 + $0x38] sm:$0xf]
        %1784 = vst [vmem:[#allocation4] sm:$0xf] %v1776
        %1785 = vst [vmem:[#allocation4 + $0x24] sm:$0xf] %v1777
        %1786 = vst [vmem:[#allocation4 + $0x48] sm:$0xf] %v1778
        %1787 = vst [vmem:[#allocation4 + $0x6c] sm:$0xf] %v1779
        %1788 = vst [vmem:[#allocation4 + $0x90] sm:$0xf] %v1780
        %1789 = vst [vmem:[#allocation4 + $0xb4] sm:$0xf] %v1781
        %1790 = vst [vmem:[#allocation4 + $0xd8] sm:$0xf] %v1782
        %1791 = vst [vmem:[#allocation4 + $0xfc] sm:$0xf] %v1783
        %v1792 = vld [vmem:[#allocation2] sm:$0xf]
        %v1793 = vld [vmem:[#allocation2 + $0x4] sm:$0x1]
        %v1794 = vld [vmem:[#allocation2 + $0x8] sm:$0xf]
        %v1795 = vld [vmem:[#allocation2 + $0xc] sm:$0x1]
        %v1796 = vld [vmem:[#allocation2 + $0x10] sm:$0xf]
        %v1797 = vld [vmem:[#allocation2 + $0x14] sm:$0x1]
        %v1798 = vld [vmem:[#allocation2 + $0x18] sm:$0xf]
        %v1799 = vld [vmem:[#allocation2 + $0x1c] sm:$0x1]
        %v1800 = vld [vmem:[#allocation2 + $0x20] sm:$0xf]
        %v1801 = vld [vmem:[#allocation2 + $0x24] sm:$0x1]
        %v1802 = vld [vmem:[#allocation2 + $0x28] sm:$0xf]
        %v1803 = vld [vmem:[#allocation2 + $0x2c] sm:$0x1]
        %v1804 = vld [vmem:[#allocation2 + $0x30] sm:$0xf]
        %v1805 = vld [vmem:[#allocation2 + $0x34] sm:$0x1]
        %v1806 = vld [vmem:[#allocation2 + $0x38] sm:$0xf]
        %v1807 = vld [vmem:[#allocation2 + $0x3c] sm:$0x1]
        %v1809 = vshrl.u32 %v1792, 16
        %v1811 = vrot.slane %v1809, 4
        %v1812 = vshll.u32 %v1792, 16
        %v1814 = vrot.slane %v1812, 5
        %v1815 = vor.u32 %v1811, %v1814
        %v1816 = vrot.slane %v1815, 4
        %v1818 = vshll.u32 %v1793, 16
        %v1820 = vrot.slane %v1818, 5
        %v1821 = vsel %vm439, %v1816, %v1820
        %v1823 = vshrl.u32 %v1794, 16
        %v1825 = vrot.slane %v1823, 4
        %v1826 = vshll.u32 %v1794, 16
        %v1828 = vrot.slane %v1826, 5
        %v1829 = vor.u32 %v1825, %v1828
        %v1830 = vrot.slane %v1829, 4
        %v1832 = vshll.u32 %v1795, 16
        %v1834 = vrot.slane %v1832, 5
        %v1835 = vsel %vm439, %v1830, %v1834
        %v1837 = vshrl.u32 %v1796, 16
        %v1839 = vrot.slane %v1837, 4
        %v1840 = vshll.u32 %v1796, 16
        %v1842 = vrot.slane %v1840, 5
        %v1843 = vor.u32 %v1839, %v1842
        %v1844 = vrot.slane %v1843, 4
        %v1846 = vshll.u32 %v1797, 16
        %v1848 = vrot.slane %v1846, 5
        %v1849 = vsel %vm439, %v1844, %v1848
        %v1851 = vshrl.u32 %v1798, 16
        %v1853 = vrot.slane %v1851, 4
        %v1854 = vshll.u32 %v1798, 16
        %v1856 = vrot.slane %v1854, 5
        %v1857 = vor.u32 %v1853, %v1856
        %v1858 = vrot.slane %v1857, 4
        %v1860 = vshll.u32 %v1799, 16
        %v1862 = vrot.slane %v1860, 5
        %v1863 = vsel %vm439, %v1858, %v1862
        %v1865 = vshrl.u32 %v1800, 16
        %v1867 = vrot.slane %v1865, 4
        %v1868 = vshll.u32 %v1800, 16
        %v1870 = vrot.slane %v1868, 5
        %v1871 = vor.u32 %v1867, %v1870
        %v1872 = vrot.slane %v1871, 4
        %v1874 = vshll.u32 %v1801, 16
        %v1876 = vrot.slane %v1874, 5
        %v1877 = vsel %vm439, %v1872, %v1876
        %v1879 = vshrl.u32 %v1802, 16
        %v1881 = vrot.slane %v1879, 4
        %v1882 = vshll.u32 %v1802, 16
        %v1884 = vrot.slane %v1882, 5
        %v1885 = vor.u32 %v1881, %v1884
        %v1886 = vrot.slane %v1885, 4
        %v1888 = vshll.u32 %v1803, 16
        %v1890 = vrot.slane %v1888, 5
        %v1891 = vsel %vm439, %v1886, %v1890
        %v1893 = vshrl.u32 %v1804, 16
        %v1895 = vrot.slane %v1893, 4
        %v1896 = vshll.u32 %v1804, 16
        %v1898 = vrot.slane %v1896, 5
        %v1899 = vor.u32 %v1895, %v1898
        %v1900 = vrot.slane %v1899, 4
        %v1902 = vshll.u32 %v1805, 16
        %v1904 = vrot.slane %v1902, 5
        %v1905 = vsel %vm439, %v1900, %v1904
        %v1907 = vshrl.u32 %v1806, 16
        %v1909 = vrot.slane %v1907, 4
        %v1910 = vshll.u32 %v1806, 16
        %v1912 = vrot.slane %v1910, 5
        %v1913 = vor.u32 %v1909, %v1912
        %v1914 = vrot.slane %v1913, 4
        %v1916 = vshll.u32 %v1807, 16
        %v1918 = vrot.slane %v1916, 5
        %v1919 = vsel %vm439, %v1914, %v1918
        %1928 = vst [vmem:[#allocation4 + $0x4] sm:$0xf] %v1821
        %1929 = vst [vmem:[#allocation4 + $0x28] sm:$0xf] %v1835
        %1930 = vst [vmem:[#allocation4 + $0x4c] sm:$0xf] %v1849
        %1931 = vst [vmem:[#allocation4 + $0x70] sm:$0xf] %v1863
        %1932 = vst [vmem:[#allocation4 + $0x94] sm:$0xf] %v1877
        %1933 = vst [vmem:[#allocation4 + $0xb8] sm:$0xf] %v1891
        %1934 = vst [vmem:[#allocation4 + $0xdc] sm:$0xf] %v1905
        %1935 = vst [vmem:[#allocation4 + $0x100] sm:$0xf] %v1919
        %v1936 = vld [vmem:[#allocation2] sm:$0xe]
        %v1937 = vld [vmem:[#allocation2 + $0x4] sm:$0x1]
        %v1938 = vld [vmem:[#allocation2 + $0x8] sm:$0xe]
        %v1939 = vld [vmem:[#allocation2 + $0xc] sm:$0x1]
        %v1940 = vld [vmem:[#allocation2 + $0x10] sm:$0xe]
        %v1941 = vld [vmem:[#allocation2 + $0x14] sm:$0x1]
        %v1942 = vld [vmem:[#allocation2 + $0x18] sm:$0xe]
        %v1943 = vld [vmem:[#allocation2 + $0x1c] sm:$0x1]
        %v1944 = vld [vmem:[#allocation2 + $0x20] sm:$0xe]
        %v1945 = vld [vmem:[#allocation2 + $0x24] sm:$0x1]
        %v1946 = vld [vmem:[#allocation2 + $0x28] sm:$0xe]
        %v1947 = vld [vmem:[#allocation2 + $0x2c] sm:$0x1]
        %v1948 = vld [vmem:[#allocation2 + $0x30] sm:$0xe]
        %v1949 = vld [vmem:[#allocation2 + $0x34] sm:$0x1]
        %v1950 = vld [vmem:[#allocation2 + $0x38] sm:$0xe]
        %v1951 = vld [vmem:[#allocation2 + $0x3c] sm:$0x1]
        %vm1968 = vcmask 1042432
        %vm1969 = vcmask 1046532
        %vm1970 = vmor %vm1968, %vm1969
        %v1971 = vrot.slane %v1936, 5
        %v1972 = vrot.slane %v1971, 4
        %v1973 = vrot.slane %v1937, 5
        %v1974 = vsel %vm1970, %v1972, %v1973
        %v1975 = vrot.slane %v1938, 5
        %v1976 = vrot.slane %v1975, 4
        %v1977 = vrot.slane %v1939, 5
        %v1978 = vsel %vm1970, %v1976, %v1977
        %v1979 = vrot.slane %v1940, 5
        %v1980 = vrot.slane %v1979, 4
        %v1981 = vrot.slane %v1941, 5
        %v1982 = vsel %vm1970, %v1980, %v1981
        %v1983 = vrot.slane %v1942, 5
        %v1984 = vrot.slane %v1983, 4
        %v1985 = vrot.slane %v1943, 5
        %v1986 = vsel %vm1970, %v1984, %v1985
        %v1987 = vrot.slane %v1944, 5
        %v1988 = vrot.slane %v1987, 4
        %v1989 = vrot.slane %v1945, 5
        %v1990 = vsel %vm1970, %v1988, %v1989
        %v1991 = vrot.slane %v1946, 5
        %v1992 = vrot.slane %v1991, 4
        %v1993 = vrot.slane %v1947, 5
        %v1994 = vsel %vm1970, %v1992, %v1993
        %v1995 = vrot.slane %v1948, 5
        %v1996 = vrot.slane %v1995, 4
        %v1997 = vrot.slane %v1949, 5
        %v1998 = vsel %vm1970, %v1996, %v1997
        %v1999 = vrot.slane %v1950, 5
        %v2000 = vrot.slane %v1999, 4
        %v2001 = vrot.slane %v1951, 5
        %v2002 = vsel %vm1970, %v2000, %v2001
        %2011 = vst [vmem:[#allocation4 + $0x8] sm:$0xf] %v1974
        %2012 = vst [vmem:[#allocation4 + $0x2c] sm:$0xf] %v1978
        %2013 = vst [vmem:[#allocation4 + $0x50] sm:$0xf] %v1982
        %2014 = vst [vmem:[#allocation4 + $0x74] sm:$0xf] %v1986
        %2015 = vst [vmem:[#allocation4 + $0x98] sm:$0xf] %v1990
        %2016 = vst [vmem:[#allocation4 + $0xbc] sm:$0xf] %v1994
        %2017 = vst [vmem:[#allocation4 + $0xe0] sm:$0xf] %v1998
        %2018 = vst [vmem:[#allocation4 + $0x104] sm:$0xf] %v2002
        %v2019 = vld [vmem:[%s300] sm:$0xf]
        %v2020 = vld [vmem:[%s300 + $0x8] sm:$0xf]
        %v2021 = vld [vmem:[%s300 + $0x10] sm:$0xf]
        %v2022 = vld [vmem:[%s300 + $0x18] sm:$0xf]
        %v2023 = vld [vmem:[%s300 + $0x20] sm:$0xf]
        %v2024 = vld [vmem:[%s300 + $0x28] sm:$0xf]
        %v2025 = vld [vmem:[%s300 + $0x30] sm:$0xf]
        %v2026 = vld [vmem:[%s300 + $0x38] sm:$0xf]
        %2027 = vst [vmem:[#allocation4 + $0xc] sm:$0xf] %v2019
        %2028 = vst [vmem:[#allocation4 + $0x30] sm:$0xf] %v2020
        %2029 = vst [vmem:[#allocation4 + $0x54] sm:$0xf] %v2021
        %2030 = vst [vmem:[#allocation4 + $0x78] sm:$0xf] %v2022
        %2031 = vst [vmem:[#allocation4 + $0x9c] sm:$0xf] %v2023
        %2032 = vst [vmem:[#allocation4 + $0xc0] sm:$0xf] %v2024
        %2033 = vst [vmem:[#allocation4 + $0xe4] sm:$0xf] %v2025
        %2034 = vst [vmem:[#allocation4 + $0x108] sm:$0xf] %v2026
        %v2035 = vld [vmem:[%s300] sm:$0xf]
        %v2036 = vld [vmem:[%s300 + $0x4] sm:$0x1]
        %v2037 = vld [vmem:[%s300 + $0x8] sm:$0xf]
        %v2038 = vld [vmem:[%s300 + $0xc] sm:$0x1]
        %v2039 = vld [vmem:[%s300 + $0x10] sm:$0xf]
        %v2040 = vld [vmem:[%s300 + $0x14] sm:$0x1]
        %v2041 = vld [vmem:[%s300 + $0x18] sm:$0xf]
        %v2042 = vld [vmem:[%s300 + $0x1c] sm:$0x1]
        %v2043 = vld [vmem:[%s300 + $0x20] sm:$0xf]
        %v2044 = vld [vmem:[%s300 + $0x24] sm:$0x1]
        %v2045 = vld [vmem:[%s300 + $0x28] sm:$0xf]
        %v2046 = vld [vmem:[%s300 + $0x2c] sm:$0x1]
        %v2047 = vld [vmem:[%s300 + $0x30] sm:$0xf]
        %v2048 = vld [vmem:[%s300 + $0x34] sm:$0x1]
        %v2049 = vld [vmem:[%s300 + $0x38] sm:$0xf]
        %v2050 = vld [vmem:[%s300 + $0x3c] sm:$0x1]
        %v2052 = vshrl.u32 %v2035, 16
        %v2054 = vrot.slane %v2052, 4
        %v2055 = vshll.u32 %v2035, 16
        %v2057 = vrot.slane %v2055, 5
        %v2058 = vor.u32 %v2054, %v2057
        %v2059 = vrot.slane %v2058, 4
        %v2061 = vshll.u32 %v2036, 16
        %v2063 = vrot.slane %v2061, 5
        %v2064 = vsel %vm439, %v2059, %v2063
        %v2066 = vshrl.u32 %v2037, 16
        %v2068 = vrot.slane %v2066, 4
        %v2069 = vshll.u32 %v2037, 16
        %v2071 = vrot.slane %v2069, 5
        %v2072 = vor.u32 %v2068, %v2071
        %v2073 = vrot.slane %v2072, 4
        %v2075 = vshll.u32 %v2038, 16
        %v2077 = vrot.slane %v2075, 5
        %v2078 = vsel %vm439, %v2073, %v2077
        %v2080 = vshrl.u32 %v2039, 16
        %v2082 = vrot.slane %v2080, 4
        %v2083 = vshll.u32 %v2039, 16
        %v2085 = vrot.slane %v2083, 5
        %v2086 = vor.u32 %v2082, %v2085
        %v2087 = vrot.slane %v2086, 4
        %v2089 = vshll.u32 %v2040, 16
        %v2091 = vrot.slane %v2089, 5
        %v2092 = vsel %vm439, %v2087, %v2091
        %v2094 = vshrl.u32 %v2041, 16
        %v2096 = vrot.slane %v2094, 4
        %v2097 = vshll.u32 %v2041, 16
        %v2099 = vrot.slane %v2097, 5
        %v2100 = vor.u32 %v2096, %v2099
        %v2101 = vrot.slane %v2100, 4
        %v2103 = vshll.u32 %v2042, 16
        %v2105 = vrot.slane %v2103, 5
        %v2106 = vsel %vm439, %v2101, %v2105
        %v2108 = vshrl.u32 %v2043, 16
        %v2110 = vrot.slane %v2108, 4
        %v2111 = vshll.u32 %v2043, 16
        %v2113 = vrot.slane %v2111, 5
        %v2114 = vor.u32 %v2110, %v2113
        %v2115 = vrot.slane %v2114, 4
        %v2117 = vshll.u32 %v2044, 16
        %v2119 = vrot.slane %v2117, 5
        %v2120 = vsel %vm439, %v2115, %v2119
        %v2122 = vshrl.u32 %v2045, 16
        %v2124 = vrot.slane %v2122, 4
        %v2125 = vshll.u32 %v2045, 16
        %v2127 = vrot.slane %v2125, 5
        %v2128 = vor.u32 %v2124, %v2127
        %v2129 = vrot.slane %v2128, 4
        %v2131 = vshll.u32 %v2046, 16
        %v2133 = vrot.slane %v2131, 5
        %v2134 = vsel %vm439, %v2129, %v2133
        %v2136 = vshrl.u32 %v2047, 16
        %v2138 = vrot.slane %v2136, 4
        %v2139 = vshll.u32 %v2047, 16
        %v2141 = vrot.slane %v2139, 5
        %v2142 = vor.u32 %v2138, %v2141
        %v2143 = vrot.slane %v2142, 4
        %v2145 = vshll.u32 %v2048, 16
        %v2147 = vrot.slane %v2145, 5
        %v2148 = vsel %vm439, %v2143, %v2147
        %v2150 = vshrl.u32 %v2049, 16
        %v2152 = vrot.slane %v2150, 4
        %v2153 = vshll.u32 %v2049, 16
        %v2155 = vrot.slane %v2153, 5
        %v2156 = vor.u32 %v2152, %v2155
        %v2157 = vrot.slane %v2156, 4
        %v2159 = vshll.u32 %v2050, 16
        %v2161 = vrot.slane %v2159, 5
        %v2162 = vsel %vm439, %v2157, %v2161
        %2171 = vst [vmem:[#allocation4 + $0x10] sm:$0xf] %v2064
        %2172 = vst [vmem:[#allocation4 + $0x34] sm:$0xf] %v2078
        %2173 = vst [vmem:[#allocation4 + $0x58] sm:$0xf] %v2092
        %2174 = vst [vmem:[#allocation4 + $0x7c] sm:$0xf] %v2106
        %2175 = vst [vmem:[#allocation4 + $0xa0] sm:$0xf] %v2120
        %2176 = vst [vmem:[#allocation4 + $0xc4] sm:$0xf] %v2134
        %2177 = vst [vmem:[#allocation4 + $0xe8] sm:$0xf] %v2148
        %2178 = vst [vmem:[#allocation4 + $0x10c] sm:$0xf] %v2162
        %v2179 = vld [vmem:[%s300] sm:$0xe]
        %v2180 = vld [vmem:[%s300 + $0x4] sm:$0x1]
        %v2181 = vld [vmem:[%s300 + $0x8] sm:$0xe]
        %v2182 = vld [vmem:[%s300 + $0xc] sm:$0x1]
        %v2183 = vld [vmem:[%s300 + $0x10] sm:$0xe]
        %v2184 = vld [vmem:[%s300 + $0x14] sm:$0x1]
        %v2185 = vld [vmem:[%s300 + $0x18] sm:$0xe]
        %v2186 = vld [vmem:[%s300 + $0x1c] sm:$0x1]
        %v2187 = vld [vmem:[%s300 + $0x20] sm:$0xe]
        %v2188 = vld [vmem:[%s300 + $0x24] sm:$0x1]
        %v2189 = vld [vmem:[%s300 + $0x28] sm:$0xe]
        %v2190 = vld [vmem:[%s300 + $0x2c] sm:$0x1]
        %v2191 = vld [vmem:[%s300 + $0x30] sm:$0xe]
        %v2192 = vld [vmem:[%s300 + $0x34] sm:$0x1]
        %v2193 = vld [vmem:[%s300 + $0x38] sm:$0xe]
        %v2194 = vld [vmem:[%s300 + $0x3c] sm:$0x1]
        %v2211 = vrot.slane %v2179, 5
        %v2212 = vrot.slane %v2211, 4
        %v2213 = vrot.slane %v2180, 5
        %v2214 = vsel %vm1970, %v2212, %v2213
        %v2215 = vrot.slane %v2181, 5
        %v2216 = vrot.slane %v2215, 4
        %v2217 = vrot.slane %v2182, 5
        %v2218 = vsel %vm1970, %v2216, %v2217
        %v2219 = vrot.slane %v2183, 5
        %v2220 = vrot.slane %v2219, 4
        %v2221 = vrot.slane %v2184, 5
        %v2222 = vsel %vm1970, %v2220, %v2221
        %v2223 = vrot.slane %v2185, 5
        %v2224 = vrot.slane %v2223, 4
        %v2225 = vrot.slane %v2186, 5
        %v2226 = vsel %vm1970, %v2224, %v2225
        %v2227 = vrot.slane %v2187, 5
        %v2228 = vrot.slane %v2227, 4
        %v2229 = vrot.slane %v2188, 5
        %v2230 = vsel %vm1970, %v2228, %v2229
        %v2231 = vrot.slane %v2189, 5
        %v2232 = vrot.slane %v2231, 4
        %v2233 = vrot.slane %v2190, 5
        %v2234 = vsel %vm1970, %v2232, %v2233
        %v2235 = vrot.slane %v2191, 5
        %v2236 = vrot.slane %v2235, 4
        %v2237 = vrot.slane %v2192, 5
        %v2238 = vsel %vm1970, %v2236, %v2237
        %v2239 = vrot.slane %v2193, 5
        %v2240 = vrot.slane %v2239, 4
        %v2241 = vrot.slane %v2194, 5
        %v2242 = vsel %vm1970, %v2240, %v2241
        %2251 = vst [vmem:[#allocation4 + $0x14] sm:$0xf] %v2214
        %2252 = vst [vmem:[#allocation4 + $0x38] sm:$0xf] %v2218
        %2253 = vst [vmem:[#allocation4 + $0x5c] sm:$0xf] %v2222
        %2254 = vst [vmem:[#allocation4 + $0x80] sm:$0xf] %v2226
        %2255 = vst [vmem:[#allocation4 + $0xa4] sm:$0xf] %v2230
        %2256 = vst [vmem:[#allocation4 + $0xc8] sm:$0xf] %v2234
        %2257 = vst [vmem:[#allocation4 + $0xec] sm:$0xf] %v2238
        %2258 = vst [vmem:[#allocation4 + $0x110] sm:$0xf] %v2242
        %s2259 = scalar_lea.vmem [#allocation2], 16
        %v2260 = vld [vmem:[%s2259] sm:$0xf]
        %v2261 = vld [vmem:[%s2259 + $0x8] sm:$0xf]
        %v2262 = vld [vmem:[%s2259 + $0x10] sm:$0xf]
        %v2263 = vld [vmem:[%s2259 + $0x18] sm:$0xf]
        %v2264 = vld [vmem:[%s2259 + $0x20] sm:$0xf]
        %v2265 = vld [vmem:[%s2259 + $0x28] sm:$0xf]
        %v2266 = vld [vmem:[%s2259 + $0x30] sm:$0xf]
        %v2267 = vld [vmem:[%s2259 + $0x38] sm:$0xf]
        %2268 = vst [vmem:[#allocation4 + $0x18] sm:$0xf] %v2260
        %2269 = vst [vmem:[#allocation4 + $0x3c] sm:$0xf] %v2261
        %2270 = vst [vmem:[#allocation4 + $0x60] sm:$0xf] %v2262
        %2271 = vst [vmem:[#allocation4 + $0x84] sm:$0xf] %v2263
        %2272 = vst [vmem:[#allocation4 + $0xa8] sm:$0xf] %v2264
        %2273 = vst [vmem:[#allocation4 + $0xcc] sm:$0xf] %v2265
        %2274 = vst [vmem:[#allocation4 + $0xf0] sm:$0xf] %v2266
        %2275 = vst [vmem:[#allocation4 + $0x114] sm:$0xf] %v2267
        %v2276 = vld [vmem:[%s2259] sm:$0xf]
        %v2277 = vld [vmem:[%s2259 + $0x4] sm:$0x1]
        %v2278 = vld [vmem:[%s2259 + $0x8] sm:$0xf]
        %v2279 = vld [vmem:[%s2259 + $0xc] sm:$0x1]
        %v2280 = vld [vmem:[%s2259 + $0x10] sm:$0xf]
        %v2281 = vld [vmem:[%s2259 + $0x14] sm:$0x1]
        %v2282 = vld [vmem:[%s2259 + $0x18] sm:$0xf]
        %v2283 = vld [vmem:[%s2259 + $0x1c] sm:$0x1]
        %v2284 = vld [vmem:[%s2259 + $0x20] sm:$0xf]
        %v2285 = vld [vmem:[%s2259 + $0x24] sm:$0x1]
        %v2286 = vld [vmem:[%s2259 + $0x28] sm:$0xf]
        %v2287 = vld [vmem:[%s2259 + $0x2c] sm:$0x1]
        %v2288 = vld [vmem:[%s2259 + $0x30] sm:$0xf]
        %v2289 = vld [vmem:[%s2259 + $0x34] sm:$0x1]
        %v2290 = vld [vmem:[%s2259 + $0x38] sm:$0xf]
        %v2291 = vld [vmem:[%s2259 + $0x3c] sm:$0x1]
        %v2293 = vshrl.u32 %v2276, 16
        %v2295 = vrot.slane %v2293, 4
        %v2296 = vshll.u32 %v2276, 16
        %v2298 = vrot.slane %v2296, 5
        %v2299 = vor.u32 %v2295, %v2298
        %v2300 = vrot.slane %v2299, 4
        %v2302 = vshll.u32 %v2277, 16
        %v2304 = vrot.slane %v2302, 5
        %v2305 = vsel %vm439, %v2300, %v2304
        %v2307 = vshrl.u32 %v2278, 16
        %v2309 = vrot.slane %v2307, 4
        %v2310 = vshll.u32 %v2278, 16
        %v2312 = vrot.slane %v2310, 5
        %v2313 = vor.u32 %v2309, %v2312
        %v2314 = vrot.slane %v2313, 4
        %v2316 = vshll.u32 %v2279, 16
        %v2318 = vrot.slane %v2316, 5
        %v2319 = vsel %vm439, %v2314, %v2318
        %v2321 = vshrl.u32 %v2280, 16
        %v2323 = vrot.slane %v2321, 4
        %v2324 = vshll.u32 %v2280, 16
        %v2326 = vrot.slane %v2324, 5
        %v2327 = vor.u32 %v2323, %v2326
        %v2328 = vrot.slane %v2327, 4
        %v2330 = vshll.u32 %v2281, 16
        %v2332 = vrot.slane %v2330, 5
        %v2333 = vsel %vm439, %v2328, %v2332
        %v2335 = vshrl.u32 %v2282, 16
        %v2337 = vrot.slane %v2335, 4
        %v2338 = vshll.u32 %v2282, 16
        %v2340 = vrot.slane %v2338, 5
        %v2341 = vor.u32 %v2337, %v2340
        %v2342 = vrot.slane %v2341, 4
        %v2344 = vshll.u32 %v2283, 16
        %v2346 = vrot.slane %v2344, 5
        %v2347 = vsel %vm439, %v2342, %v2346
        %v2349 = vshrl.u32 %v2284, 16
        %v2351 = vrot.slane %v2349, 4
        %v2352 = vshll.u32 %v2284, 16
        %v2354 = vrot.slane %v2352, 5
        %v2355 = vor.u32 %v2351, %v2354
        %v2356 = vrot.slane %v2355, 4
        %v2358 = vshll.u32 %v2285, 16
        %v2360 = vrot.slane %v2358, 5
        %v2361 = vsel %vm439, %v2356, %v2360
        %v2363 = vshrl.u32 %v2286, 16
        %v2365 = vrot.slane %v2363, 4
        %v2366 = vshll.u32 %v2286, 16
        %v2368 = vrot.slane %v2366, 5
        %v2369 = vor.u32 %v2365, %v2368
        %v2370 = vrot.slane %v2369, 4
        %v2372 = vshll.u32 %v2287, 16
        %v2374 = vrot.slane %v2372, 5
        %v2375 = vsel %vm439, %v2370, %v2374
        %v2377 = vshrl.u32 %v2288, 16
        %v2379 = vrot.slane %v2377, 4
        %v2380 = vshll.u32 %v2288, 16
        %v2382 = vrot.slane %v2380, 5
        %v2383 = vor.u32 %v2379, %v2382
        %v2384 = vrot.slane %v2383, 4
        %v2386 = vshll.u32 %v2289, 16
        %v2388 = vrot.slane %v2386, 5
        %v2389 = vsel %vm439, %v2384, %v2388
        %v2391 = vshrl.u32 %v2290, 16
        %v2393 = vrot.slane %v2391, 4
        %v2394 = vshll.u32 %v2290, 16
        %v2396 = vrot.slane %v2394, 5
        %v2397 = vor.u32 %v2393, %v2396
        %v2398 = vrot.slane %v2397, 4
        %v2400 = vshll.u32 %v2291, 16
        %v2402 = vrot.slane %v2400, 5
        %v2403 = vsel %vm439, %v2398, %v2402
        %2412 = vst [vmem:[#allocation4 + $0x1c] sm:$0xf] %v2305
        %2413 = vst [vmem:[#allocation4 + $0x40] sm:$0xf] %v2319
        %2414 = vst [vmem:[#allocation4 + $0x64] sm:$0xf] %v2333
        %2415 = vst [vmem:[#allocation4 + $0x88] sm:$0xf] %v2347
        %2416 = vst [vmem:[#allocation4 + $0xac] sm:$0xf] %v2361
        %2417 = vst [vmem:[#allocation4 + $0xd0] sm:$0xf] %v2375
        %2418 = vst [vmem:[#allocation4 + $0xf4] sm:$0xf] %v2389
        %2419 = vst [vmem:[#allocation4 + $0x118] sm:$0xf] %v2403
        %v2420 = vld [vmem:[%s2259] sm:$0xe]
        %v2421 = vld [vmem:[%s2259 + $0x4] sm:$0x1]
        %v2422 = vld [vmem:[%s2259 + $0x8] sm:$0xe]
        %v2423 = vld [vmem:[%s2259 + $0xc] sm:$0x1]
        %v2424 = vld [vmem:[%s2259 + $0x10] sm:$0xe]
        %v2425 = vld [vmem:[%s2259 + $0x14] sm:$0x1]
        %v2426 = vld [vmem:[%s2259 + $0x18] sm:$0xe]
        %v2427 = vld [vmem:[%s2259 + $0x1c] sm:$0x1]
        %v2428 = vld [vmem:[%s2259 + $0x20] sm:$0xe]
        %v2429 = vld [vmem:[%s2259 + $0x24] sm:$0x1]
        %v2430 = vld [vmem:[%s2259 + $0x28] sm:$0xe]
        %v2431 = vld [vmem:[%s2259 + $0x2c] sm:$0x1]
        %v2432 = vld [vmem:[%s2259 + $0x30] sm:$0xe]
        %v2433 = vld [vmem:[%s2259 + $0x34] sm:$0x1]
        %v2434 = vld [vmem:[%s2259 + $0x38] sm:$0xe]
        %v2435 = vld [vmem:[%s2259 + $0x3c] sm:$0x1]
        %v2452 = vrot.slane %v2420, 5
        %v2453 = vrot.slane %v2452, 4
        %v2454 = vrot.slane %v2421, 5
        %v2455 = vsel %vm1970, %v2453, %v2454
        %v2456 = vrot.slane %v2422, 5
        %v2457 = vrot.slane %v2456, 4
        %v2458 = vrot.slane %v2423, 5
        %v2459 = vsel %vm1970, %v2457, %v2458
        %v2460 = vrot.slane %v2424, 5
        %v2461 = vrot.slane %v2460, 4
        %v2462 = vrot.slane %v2425, 5
        %v2463 = vsel %vm1970, %v2461, %v2462
        %v2464 = vrot.slane %v2426, 5
        %v2465 = vrot.slane %v2464, 4
        %v2466 = vrot.slane %v2427, 5
        %v2467 = vsel %vm1970, %v2465, %v2466
        %v2468 = vrot.slane %v2428, 5
        %v2469 = vrot.slane %v2468, 4
        %v2470 = vrot.slane %v2429, 5
        %v2471 = vsel %vm1970, %v2469, %v2470
        %v2472 = vrot.slane %v2430, 5
        %v2473 = vrot.slane %v2472, 4
        %v2474 = vrot.slane %v2431, 5
        %v2475 = vsel %vm1970, %v2473, %v2474
        %v2476 = vrot.slane %v2432, 5
        %v2477 = vrot.slane %v2476, 4
        %v2478 = vrot.slane %v2433, 5
        %v2479 = vsel %vm1970, %v2477, %v2478
        %v2480 = vrot.slane %v2434, 5
        %v2481 = vrot.slane %v2480, 4
        %v2482 = vrot.slane %v2435, 5
        %v2483 = vsel %vm1970, %v2481, %v2482
        %2492 = vst [vmem:[#allocation4 + $0x20] sm:$0xf] %v2455
        %2493 = vst [vmem:[#allocation4 + $0x44] sm:$0xf] %v2459
        %2494 = vst [vmem:[#allocation4 + $0x68] sm:$0xf] %v2463
        %2495 = vst [vmem:[#allocation4 + $0x8c] sm:$0xf] %v2467
        %2496 = vst [vmem:[#allocation4 + $0xb0] sm:$0xf] %v2471
        %2497 = vst [vmem:[#allocation4 + $0xd4] sm:$0xf] %v2475
        %2498 = vst [vmem:[#allocation4 + $0xf8] sm:$0xf] %v2479
        %2499 = vst [vmem:[#allocation4 + $0x11c] sm:$0xf] %v2483
        %v2500 = vld [vmem:[#allocation4] sm:$0xff]
        %v2501 = vld [vmem:[#allocation4 + $0x8] sm:$0xff]
        %v2502 = vld [vmem:[#allocation4 + $0x10] sm:$0xff]
        %v2503 = vld [vmem:[#allocation4 + $0x18] sm:$0xff]
        %v2504 = vld [vmem:[#allocation4 + $0x20] sm:$0xf]
        %v2505 = vld [vmem:[#allocation4 + $0x24] sm:$0xff]
        %v2506 = vld [vmem:[#allocation4 + $0x2c] sm:$0xff]
        %v2507 = vld [vmem:[#allocation4 + $0x34] sm:$0xff]
        %v2508 = vld [vmem:[#allocation4 + $0x3c] sm:$0xff]
        %v2509 = vld [vmem:[#allocation4 + $0x44] sm:$0xf]
        %v2510 = vld [vmem:[#allocation4 + $0x48] sm:$0xff]
        %v2511 = vld [vmem:[#allocation4 + $0x50] sm:$0xff]
        %v2512 = vld [vmem:[#allocation4 + $0x58] sm:$0xff]
        %v2513 = vld [vmem:[#allocation4 + $0x60] sm:$0xff]
        %v2514 = vld [vmem:[#allocation4 + $0x68] sm:$0xf]
        %v2515 = vld [vmem:[#allocation4 + $0x6c] sm:$0xff]
        %v2516 = vld [vmem:[#allocation4 + $0x74] sm:$0xff]
        %v2517 = vld [vmem:[#allocation4 + $0x7c] sm:$0xff]
        %v2518 = vld [vmem:[#allocation4 + $0x84] sm:$0xff]
        %v2519 = vld [vmem:[#allocation4 + $0x8c] sm:$0xf]
        %v2520 = vld [vmem:[#allocation4 + $0x90] sm:$0xff]
        %v2521 = vld [vmem:[#allocation4 + $0x98] sm:$0xff]
        %v2522 = vld [vmem:[#allocation4 + $0xa0] sm:$0xff]
        %v2523 = vld [vmem:[#allocation4 + $0xa8] sm:$0xff]
        %v2524 = vld [vmem:[#allocation4 + $0xb0] sm:$0xf]
        %v2525 = vld [vmem:[#allocation4 + $0xb4] sm:$0xff]
        %v2526 = vld [vmem:[#allocation4 + $0xbc] sm:$0xff]
        %v2527 = vld [vmem:[#allocation4 + $0xc4] sm:$0xff]
        %v2528 = vld [vmem:[#allocation4 + $0xcc] sm:$0xff]
        %v2529 = vld [vmem:[#allocation4 + $0xd4] sm:$0xf]
        %v2530 = vld [vmem:[#allocation4 + $0xd8] sm:$0xff]
        %v2531 = vld [vmem:[#allocation4 + $0xe0] sm:$0xff]
        %v2532 = vld [vmem:[#allocation4 + $0xe8] sm:$0xff]
        %v2533 = vld [vmem:[#allocation4 + $0xf0] sm:$0xff]
        %v2534 = vld [vmem:[#allocation4 + $0xf8] sm:$0xf]
        %v2535 = vld [vmem:[#allocation4 + $0xfc] sm:$0xff]
        %v2536 = vld [vmem:[#allocation4 + $0x104] sm:$0xff]
        %v2537 = vld [vmem:[#allocation4 + $0x10c] sm:$0xff]
        %v2538 = vld [vmem:[#allocation4 + $0x114] sm:$0xff]
        %v2539 = vld [vmem:[#allocation4 + $0x11c] sm:$0xf]
        %v2540 = vld [vmem:[%s2] sm:$0xf]
        %v2541 = vld [vmem:[%s2 + $0x4] sm:$0xf]
        %v2542 = vld [vmem:[%s2 + $0x8] sm:$0xf]
        %v2543 = vld [vmem:[%s2 + $0xc] sm:$0xf]
        %v2544 = vld [vmem:[%s2 + $0x10] sm:$0xf]
        %v2545 = vld [vmem:[%s2 + $0x14] sm:$0xf]
        %v2546 = vld [vmem:[%s2 + $0x18] sm:$0xf]
        %v2547 = vld [vmem:[%s2 + $0x1c] sm:$0xf]
        %v2548 = vld [vmem:[%s2 + $0x20] sm:$0xf]
        %v2549 = vld [vmem:[%s2 + $0x24] sm:$0xf]
        %v2550 = vld [vmem:[%s2 + $0x28] sm:$0xf]
        %v2551 = vld [vmem:[%s2 + $0x2c] sm:$0xf]
        %v2552 = vld [vmem:[%s2 + $0x30] sm:$0xf]
        %v2553 = vld [vmem:[%s2 + $0x34] sm:$0xf]
        %v2554 = vld [vmem:[%s2 + $0x38] sm:$0xf]
        %v2555 = vld [vmem:[%s2 + $0x3c] sm:$0xf]
        %v2556 = vld [vmem:[%s2 + $0x40] sm:$0xf]
        %v2557 = vld [vmem:[%s2 + $0x44] sm:$0xf]
        %v2558 = vld [vmem:[%s2 + $0x48] sm:$0xf]
        %v2559 = vld [vmem:[%s2 + $0x4c] sm:$0xf]
        %v2560 = vld [vmem:[%s2 + $0x50] sm:$0xf]
        %v2561 = vld [vmem:[%s2 + $0x54] sm:$0xf]
        %v2562 = vld [vmem:[%s2 + $0x58] sm:$0xf]
        %v2563 = vld [vmem:[%s2 + $0x5c] sm:$0xf]
        %v2564 = vld [vmem:[%s2 + $0x60] sm:$0xf]
        %v2565 = vld [vmem:[%s2 + $0x64] sm:$0xf]
        %v2566 = vld [vmem:[%s2 + $0x68] sm:$0xf]
        %v2567 = vld [vmem:[%s2 + $0x6c] sm:$0xf]
        %v2568 = vld [vmem:[%s2 + $0x70] sm:$0xf]
        %v2569 = vld [vmem:[%s2 + $0x74] sm:$0xf]
        %v2570 = vld [vmem:[%s2 + $0x78] sm:$0xf]
        %v2571 = vld [vmem:[%s2 + $0x7c] sm:$0xf]
        %v2572 = vld [vmem:[%s2 + $0x80] sm:$0xf]
        %v2573 = vld [vmem:[%s2 + $0x84] sm:$0xf]
        %v2574 = vld [vmem:[%s2 + $0x88] sm:$0xf]
        %v2575 = vld [vmem:[%s2 + $0x8c] sm:$0xf]
        %v2576 = vld [vmem:[%s2 + $0x90] sm:$0xf]
        %v2577 = vld [vmem:[%s2 + $0x94] sm:$0xf]
        %v2578 = vld [vmem:[%s2 + $0x98] sm:$0xf]
        %v2579 = vld [vmem:[%s2 + $0x9c] sm:$0xf]
        %v2580 = vld [vmem:[%s2 + $0xa0] sm:$0xf]
        %v2581 = vld [vmem:[%s2 + $0xa4] sm:$0xf]
        %v2582 = vld [vmem:[%s2 + $0xa8] sm:$0xf]
        %v2583 = vld [vmem:[%s2 + $0xac] sm:$0xf]
        %v2584 = vld [vmem:[%s2 + $0xb0] sm:$0xf]
        %v2585 = vld [vmem:[%s2 + $0xb4] sm:$0xf]
        %v2586 = vld [vmem:[%s2 + $0xb8] sm:$0xf]
        %v2587 = vld [vmem:[%s2 + $0xbc] sm:$0xf]
        %v2588 = vld [vmem:[%s2 + $0xc0] sm:$0xf]
        %v2589 = vld [vmem:[%s2 + $0xc4] sm:$0xf]
        %v2590 = vld [vmem:[%s2 + $0xc8] sm:$0xf]
        %v2591 = vld [vmem:[%s2 + $0xcc] sm:$0xf]
        %v2592 = vld [vmem:[%s2 + $0xd0] sm:$0xf]
        %v2593 = vld [vmem:[%s2 + $0xd4] sm:$0xf]
        %v2594 = vld [vmem:[%s2 + $0xd8] sm:$0xf]
        %v2595 = vld [vmem:[%s2 + $0xdc] sm:$0xf]
        %v2596 = vld [vmem:[%s2 + $0xe0] sm:$0xf]
        %v2597 = vld [vmem:[%s2 + $0xe4] sm:$0xf]
        %v2598 = vld [vmem:[%s2 + $0xe8] sm:$0xf]
        %v2599 = vld [vmem:[%s2 + $0xec] sm:$0xf]
        %v2600 = vld [vmem:[%s2 + $0xf0] sm:$0xf]
        %v2601 = vld [vmem:[%s2 + $0xf4] sm:$0xf]
        %v2602 = vld [vmem:[%s2 + $0xf8] sm:$0xf]
        %v2603 = vld [vmem:[%s2 + $0xfc] sm:$0xf]
        %v2604 = vld [vmem:[%s2 + $0x100] sm:$0xf]
        %v2605 = vld [vmem:[%s2 + $0x104] sm:$0xf]
        %v2606 = vld [vmem:[%s2 + $0x108] sm:$0xf]
        %v2607 = vld [vmem:[%s2 + $0x10c] sm:$0xf]
        %v2608 = vld [vmem:[%s2 + $0x110] sm:$0xf]
        %v2609 = vld [vmem:[%s2 + $0x114] sm:$0xf]
        %v2610 = vld [vmem:[%s2 + $0x118] sm:$0xf]
        %v2611 = vld [vmem:[%s2 + $0x11c] sm:$0xf]
        %v2612 = vld [vmem:[%s2 + $0x120] sm:$0xf]
        %v2613 = vld [vmem:[%s2 + $0x124] sm:$0xf]
        %v2614 = vld [vmem:[%s2 + $0x128] sm:$0xf]
        %v2615 = vld [vmem:[%s2 + $0x12c] sm:$0xf]
        %v2616 = vld [vmem:[%s2 + $0x130] sm:$0xf]
        %v2617 = vld [vmem:[%s2 + $0x134] sm:$0xf]
        %v2618 = vld [vmem:[%s2 + $0x138] sm:$0xf]
        %v2619 = vld [vmem:[%s2 + $0x13c] sm:$0xf]
        %v2620 = vld [vmem:[%s2 + $0x140] sm:$0xf]
        %v2621 = vld [vmem:[%s2 + $0x144] sm:$0xf]
        %v2622 = vld [vmem:[%s2 + $0x148] sm:$0xf]
        %v2623 = vld [vmem:[%s2 + $0x14c] sm:$0xf]
        %v2624 = vld [vmem:[%s2 + $0x150] sm:$0xf]
        %v2625 = vld [vmem:[%s2 + $0x154] sm:$0xf]
        %v2626 = vld [vmem:[%s2 + $0x158] sm:$0xf]
        %v2627 = vld [vmem:[%s2 + $0x15c] sm:$0xf]
        %v2628 = vld [vmem:[%s2 + $0x160] sm:$0xf]
        %v2629 = vld [vmem:[%s2 + $0x164] sm:$0xf]
        %v2630 = vld [vmem:[%s2 + $0x168] sm:$0xf]
        %v2631 = vld [vmem:[%s2 + $0x16c] sm:$0xf]
        %v2632 = vld [vmem:[%s2 + $0x170] sm:$0xf]
        %v2633 = vld [vmem:[%s2 + $0x174] sm:$0xf]
        %v2634 = vld [vmem:[%s2 + $0x178] sm:$0xf]
        %v2635 = vld [vmem:[%s2 + $0x17c] sm:$0xf]
        %v2636 = vld [vmem:[%s2 + $0x180] sm:$0xf]
        %v2637 = vld [vmem:[%s2 + $0x184] sm:$0xf]
        %v2638 = vld [vmem:[%s2 + $0x188] sm:$0xf]
        %v2639 = vld [vmem:[%s2 + $0x18c] sm:$0xf]
        %v2640 = vld [vmem:[%s2 + $0x190] sm:$0xf]
        %v2641 = vld [vmem:[%s2 + $0x194] sm:$0xf]
        %v2642 = vld [vmem:[%s2 + $0x198] sm:$0xf]
        %v2643 = vld [vmem:[%s2 + $0x19c] sm:$0xf]
        %v2644 = vld [vmem:[%s2 + $0x1a0] sm:$0xf]
        %v2645 = vld [vmem:[%s2 + $0x1a4] sm:$0xf]
        %v2646 = vld [vmem:[%s2 + $0x1a8] sm:$0xf]
        %v2647 = vld [vmem:[%s2 + $0x1ac] sm:$0xf]
        %v2648 = vld [vmem:[%s2 + $0x1b0] sm:$0xf]
        %v2649 = vld [vmem:[%s2 + $0x1b4] sm:$0xf]
        %v2650 = vld [vmem:[%s2 + $0x1b8] sm:$0xf]
        %v2651 = vld [vmem:[%s2 + $0x1bc] sm:$0xf]
        %v2652 = vld [vmem:[%s2 + $0x1c0] sm:$0xf]
        %v2653 = vld [vmem:[%s2 + $0x1c4] sm:$0xf]
        %v2654 = vld [vmem:[%s2 + $0x1c8] sm:$0xf]
        %v2655 = vld [vmem:[%s2 + $0x1cc] sm:$0xf]
        %v2656 = vld [vmem:[%s2 + $0x1d0] sm:$0xf]
        %v2657 = vld [vmem:[%s2 + $0x1d4] sm:$0xf]
        %v2658 = vld [vmem:[%s2 + $0x1d8] sm:$0xf]
        %v2659 = vld [vmem:[%s2 + $0x1dc] sm:$0xf]
        %v2660 = vld [vmem:[%s2 + $0x1e0] sm:$0xf]
        %v2661 = vld [vmem:[%s2 + $0x1e4] sm:$0xf]
        %v2662 = vld [vmem:[%s2 + $0x1e8] sm:$0xf]
        %v2663 = vld [vmem:[%s2 + $0x1ec] sm:$0xf]
        %v2664 = vld [vmem:[%s2 + $0x1f0] sm:$0xf]
        %v2665 = vld [vmem:[%s2 + $0x1f4] sm:$0xf]
        %v2666 = vld [vmem:[%s2 + $0x1f8] sm:$0xf]
        %v2667 = vld [vmem:[%s2 + $0x1fc] sm:$0xf]
        %v2668 = vld [vmem:[%s2 + $0x200] sm:$0xf]
        %v2669 = vld [vmem:[%s2 + $0x204] sm:$0xf]
        %v2670 = vld [vmem:[%s2 + $0x208] sm:$0xf]
        %v2671 = vld [vmem:[%s2 + $0x20c] sm:$0xf]
        %v2672 = vld [vmem:[%s2 + $0x210] sm:$0xf]
        %v2673 = vld [vmem:[%s2 + $0x214] sm:$0xf]
        %v2674 = vld [vmem:[%s2 + $0x218] sm:$0xf]
        %v2675 = vld [vmem:[%s2 + $0x21c] sm:$0xf]
        %v2676 = vld [vmem:[%s2 + $0x220] sm:$0xf]
        %v2677 = vld [vmem:[%s2 + $0x224] sm:$0xf]
        %v2678 = vld [vmem:[%s2 + $0x228] sm:$0xf]
        %v2679 = vld [vmem:[%s2 + $0x22c] sm:$0xf]
        %v2680 = vld [vmem:[%s2 + $0x230] sm:$0xf]
        %v2681 = vld [vmem:[%s2 + $0x234] sm:$0xf]
        %v2682 = vld [vmem:[%s2 + $0x238] sm:$0xf]
        %v2683 = vld [vmem:[%s2 + $0x23c] sm:$0xf]
        %v2724 = vunpack.c.l.b16 %v2500
        %v2725 = vunpack.c.h.b16 %v2500
        %v2726 = vunpack.c.l.b16 %v2501
        %v2727 = vunpack.c.h.b16 %v2501
        %v2728 = vunpack.c.l.b16 %v2502
        %v2729 = vunpack.c.h.b16 %v2502
        %v2730 = vunpack.c.l.b16 %v2503
        %v2731 = vunpack.c.h.b16 %v2503
        %v2732 = vunpack.c.l.b16 %v2504
        %v2733 = vunpack.c.l.b16 %v2505
        %v2734 = vunpack.c.h.b16 %v2505
        %v2735 = vunpack.c.l.b16 %v2506
        %v2736 = vunpack.c.h.b16 %v2506
        %v2737 = vunpack.c.l.b16 %v2507
        %v2738 = vunpack.c.h.b16 %v2507
        %v2739 = vunpack.c.l.b16 %v2508
        %v2740 = vunpack.c.h.b16 %v2508
        %v2741 = vunpack.c.l.b16 %v2509
        %v2742 = vunpack.c.l.b16 %v2510
        %v2743 = vunpack.c.h.b16 %v2510
        %v2744 = vunpack.c.l.b16 %v2511
        %v2745 = vunpack.c.h.b16 %v2511
        %v2746 = vunpack.c.l.b16 %v2512
        %v2747 = vunpack.c.h.b16 %v2512
        %v2748 = vunpack.c.l.b16 %v2513
        %v2749 = vunpack.c.h.b16 %v2513
        %v2750 = vunpack.c.l.b16 %v2514
        %v2751 = vunpack.c.l.b16 %v2515
        %v2752 = vunpack.c.h.b16 %v2515
        %v2753 = vunpack.c.l.b16 %v2516
        %v2754 = vunpack.c.h.b16 %v2516
        %v2755 = vunpack.c.l.b16 %v2517
        %v2756 = vunpack.c.h.b16 %v2517
        %v2757 = vunpack.c.l.b16 %v2518
        %v2758 = vunpack.c.h.b16 %v2518
        %v2759 = vunpack.c.l.b16 %v2519
        %v2760 = vunpack.c.l.b16 %v2520
        %v2761 = vunpack.c.h.b16 %v2520
        %v2762 = vunpack.c.l.b16 %v2521
        %v2763 = vunpack.c.h.b16 %v2521
        %v2764 = vunpack.c.l.b16 %v2522
        %v2765 = vunpack.c.h.b16 %v2522
        %v2766 = vunpack.c.l.b16 %v2523
        %v2767 = vunpack.c.h.b16 %v2523
        %v2768 = vunpack.c.l.b16 %v2524
        %v2769 = vunpack.c.l.b16 %v2525
        %v2770 = vunpack.c.h.b16 %v2525
        %v2771 = vunpack.c.l.b16 %v2526
        %v2772 = vunpack.c.h.b16 %v2526
        %v2773 = vunpack.c.l.b16 %v2527
        %v2774 = vunpack.c.h.b16 %v2527
        %v2775 = vunpack.c.l.b16 %v2528
        %v2776 = vunpack.c.h.b16 %v2528
        %v2777 = vunpack.c.l.b16 %v2529
        %v2778 = vunpack.c.l.b16 %v2530
        %v2779 = vunpack.c.h.b16 %v2530
        %v2780 = vunpack.c.l.b16 %v2531
        %v2781 = vunpack.c.h.b16 %v2531
        %v2782 = vunpack.c.l.b16 %v2532
        %v2783 = vunpack.c.h.b16 %v2532
        %v2784 = vunpack.c.l.b16 %v2533
        %v2785 = vunpack.c.h.b16 %v2533
        %v2786 = vunpack.c.l.b16 %v2534
        %v2787 = vunpack.c.l.b16 %v2535
        %v2788 = vunpack.c.h.b16 %v2535
        %v2789 = vunpack.c.l.b16 %v2536
        %v2790 = vunpack.c.h.b16 %v2536
        %v2791 = vunpack.c.l.b16 %v2537
        %v2792 = vunpack.c.h.b16 %v2537
        %v2793 = vunpack.c.l.b16 %v2538
        %v2794 = vunpack.c.h.b16 %v2538
        %v2795 = vunpack.c.l.b16 %v2539
        %v2796 = vpack.c.b16 %v2733, %v2724
        %v2797 = vpack.c.b16 %v2734, %v2725
        %v2798 = vpack.c.b16 %v2735, %v2726
        %v2799 = vpack.c.b16 %v2736, %v2727
        %v2800 = vpack.c.b16 %v2737, %v2728
        %v2801 = vpack.c.b16 %v2738, %v2729
        %v2802 = vpack.c.b16 %v2739, %v2730
        %v2803 = vpack.c.b16 %v2740, %v2731
        %v2804 = vpack.c.b16 %v2741, %v2732
        %v2805 = vpack.c.b16 %v2751, %v2742
        %v2806 = vpack.c.b16 %v2752, %v2743
        %v2807 = vpack.c.b16 %v2753, %v2744
        %v2808 = vpack.c.b16 %v2754, %v2745
        %v2809 = vpack.c.b16 %v2755, %v2746
        %v2810 = vpack.c.b16 %v2756, %v2747
        %v2811 = vpack.c.b16 %v2757, %v2748
        %v2812 = vpack.c.b16 %v2758, %v2749
        %v2813 = vpack.c.b16 %v2759, %v2750
        %v2814 = vpack.c.b16 %v2769, %v2760
        %v2815 = vpack.c.b16 %v2770, %v2761
        %v2816 = vpack.c.b16 %v2771, %v2762
        %v2817 = vpack.c.b16 %v2772, %v2763
        %v2818 = vpack.c.b16 %v2773, %v2764
        %v2819 = vpack.c.b16 %v2774, %v2765
        %v2820 = vpack.c.b16 %v2775, %v2766
        %v2821 = vpack.c.b16 %v2776, %v2767
        %v2822 = vpack.c.b16 %v2777, %v2768
        %v2823 = vpack.c.b16 %v2787, %v2778
        %v2824 = vpack.c.b16 %v2788, %v2779
        %v2825 = vpack.c.b16 %v2789, %v2780
        %v2826 = vpack.c.b16 %v2790, %v2781
        %v2827 = vpack.c.b16 %v2791, %v2782
        %v2828 = vpack.c.b16 %v2792, %v2783
        %v2829 = vpack.c.b16 %v2793, %v2784
        %v2830 = vpack.c.b16 %v2794, %v2785
        %v2831 = vpack.c.b16 %v2795, %v2786
        %v3012 = vunpack.c.l.b16 %v2540
        %v3013 = vunpack.c.l.b16 %v2541
        %v3014 = vunpack.c.l.b16 %v2542
        %v3015 = vunpack.c.l.b16 %v2543
        %v3016 = vunpack.c.l.b16 %v2544
        %v3017 = vunpack.c.l.b16 %v2545
        %v3018 = vunpack.c.l.b16 %v2546
        %v3019 = vunpack.c.l.b16 %v2547
        %v3020 = vunpack.c.l.b16 %v2548
        %v3021 = vunpack.c.l.b16 %v2549
        %v3022 = vunpack.c.l.b16 %v2550
        %v3023 = vunpack.c.l.b16 %v2551
        %v3024 = vunpack.c.l.b16 %v2552
        %v3025 = vunpack.c.l.b16 %v2553
        %v3026 = vunpack.c.l.b16 %v2554
        %v3027 = vunpack.c.l.b16 %v2555
        %v3028 = vunpack.c.l.b16 %v2556
        %v3029 = vunpack.c.l.b16 %v2557
        %v3030 = vunpack.c.l.b16 %v2558
        %v3031 = vunpack.c.l.b16 %v2559
        %v3032 = vunpack.c.l.b16 %v2560
        %v3033 = vunpack.c.l.b16 %v2561
        %v3034 = vunpack.c.l.b16 %v2562
        %v3035 = vunpack.c.l.b16 %v2563
        %v3036 = vunpack.c.l.b16 %v2564
        %v3037 = vunpack.c.l.b16 %v2565
        %v3038 = vunpack.c.l.b16 %v2566
        %v3039 = vunpack.c.l.b16 %v2567
        %v3040 = vunpack.c.l.b16 %v2568
        %v3041 = vunpack.c.l.b16 %v2569
        %v3042 = vunpack.c.l.b16 %v2570
        %v3043 = vunpack.c.l.b16 %v2571
        %v3044 = vunpack.c.l.b16 %v2572
        %v3045 = vunpack.c.l.b16 %v2573
        %v3046 = vunpack.c.l.b16 %v2574
        %v3047 = vunpack.c.l.b16 %v2575
        %v3048 = vunpack.c.l.b16 %v2576
        %v3049 = vunpack.c.l.b16 %v2577
        %v3050 = vunpack.c.l.b16 %v2578
        %v3051 = vunpack.c.l.b16 %v2579
        %v3052 = vunpack.c.l.b16 %v2580
        %v3053 = vunpack.c.l.b16 %v2581
        %v3054 = vunpack.c.l.b16 %v2582
        %v3055 = vunpack.c.l.b16 %v2583
        %v3056 = vunpack.c.l.b16 %v2584
        %v3057 = vunpack.c.l.b16 %v2585
        %v3058 = vunpack.c.l.b16 %v2586
        %v3059 = vunpack.c.l.b16 %v2587
        %v3060 = vunpack.c.l.b16 %v2588
        %v3061 = vunpack.c.l.b16 %v2589
        %v3062 = vunpack.c.l.b16 %v2590
        %v3063 = vunpack.c.l.b16 %v2591
        %v3064 = vunpack.c.l.b16 %v2592
        %v3065 = vunpack.c.l.b16 %v2593
        %v3066 = vunpack.c.l.b16 %v2594
        %v3067 = vunpack.c.l.b16 %v2595
        %v3068 = vunpack.c.l.b16 %v2596
        %v3069 = vunpack.c.l.b16 %v2597
        %v3070 = vunpack.c.l.b16 %v2598
        %v3071 = vunpack.c.l.b16 %v2599
        %v3072 = vunpack.c.l.b16 %v2600
        %v3073 = vunpack.c.l.b16 %v2601
        %v3074 = vunpack.c.l.b16 %v2602
        %v3075 = vunpack.c.l.b16 %v2603
        %v3076 = vunpack.c.l.b16 %v2604
        %v3077 = vunpack.c.l.b16 %v2605
        %v3078 = vunpack.c.l.b16 %v2606
        %v3079 = vunpack.c.l.b16 %v2607
        %v3080 = vunpack.c.l.b16 %v2608
        %v3081 = vunpack.c.l.b16 %v2609
        %v3082 = vunpack.c.l.b16 %v2610
        %v3083 = vunpack.c.l.b16 %v2611
        %v3084 = vunpack.c.l.b16 %v2612
        %v3085 = vunpack.c.l.b16 %v2613
        %v3086 = vunpack.c.l.b16 %v2614
        %v3087 = vunpack.c.l.b16 %v2615
        %v3088 = vunpack.c.l.b16 %v2616
        %v3089 = vunpack.c.l.b16 %v2617
        %v3090 = vunpack.c.l.b16 %v2618
        %v3091 = vunpack.c.l.b16 %v2619
        %v3092 = vunpack.c.l.b16 %v2620
        %v3093 = vunpack.c.l.b16 %v2621
        %v3094 = vunpack.c.l.b16 %v2622
        %v3095 = vunpack.c.l.b16 %v2623
        %v3096 = vunpack.c.l.b16 %v2624
        %v3097 = vunpack.c.l.b16 %v2625
        %v3098 = vunpack.c.l.b16 %v2626
        %v3099 = vunpack.c.l.b16 %v2627
        %v3100 = vunpack.c.l.b16 %v2628
        %v3101 = vunpack.c.l.b16 %v2629
        %v3102 = vunpack.c.l.b16 %v2630
        %v3103 = vunpack.c.l.b16 %v2631
        %v3104 = vunpack.c.l.b16 %v2632
        %v3105 = vunpack.c.l.b16 %v2633
        %v3106 = vunpack.c.l.b16 %v2634
        %v3107 = vunpack.c.l.b16 %v2635
        %v3108 = vunpack.c.l.b16 %v2636
        %v3109 = vunpack.c.l.b16 %v2637
        %v3110 = vunpack.c.l.b16 %v2638
        %v3111 = vunpack.c.l.b16 %v2639
        %v3112 = vunpack.c.l.b16 %v2640
        %v3113 = vunpack.c.l.b16 %v2641
        %v3114 = vunpack.c.l.b16 %v2642
        %v3115 = vunpack.c.l.b16 %v2643
        %v3116 = vunpack.c.l.b16 %v2644
        %v3117 = vunpack.c.l.b16 %v2645
        %v3118 = vunpack.c.l.b16 %v2646
        %v3119 = vunpack.c.l.b16 %v2647
        %v3120 = vunpack.c.l.b16 %v2648
        %v3121 = vunpack.c.l.b16 %v2649
        %v3122 = vunpack.c.l.b16 %v2650
        %v3123 = vunpack.c.l.b16 %v2651
        %v3124 = vunpack.c.l.b16 %v2652
        %v3125 = vunpack.c.l.b16 %v2653
        %v3126 = vunpack.c.l.b16 %v2654
        %v3127 = vunpack.c.l.b16 %v2655
        %v3128 = vunpack.c.l.b16 %v2656
        %v3129 = vunpack.c.l.b16 %v2657
        %v3130 = vunpack.c.l.b16 %v2658
        %v3131 = vunpack.c.l.b16 %v2659
        %v3132 = vunpack.c.l.b16 %v2660
        %v3133 = vunpack.c.l.b16 %v2661
        %v3134 = vunpack.c.l.b16 %v2662
        %v3135 = vunpack.c.l.b16 %v2663
        %v3136 = vunpack.c.l.b16 %v2664
        %v3137 = vunpack.c.l.b16 %v2665
        %v3138 = vunpack.c.l.b16 %v2666
        %v3139 = vunpack.c.l.b16 %v2667
        %v3140 = vunpack.c.l.b16 %v2668
        %v3141 = vunpack.c.l.b16 %v2669
        %v3142 = vunpack.c.l.b16 %v2670
        %v3143 = vunpack.c.l.b16 %v2671
        %v3144 = vunpack.c.l.b16 %v2672
        %v3145 = vunpack.c.l.b16 %v2673
        %v3146 = vunpack.c.l.b16 %v2674
        %v3147 = vunpack.c.l.b16 %v2675
        %v3148 = vunpack.c.l.b16 %v2676
        %v3149 = vunpack.c.l.b16 %v2677
        %v3150 = vunpack.c.l.b16 %v2678
        %v3151 = vunpack.c.l.b16 %v2679
        %v3152 = vunpack.c.l.b16 %v2680
        %v3153 = vunpack.c.l.b16 %v2681
        %v3154 = vunpack.c.l.b16 %v2682
        %v3155 = vunpack.c.l.b16 %v2683
        %v3156 = vpack.c.b16 %v3013, %v3012
        %v3157 = vpack.c.b16 %v3015, %v3014
        %v3158 = vpack.c.b16 %v3017, %v3016
        %v3159 = vpack.c.b16 %v3019, %v3018
        %v3160 = vpack.c.b16 %v3021, %v3020
        %v3161 = vpack.c.b16 %v3023, %v3022
        %v3162 = vpack.c.b16 %v3025, %v3024
        %v3163 = vpack.c.b16 %v3027, %v3026
        %v3164 = vpack.c.b16 %v3029, %v3028
        %v3165 = vpack.c.b16 %v3031, %v3030
        %v3166 = vpack.c.b16 %v3033, %v3032
        %v3167 = vpack.c.b16 %v3035, %v3034
        %v3168 = vpack.c.b16 %v3037, %v3036
        %v3169 = vpack.c.b16 %v3039, %v3038
        %v3170 = vpack.c.b16 %v3041, %v3040
        %v3171 = vpack.c.b16 %v3043, %v3042
        %v3172 = vpack.c.b16 %v3045, %v3044
        %v3173 = vpack.c.b16 %v3047, %v3046
        %v3174 = vpack.c.b16 %v3049, %v3048
        %v3175 = vpack.c.b16 %v3051, %v3050
        %v3176 = vpack.c.b16 %v3053, %v3052
        %v3177 = vpack.c.b16 %v3055, %v3054
        %v3178 = vpack.c.b16 %v3057, %v3056
        %v3179 = vpack.c.b16 %v3059, %v3058
        %v3180 = vpack.c.b16 %v3061, %v3060
        %v3181 = vpack.c.b16 %v3063, %v3062
        %v3182 = vpack.c.b16 %v3065, %v3064
        %v3183 = vpack.c.b16 %v3067, %v3066
        %v3184 = vpack.c.b16 %v3069, %v3068
        %v3185 = vpack.c.b16 %v3071, %v3070
        %v3186 = vpack.c.b16 %v3073, %v3072
        %v3187 = vpack.c.b16 %v3075, %v3074
        %v3188 = vpack.c.b16 %v3077, %v3076
        %v3189 = vpack.c.b16 %v3079, %v3078
        %v3190 = vpack.c.b16 %v3081, %v3080
        %v3191 = vpack.c.b16 %v3083, %v3082
        %v3192 = vpack.c.b16 %v3085, %v3084
        %v3193 = vpack.c.b16 %v3087, %v3086
        %v3194 = vpack.c.b16 %v3089, %v3088
        %v3195 = vpack.c.b16 %v3091, %v3090
        %v3196 = vpack.c.b16 %v3093, %v3092
        %v3197 = vpack.c.b16 %v3095, %v3094
        %v3198 = vpack.c.b16 %v3097, %v3096
        %v3199 = vpack.c.b16 %v3099, %v3098
        %v3200 = vpack.c.b16 %v3101, %v3100
        %v3201 = vpack.c.b16 %v3103, %v3102
        %v3202 = vpack.c.b16 %v3105, %v3104
        %v3203 = vpack.c.b16 %v3107, %v3106
        %v3204 = vpack.c.b16 %v3109, %v3108
        %v3205 = vpack.c.b16 %v3111, %v3110
        %v3206 = vpack.c.b16 %v3113, %v3112
        %v3207 = vpack.c.b16 %v3115, %v3114
        %v3208 = vpack.c.b16 %v3117, %v3116
        %v3209 = vpack.c.b16 %v3119, %v3118
        %v3210 = vpack.c.b16 %v3121, %v3120
        %v3211 = vpack.c.b16 %v3123, %v3122
        %v3212 = vpack.c.b16 %v3125, %v3124
        %v3213 = vpack.c.b16 %v3127, %v3126
        %v3214 = vpack.c.b16 %v3129, %v3128
        %v3215 = vpack.c.b16 %v3131, %v3130
        %v3216 = vpack.c.b16 %v3133, %v3132
        %v3217 = vpack.c.b16 %v3135, %v3134
        %v3218 = vpack.c.b16 %v3137, %v3136
        %v3219 = vpack.c.b16 %v3139, %v3138
        %v3220 = vpack.c.b16 %v3141, %v3140
        %v3221 = vpack.c.b16 %v3143, %v3142
        %v3222 = vpack.c.b16 %v3145, %v3144
        %v3223 = vpack.c.b16 %v3147, %v3146
        %v3224 = vpack.c.b16 %v3149, %v3148
        %v3225 = vpack.c.b16 %v3151, %v3150
        %v3226 = vpack.c.b16 %v3153, %v3152
        %v3227 = vpack.c.b16 %v3155, %v3154
        %3300 = vmatpush.bf16.msra.mxu0 %v3163
        %3301 = vmatpush.bf16.msra.mxu0 %v3162
        %3302 = vmatpush.bf16.msra.mxu0 %v3161
        %3303 = vmatpush.bf16.msra.mxu0 %v3160
        %3304 = vmatpush.bf16.msra.mxu0 %v3159
        %3305 = vmatpush.bf16.msra.mxu0 %v3158
        %3306 = vmatpush.bf16.msra.mxu0 %v3157
        %3307 = vmatpush.bf16.msra.mxu0 %v3156
        %3308 = vmatmul.bf16.gmra.mxu0 %v2796
        %v3309 = vpop.f32.mrf.mxu0
        %v3310 = vadd.f32 0.0, %v3309
        %v3311 = vpop.f32.mrf.mxu0
        %v3312 = vadd.f32 0.0, %v3311
        %3313 = vmatmul.bf16.gmra.mxu0 %v2805
        %v3314 = vpop.f32.mrf.mxu0
        %v3315 = vadd.f32 0.0, %v3314
        %v3316 = vpop.f32.mrf.mxu0
        %v3317 = vadd.f32 0.0, %v3316
        %3318 = vmatmul.bf16.gmra.mxu0 %v2814
        %v3319 = vpop.f32.mrf.mxu0
        %v3320 = vadd.f32 0.0, %v3319
        %v3321 = vpop.f32.mrf.mxu0
        %v3322 = vadd.f32 0.0, %v3321
        %3323 = vmatmul.bf16.gmra.mxu0 %v2823
        %v3324 = vpop.f32.mrf.mxu0
        %v3325 = vadd.f32 0.0, %v3324
        %v3326 = vpop.f32.mrf.mxu0
        %v3327 = vadd.f32 0.0, %v3326
        %3328 = vdwg.mxu0
        %3329 = vmatpush.bf16.msra.mxu0 %v3171
        %3330 = vmatpush.bf16.msra.mxu0 %v3170
        %3331 = vmatpush.bf16.msra.mxu0 %v3169
        %3332 = vmatpush.bf16.msra.mxu0 %v3168
        %3333 = vmatpush.bf16.msra.mxu0 %v3167
        %3334 = vmatpush.bf16.msra.mxu0 %v3166
        %3335 = vmatpush.bf16.msra.mxu0 %v3165
        %3336 = vmatpush.bf16.msra.mxu0 %v3164
        %3337 = vmatmul.bf16.gmra.mxu0 %v2797
        %v3338 = vpop.f32.mrf.mxu0
        %v3339 = vadd.f32 %v3310, %v3338
        %v3340 = vpop.f32.mrf.mxu0
        %v3341 = vadd.f32 %v3312, %v3340
        %3342 = vmatmul.bf16.gmra.mxu0 %v2806
        %v3343 = vpop.f32.mrf.mxu0
        %v3344 = vadd.f32 %v3315, %v3343
        %v3345 = vpop.f32.mrf.mxu0
        %v3346 = vadd.f32 %v3317, %v3345
        %3347 = vmatmul.bf16.gmra.mxu0 %v2815
        %v3348 = vpop.f32.mrf.mxu0
        %v3349 = vadd.f32 %v3320, %v3348
        %v3350 = vpop.f32.mrf.mxu0
        %v3351 = vadd.f32 %v3322, %v3350
        %3352 = vmatmul.bf16.gmra.mxu0 %v2824
        %v3353 = vpop.f32.mrf.mxu0
        %v3354 = vadd.f32 %v3325, %v3353
        %v3355 = vpop.f32.mrf.mxu0
        %v3356 = vadd.f32 %v3327, %v3355
        %3357 = vdwg.mxu0
        %3358 = vmatpush.bf16.msra.mxu0 %v3179
        %3359 = vmatpush.bf16.msra.mxu0 %v3178
        %3360 = vmatpush.bf16.msra.mxu0 %v3177
        %3361 = vmatpush.bf16.msra.mxu0 %v3176
        %3362 = vmatpush.bf16.msra.mxu0 %v3175
        %3363 = vmatpush.bf16.msra.mxu0 %v3174
        %3364 = vmatpush.bf16.msra.mxu0 %v3173
        %3365 = vmatpush.bf16.msra.mxu0 %v3172
        %3366 = vmatmul.bf16.gmra.mxu0 %v2798
        %v3367 = vpop.f32.mrf.mxu0
        %v3368 = vadd.f32 %v3339, %v3367
        %v3369 = vpop.f32.mrf.mxu0
        %v3370 = vadd.f32 %v3341, %v3369
        %3371 = vmatmul.bf16.gmra.mxu0 %v2807
        %v3372 = vpop.f32.mrf.mxu0
        %v3373 = vadd.f32 %v3344, %v3372
        %v3374 = vpop.f32.mrf.mxu0
        %v3375 = vadd.f32 %v3346, %v3374
        %3376 = vmatmul.bf16.gmra.mxu0 %v2816
        %v3377 = vpop.f32.mrf.mxu0
        %v3378 = vadd.f32 %v3349, %v3377
        %v3379 = vpop.f32.mrf.mxu0
        %v3380 = vadd.f32 %v3351, %v3379
        %3381 = vmatmul.bf16.gmra.mxu0 %v2825
        %v3382 = vpop.f32.mrf.mxu0
        %v3383 = vadd.f32 %v3354, %v3382
        %v3384 = vpop.f32.mrf.mxu0
        %v3385 = vadd.f32 %v3356, %v3384
        %3386 = vdwg.mxu0
        %3387 = vmatpush.bf16.msra.mxu0 %v3187
        %3388 = vmatpush.bf16.msra.mxu0 %v3186
        %3389 = vmatpush.bf16.msra.mxu0 %v3185
        %3390 = vmatpush.bf16.msra.mxu0 %v3184
        %3391 = vmatpush.bf16.msra.mxu0 %v3183
        %3392 = vmatpush.bf16.msra.mxu0 %v3182
        %3393 = vmatpush.bf16.msra.mxu0 %v3181
        %3394 = vmatpush.bf16.msra.mxu0 %v3180
        %3395 = vmatmul.bf16.gmra.mxu0 %v2799
        %v3396 = vpop.f32.mrf.mxu0
        %v3397 = vadd.f32 %v3368, %v3396
        %v3398 = vpop.f32.mrf.mxu0
        %v3399 = vadd.f32 %v3370, %v3398
        %3400 = vmatmul.bf16.gmra.mxu0 %v2808
        %v3401 = vpop.f32.mrf.mxu0
        %v3402 = vadd.f32 %v3373, %v3401
        %v3403 = vpop.f32.mrf.mxu0
        %v3404 = vadd.f32 %v3375, %v3403
        %3405 = vmatmul.bf16.gmra.mxu0 %v2817
        %v3406 = vpop.f32.mrf.mxu0
        %v3407 = vadd.f32 %v3378, %v3406
        %v3408 = vpop.f32.mrf.mxu0
        %v3409 = vadd.f32 %v3380, %v3408
        %3410 = vmatmul.bf16.gmra.mxu0 %v2826
        %v3411 = vpop.f32.mrf.mxu0
        %v3412 = vadd.f32 %v3383, %v3411
        %v3413 = vpop.f32.mrf.mxu0
        %v3414 = vadd.f32 %v3385, %v3413
        %3415 = vdwg.mxu0
        %3416 = vmatpush.bf16.msra.mxu0 %v3195
        %3417 = vmatpush.bf16.msra.mxu0 %v3194
        %3418 = vmatpush.bf16.msra.mxu0 %v3193
        %3419 = vmatpush.bf16.msra.mxu0 %v3192
        %3420 = vmatpush.bf16.msra.mxu0 %v3191
        %3421 = vmatpush.bf16.msra.mxu0 %v3190
        %3422 = vmatpush.bf16.msra.mxu0 %v3189
        %3423 = vmatpush.bf16.msra.mxu0 %v3188
        %3424 = vmatmul.bf16.gmra.mxu0 %v2800
        %v3425 = vpop.f32.mrf.mxu0
        %v3426 = vadd.f32 %v3397, %v3425
        %v3427 = vpop.f32.mrf.mxu0
        %v3428 = vadd.f32 %v3399, %v3427
        %3429 = vmatmul.bf16.gmra.mxu0 %v2809
        %v3430 = vpop.f32.mrf.mxu0
        %v3431 = vadd.f32 %v3402, %v3430
        %v3432 = vpop.f32.mrf.mxu0
        %v3433 = vadd.f32 %v3404, %v3432
        %3434 = vmatmul.bf16.gmra.mxu0 %v2818
        %v3435 = vpop.f32.mrf.mxu0
        %v3436 = vadd.f32 %v3407, %v3435
        %v3437 = vpop.f32.mrf.mxu0
        %v3438 = vadd.f32 %v3409, %v3437
        %3439 = vmatmul.bf16.gmra.mxu0 %v2827
        %v3440 = vpop.f32.mrf.mxu0
        %v3441 = vadd.f32 %v3412, %v3440
        %v3442 = vpop.f32.mrf.mxu0
        %v3443 = vadd.f32 %v3414, %v3442
        %3444 = vdwg.mxu0
        %3445 = vmatpush.bf16.msra.mxu0 %v3203
        %3446 = vmatpush.bf16.msra.mxu0 %v3202
        %3447 = vmatpush.bf16.msra.mxu0 %v3201
        %3448 = vmatpush.bf16.msra.mxu0 %v3200
        %3449 = vmatpush.bf16.msra.mxu0 %v3199
        %3450 = vmatpush.bf16.msra.mxu0 %v3198
        %3451 = vmatpush.bf16.msra.mxu0 %v3197
        %3452 = vmatpush.bf16.msra.mxu0 %v3196
        %3453 = vmatmul.bf16.gmra.mxu0 %v2801
        %v3454 = vpop.f32.mrf.mxu0
        %v3455 = vadd.f32 %v3426, %v3454
        %v3456 = vpop.f32.mrf.mxu0
        %v3457 = vadd.f32 %v3428, %v3456
        %3458 = vmatmul.bf16.gmra.mxu0 %v2810
        %v3459 = vpop.f32.mrf.mxu0
        %v3460 = vadd.f32 %v3431, %v3459
        %v3461 = vpop.f32.mrf.mxu0
        %v3462 = vadd.f32 %v3433, %v3461
        %3463 = vmatmul.bf16.gmra.mxu0 %v2819
        %v3464 = vpop.f32.mrf.mxu0
        %v3465 = vadd.f32 %v3436, %v3464
        %v3466 = vpop.f32.mrf.mxu0
        %v3467 = vadd.f32 %v3438, %v3466
        %3468 = vmatmul.bf16.gmra.mxu0 %v2828
        %v3469 = vpop.f32.mrf.mxu0
        %v3470 = vadd.f32 %v3441, %v3469
        %v3471 = vpop.f32.mrf.mxu0
        %v3472 = vadd.f32 %v3443, %v3471
        %3473 = vdwg.mxu0
        %3474 = vmatpush.bf16.msra.mxu0 %v3211
        %3475 = vmatpush.bf16.msra.mxu0 %v3210
        %3476 = vmatpush.bf16.msra.mxu0 %v3209
        %3477 = vmatpush.bf16.msra.mxu0 %v3208
        %3478 = vmatpush.bf16.msra.mxu0 %v3207
        %3479 = vmatpush.bf16.msra.mxu0 %v3206
        %3480 = vmatpush.bf16.msra.mxu0 %v3205
        %3481 = vmatpush.bf16.msra.mxu0 %v3204
        %3482 = vmatmul.bf16.gmra.mxu0 %v2802
        %v3483 = vpop.f32.mrf.mxu0
        %v3484 = vadd.f32 %v3455, %v3483
        %v3485 = vpop.f32.mrf.mxu0
        %v3486 = vadd.f32 %v3457, %v3485
        %3487 = vmatmul.bf16.gmra.mxu0 %v2811
        %v3488 = vpop.f32.mrf.mxu0
        %v3489 = vadd.f32 %v3460, %v3488
        %v3490 = vpop.f32.mrf.mxu0
        %v3491 = vadd.f32 %v3462, %v3490
        %3492 = vmatmul.bf16.gmra.mxu0 %v2820
        %v3493 = vpop.f32.mrf.mxu0
        %v3494 = vadd.f32 %v3465, %v3493
        %v3495 = vpop.f32.mrf.mxu0
        %v3496 = vadd.f32 %v3467, %v3495
        %3497 = vmatmul.bf16.gmra.mxu0 %v2829
        %v3498 = vpop.f32.mrf.mxu0
        %v3499 = vadd.f32 %v3470, %v3498
        %v3500 = vpop.f32.mrf.mxu0
        %v3501 = vadd.f32 %v3472, %v3500
        %3502 = vdwg.mxu0
        %3503 = vmatpush.bf16.msra.mxu0 %v3219
        %3504 = vmatpush.bf16.msra.mxu0 %v3218
        %3505 = vmatpush.bf16.msra.mxu0 %v3217
        %3506 = vmatpush.bf16.msra.mxu0 %v3216
        %3507 = vmatpush.bf16.msra.mxu0 %v3215
        %3508 = vmatpush.bf16.msra.mxu0 %v3214
        %3509 = vmatpush.bf16.msra.mxu0 %v3213
        %3510 = vmatpush.bf16.msra.mxu0 %v3212
        %3511 = vmatmul.bf16.gmra.mxu0 %v2803
        %v3512 = vpop.f32.mrf.mxu0
        %v3513 = vadd.f32 %v3484, %v3512
        %v3514 = vpop.f32.mrf.mxu0
        %v3515 = vadd.f32 %v3486, %v3514
        %3516 = vmatmul.bf16.gmra.mxu0 %v2812
        %v3517 = vpop.f32.mrf.mxu0
        %v3518 = vadd.f32 %v3489, %v3517
        %v3519 = vpop.f32.mrf.mxu0
        %v3520 = vadd.f32 %v3491, %v3519
        %3521 = vmatmul.bf16.gmra.mxu0 %v2821
        %v3522 = vpop.f32.mrf.mxu0
        %v3523 = vadd.f32 %v3494, %v3522
        %v3524 = vpop.f32.mrf.mxu0
        %v3525 = vadd.f32 %v3496, %v3524
        %3526 = vmatmul.bf16.gmra.mxu0 %v2830
        %v3527 = vpop.f32.mrf.mxu0
        %v3528 = vadd.f32 %v3499, %v3527
        %v3529 = vpop.f32.mrf.mxu0
        %v3530 = vadd.f32 %v3501, %v3529
        %3531 = vdwg.mxu0
        %3532 = vmatpush.bf16.msra.mxu0 %v3227
        %3533 = vmatpush.bf16.msra.mxu0 %v3226
        %3534 = vmatpush.bf16.msra.mxu0 %v3225
        %3535 = vmatpush.bf16.msra.mxu0 %v3224
        %3536 = vmatpush.bf16.msra.mxu0 %v3223
        %3537 = vmatpush.bf16.msra.mxu0 %v3222
        %3538 = vmatpush.bf16.msra.mxu0 %v3221
        %3539 = vmatpush.bf16.msra.mxu0 %v3220
        %3540 = vmatmul.bf16.gmra.mxu0 %v2804
        %v3541 = vpop.f32.mrf.mxu0
        %v3542 = vadd.f32 %v3513, %v3541
        %v3543 = vpop.f32.mrf.mxu0
        %v3544 = vadd.f32 %v3515, %v3543
        %3545 = vmatmul.bf16.gmra.mxu0 %v2813
        %v3546 = vpop.f32.mrf.mxu0
        %v3547 = vadd.f32 %v3518, %v3546
        %v3548 = vpop.f32.mrf.mxu0
        %v3549 = vadd.f32 %v3520, %v3548
        %3550 = vmatmul.bf16.gmra.mxu0 %v2822
        %v3551 = vpop.f32.mrf.mxu0
        %v3552 = vadd.f32 %v3523, %v3551
        %v3553 = vpop.f32.mrf.mxu0
        %v3554 = vadd.f32 %v3525, %v3553
        %3555 = vmatmul.bf16.gmra.mxu0 %v2831
        %v3556 = vpop.f32.mrf.mxu0
        %v3557 = vadd.f32 %v3528, %v3556
        %v3558 = vpop.f32.mrf.mxu0
        %v3559 = vadd.f32 %v3530, %v3558
        %3560 = vdwg.mxu0
        %v3561 = vld [vmem:[%s4 + $0x3] sm:$0x1]
        %v3562 = vld [vmem:[%s4 + $0x4] sm:$0x1]
        %v3563 = vld [vmem:[%s4 + $0x5] sm:$0x1]
        %v3564 = vadd.f32 %v3542, %v3544
        %v3565 = vadd.f32 %v3564, %v3547
        %v3566 = vadd.f32 %v3565, %v3549
        %v3567 = vadd.f32 %v3566, %v3552
        %v3568 = vadd.f32 %v3567, %v3554
        %v3569 = vadd.f32 %v3568, %v3557
        %v3570 = vadd.f32 %v3569, %v3559
        %v3571 = vrot.slane %v3570, 4
        %v3572 = vadd.f32 %v3570, %v3571
        %v3573 = vrot.slane %v3572, 2
        %v3574 = vadd.f32 %v3572, %v3573
        %v3575 = vrot.slane %v3574, 1
        %v3576 = vadd.f32 %v3574, %v3575
        %v3577 = vmul.f32 %v3561, 64.0
        %v3578 = vadd.f32 %v3576, %v3577
        %3579 = vmatpush.msra.mxu0 %v294
        %3580 = vmatpush.msra.mxu0 %v293
        %3581 = vmatpush.msra.mxu0 %v292
        %3582 = vmatpush.msra.mxu0 %v291
        %3583 = vmatpush.msra.mxu0 %v290
        %3584 = vmatpush.msra.mxu0 %v289
        %3585 = vmatpush.msra.mxu0 %v288
        %3586 = vmatpush.msra.mxu0 %v287
        %3587 = vmatpush.msra.mxu0 %v286
        %3588 = vmatpush.msra.mxu0 %v285
        %3589 = vmatpush.msra.mxu0 %v284
        %3590 = vmatpush.msra.mxu0 %v283
        %3591 = vmatpush.msra.mxu0 %v282
        %3592 = vmatpush.msra.mxu0 %v281
        %3593 = vmatpush.msra.mxu0 %v280
        %3594 = vmatpush.msra.mxu0 %v279
        %3595 = vmatmul.f32.gmra.mxu0 %v3578
        %v3596 = vpop.f32.mrf.mxu0
        %v3597 = vadd.f32 0.0, %v3596
        %3598 = vdwg.mxu0
        %v3599 = vmul.f32 %v3597, 0.001953125
        %v3601 = vsel %vm1256, %v3599, 0
        %3603 = vmatpush.msra.mxu0 0.0
        %3604 = vmatpush.msra.mxu0 0.0
        %3605 = vmatpush.msra.mxu0 0.0
        %3606 = vmatpush.msra.mxu0 0.0
        %3607 = vmatpush.msra.mxu0 0.0
        %3608 = vmatpush.msra.mxu0 0.0
        %3609 = vmatpush.msra.mxu0 0.0
        %3610 = vmatpush.msra.mxu0 0.0
        %3611 = vmatpush.msra.mxu0 0.0
        %3612 = vmatpush.msra.mxu0 0.0
        %3613 = vmatpush.msra.mxu0 0.0
        %3614 = vmatpush.msra.mxu0 0.0
        %3615 = vmatpush.msra.mxu0 0.0
        %3616 = vmatpush.msra.mxu0 0.0
        %3617 = vmatpush.msra.mxu0 0.0
        %3618 = vmatpush.msra.mxu0 %v1262
        %3619 = vmatmul.f32.gmra.mxu0 %v3601
        %v3620 = vpop.f32.mrf.mxu0
        %v3621 = vadd.f32 0.0, %v3620
        %3622 = vdwg.mxu0
        %v3623 = vsub.f32 %v3561, %v3621
        %v3624 = vperm.slane %v3623, 0
        %v3625 = vadd.f32 %v3542, %v3624
        %v3626 = vadd.f32 %v3544, %v3624
        %v3627 = vadd.f32 %v3547, %v3624
        %v3628 = vadd.f32 %v3549, %v3624
        %v3629 = vadd.f32 %v3552, %v3624
        %v3630 = vadd.f32 %v3554, %v3624
        %v3631 = vadd.f32 %v3557, %v3624
        %v3632 = vadd.f32 %v3559, %v3624
        %v3633 = vmul.f32 %v3625, %v3625
        %v3634 = vmul.f32 %v3626, %v3626
        %v3635 = vmul.f32 %v3627, %v3627
        %v3636 = vmul.f32 %v3628, %v3628
        %v3637 = vmul.f32 %v3629, %v3629
        %v3638 = vmul.f32 %v3630, %v3630
        %v3639 = vmul.f32 %v3631, %v3631
        %v3640 = vmul.f32 %v3632, %v3632
        %v3641 = vadd.f32 %v3633, %v3634
        %v3642 = vadd.f32 %v3641, %v3635
        %v3643 = vadd.f32 %v3642, %v3636
        %v3644 = vadd.f32 %v3643, %v3637
        %v3645 = vadd.f32 %v3644, %v3638
        %v3646 = vadd.f32 %v3645, %v3639
        %v3647 = vadd.f32 %v3646, %v3640
        %v3648 = vrot.slane %v3647, 4
        %v3649 = vadd.f32 %v3647, %v3648
        %v3650 = vrot.slane %v3649, 2
        %v3651 = vadd.f32 %v3649, %v3650
        %v3652 = vrot.slane %v3651, 1
        %v3653 = vadd.f32 %v3651, %v3652
        %3654 = vmatpush.msra.mxu0 %v294
        %3655 = vmatpush.msra.mxu0 %v293
        %3656 = vmatpush.msra.mxu0 %v292
        %3657 = vmatpush.msra.mxu0 %v291
        %3658 = vmatpush.msra.mxu0 %v290
        %3659 = vmatpush.msra.mxu0 %v289
        %3660 = vmatpush.msra.mxu0 %v288
        %3661 = vmatpush.msra.mxu0 %v287
        %3662 = vmatpush.msra.mxu0 %v286
        %3663 = vmatpush.msra.mxu0 %v285
        %3664 = vmatpush.msra.mxu0 %v284
        %3665 = vmatpush.msra.mxu0 %v283
        %3666 = vmatpush.msra.mxu0 %v282
        %3667 = vmatpush.msra.mxu0 %v281
        %3668 = vmatpush.msra.mxu0 %v280
        %3669 = vmatpush.msra.mxu0 %v279
        %3670 = vmatmul.f32.gmra.mxu0 %v3653
        %v3671 = vpop.f32.mrf.mxu0
        %v3672 = vadd.f32 0.0, %v3671
        %3673 = vdwg.mxu0
        %v3674 = vmul.f32 %v3672, 0.001953125
        %v3675 = vadd.f32 %v3674, 1e-05
        %v3676 = vrsqrt.pop %v3675
        %v3677 = vmul.f32 %v3676, %v3675
        %v3678 = vmul.f32 %v3677, %v3676
        %v3679 = vmul.f32 0.5, %v3678
        %v3680 = vsub.f32 1.5, %v3679
        %v3681 = vmul.f32 %v3676, %v3680
        %vm3682 = vweird.f32 %v3675
        %vm3683 = vweird.f32 %v3676
        %vm3684 = vmor %vm3682, %vm3683
        %v3685 = vsel %vm3684, %v3676, %v3681
        %v3687 = vsel %vm1256, %v3685, 0
        %3689 = vmatpush.msra.mxu0 0.0
        %3690 = vmatpush.msra.mxu0 0.0
        %3691 = vmatpush.msra.mxu0 0.0
        %3692 = vmatpush.msra.mxu0 0.0
        %3693 = vmatpush.msra.mxu0 0.0
        %3694 = vmatpush.msra.mxu0 0.0
        %3695 = vmatpush.msra.mxu0 0.0
        %3696 = vmatpush.msra.mxu0 0.0
        %3697 = vmatpush.msra.mxu0 0.0
        %3698 = vmatpush.msra.mxu0 0.0
        %3699 = vmatpush.msra.mxu0 0.0
        %3700 = vmatpush.msra.mxu0 0.0
        %3701 = vmatpush.msra.mxu0 0.0
        %3702 = vmatpush.msra.mxu0 0.0
        %3703 = vmatpush.msra.mxu0 0.0
        %3704 = vmatpush.msra.mxu0 %v1262
        %3705 = vmatmul.f32.gmra.mxu0 %v3687
        %v3706 = vpop.f32.mrf.mxu0
        %v3707 = vadd.f32 0.0, %v3706
        %3708 = vdwg.mxu0
        %v3709 = vmul.f32 %v3707, %v3562
        %v3710 = vperm.slane %v3709, 0
        %v3711 = vmul.f32 %v3625, %v3710
        %v3712 = vmul.f32 %v3626, %v3710
        %v3713 = vmul.f32 %v3627, %v3710
        %v3714 = vmul.f32 %v3628, %v3710
        %v3715 = vmul.f32 %v3629, %v3710
        %v3716 = vmul.f32 %v3630, %v3710
        %v3717 = vmul.f32 %v3631, %v3710
        %v3718 = vmul.f32 %v3632, %v3710
        %v3719 = vperm.slane %v3563, 0
        %v3720 = vadd.f32 %v3711, %v3719
        %v3721 = vadd.f32 %v3712, %v3719
        %v3722 = vadd.f32 %v3713, %v3719
        %v3723 = vadd.f32 %v3714, %v3719
        %v3724 = vadd.f32 %v3715, %v3719
        %v3725 = vadd.f32 %v3716, %v3719
        %v3726 = vadd.f32 %v3717, %v3719
        %v3727 = vadd.f32 %v3718, %v3719
        %v3728 = vmax.f32 %v3720, 0.0
        %v3729 = vmax.f32 %v3721, 0.0
        %v3730 = vmax.f32 %v3722, 0.0
        %v3731 = vmax.f32 %v3723, 0.0
        %v3732 = vmax.f32 %v3724, 0.0
        %v3733 = vmax.f32 %v3725, 0.0
        %v3734 = vmax.f32 %v3726, 0.0
        %v3735 = vmax.f32 %v3727, 0.0
        %v3736 = vadd.f32 %v1630, %v3728
        %v3737 = vadd.f32 %v1631, %v3729
        %v3738 = vadd.f32 %v1632, %v3730
        %v3739 = vadd.f32 %v1633, %v3731
        %v3740 = vadd.f32 %v1634, %v3732
        %v3741 = vadd.f32 %v1635, %v3733
        %v3742 = vadd.f32 %v1636, %v3734
        %v3743 = vadd.f32 %v1637, %v3735
        %v3744 = vmax.f32 %v3736, 0.0
        %v3745 = vmax.f32 %v3737, 0.0
        %v3746 = vmax.f32 %v3738, 0.0
        %v3747 = vmax.f32 %v3739, 0.0
        %v3748 = vmax.f32 %v3740, 0.0
        %v3749 = vmax.f32 %v3741, 0.0
        %v3750 = vmax.f32 %v3742, 0.0
        %v3751 = vmax.f32 %v3743, 0.0
        %3752 = vst [vmem:[%s271] sm:$0xff] %v3744
        %3753 = vst [vmem:[%s271 + $0x8] sm:$0xff] %v3745
        %3754 = vst [vmem:[%s271 + $0x10] sm:$0xff] %v3746
        %3755 = vst [vmem:[%s271 + $0x18] sm:$0xff] %v3747
        %3756 = vst [vmem:[%s271 + $0x20] sm:$0xff] %v3748
        %3757 = vst [vmem:[%s271 + $0x28] sm:$0xff] %v3749
        %3758 = vst [vmem:[%s271 + $0x30] sm:$0xff] %v3750
        %3759 = vst [vmem:[%s271 + $0x38] sm:$0xff] %v3751
        %s3760 = sand.u32 %s181, 1
        %s3761 = scalar_lea.sflag [#allocation6], %s3760
        %s3762 = sand.u32 %s181, 1
        %s3763 = smul.addr %s3762, 64
        %s3764 = scalar_lea.vmem [#allocation5], %s3763
        // Predicated region
        $region49: #{residual_block_forward.1} parent=47 // pred_check
          %p3765 = pneg %p191
        $region50: #{residual_block_forward.1} parent=47 // pred_check_branch
          %3767 = sbr.rel (%p3765) target = $region52
        $region51: #{residual_block_forward.1} parent=47 // pred_region
          %3769 = vsyncadd %s3761, 0
          %s3770 = smul.addr %s21, 8
          %s3771 = smul.addr %s3770, 8
          %s3772 = scalar_lea.hbm %s7, %s3771
          %s3773 = sshll.u32 %s3764, 4
          %s3774 = int_to_ptr.vmem [resolvable:$true] %s3773
          %s3775 = sshll.u32 %s3772, 4
          %s3776 = int_to_ptr.hbm [resolvable:$true] %s3775
          %3781 = dma.vmem_to_hbm [thread:$0]  %s3774, 1024, %s3776, %s3761, 128, 128, 8
        $region52: #{residual_block_forward.1} parent=47 // pred_fallthru
          _
      $region48: #{residual_block_forward.1} parent=5 // pred_fallthru
        _
      %p3782 = scmp.le.s32.totalorder 2, %s16
      // Predicated region
      $region53: #{residual_block_forward.1} parent=5 // pred_check
        %p3783 = pneg %p3782
      $region54: #{residual_block_forward.1} parent=5 // pred_check_branch
        %3785 = sbr.rel (%p3783) target = $region56
      $region55: #{residual_block_forward.1} parent=5 // pred_region
        %s3786 = ssub.s32 %s16, 2
        // Predicated region
        $region57: #{residual_block_forward.1} parent=55 // pred_check
          %p3787 = pneg %p197
        $region58: #{residual_block_forward.1} parent=55 // pred_check_branch
          %3789 = sbr.rel (%p3787) target = $region60
        $region59: #{residual_block_forward.1} parent=55 // pred_region
          %s3790 = sand.u32 %s182, 1
          %s3791 = scalar_lea.sflag [#allocation6], %s3790
          %s3792 = sand.u32 %s182, 1
          %s3793 = smul.addr %s3792, 64
          %s3794 = scalar_lea.vmem [#allocation5], %s3793
          %3796 = dma.done %s3791, 1024
        $region60: #{residual_block_forward.1} parent=55 // pred_fallthru
          _
      $region56: #{residual_block_forward.1} parent=5 // pred_fallthru
        _
    $region6: #{residual_block_forward.1} parent=1 // loop_footer
      %s20 = sadd.s32 1, %s16
    $region7: #{residual_block_forward.1} parent=1 // loop_footer_branch
      %15 = sbr.rel target = $region3
    $region8: #{residual_block_forward.1} parent=1 // loop_exit
      _
    %3797 = vsyncpa [#allocation6], 1
    %s3798 = scalar_lea.sflag [#allocation6], 1
    %3799 = vsyncpa %s3798, 1

</llo_original>
